<compile_context>
chip_gen: v6e
topology: v6e:2x2x1
jax: 0.10.0
libtpu: 0.0.40
codegen_flags: <defaults>
</compile_context>

<pallas_src>
import functools

import jax
import jax.numpy as jnp
from jax.experimental import pallas as pl
from jax.experimental.pallas import tpu as pltpu


# MXU input dtype.  bf16 MXU inputs are supported on v5e/v6e/v7x (only the
# VPU/EUP lack bf16 on v5e); accumulation stays fp32 via
# preferred_element_type.  Set to jnp.float32 for bit-parity testing.
MXU_INPUT_DTYPE = jnp.bfloat16

# Dtype of the returned attention maps.  fp32 matches PyTorch; switch to
# bf16 to halve the dominant HBM writeback when output_attention=True.
ATTN_MAP_DTYPE = jnp.float32

# Per-head context handed from Kernel A to Kernel B.  It is only ever consumed
# as an MXU input, so storing it at MXU precision is free.
CTX_DTYPE = MXU_INPUT_DTYPE

_LN_EPS = 1e-5                      # torch.nn.LayerNorm default
_VMEM_LIMIT = 48 * 1024 * 1024      # <= 48 MiB: headroom on v7x (64 MiB phys)


# ----------------------------------------------------------------------------
# In-kernel helpers
# ----------------------------------------------------------------------------

def _mxu(a, b):
    # a @ b with fp32 accumulation.
    return jnp.dot(a.astype(MXU_INPUT_DTYPE), b.astype(MXU_INPUT_DTYPE),
                   preferred_element_type=jnp.float32)


def _mxu_nt(a, b):
    # a @ b.T with fp32 accumulation (no explicit transpose materialized).
    return jax.lax.dot_general(
        a.astype(MXU_INPUT_DTYPE), b.astype(MXU_INPUT_DTYPE),
        dimension_numbers=(((1,), (1,)), ((), ())),
        preferred_element_type=jnp.float32)


def _layernorm(x, g, b, eps):
    mu = jnp.mean(x, axis=-1, keepdims=True)
    xc = x - mu
    var = jnp.mean(xc * xc, axis=-1, keepdims=True)
    return xc * jax.lax.rsqrt(var + eps) * g + b


def _choose_row_tile(n, max_tile=512):
    # Largest tile <= max_tile that divides n and is a multiple of 8,
    # or the full extent if it already fits (full-dim blocks are always legal).
    if n <= max_tile:
        return n
    for t in (512, 256, 128, 64, 32, 16, 8):
        if t <= max_tile and n % t == 0:
            return t
    return n


# ----------------------------------------------------------------------------
# Kernel A: per-head QKV projection + attention core
#   grid = (B, H); weights are per-head (D,E) blocks selected by the head axis.
# ----------------------------------------------------------------------------

def _attn_head_kernel(*refs, has_mask, out_attn):
    x_ref, wq_ref, bq_ref, wk_ref, bk_ref, wv_ref, bv_ref = refs[:7]
    i = 7
    mask_ref = None
    if has_mask:
        mask_ref = refs[i]
        i += 1
    ctx_ref = refs[i]
    i += 1
    attn_ref = refs[i] if out_attn else None

    x = x_ref[0].astype(MXU_INPUT_DTYPE)                 # (L, D)

    # Per-head projections: contiguous weight blocks -> no lane slicing.
    # (1/sqrt(E) is pre-folded into wq / bq.)
    q = _mxu(x, wq_ref[0]) + bq_ref[0]                   # (L, E)
    k = _mxu(x, wk_ref[0]) + bk_ref[0]                   # (L, E)
    v = _mxu(x, wv_ref[0]) + bv_ref[0]                   # (L, E)

    s = _mxu_nt(q, k)                                    # (L, L), already scaled
    if has_mask:
        # nonzero mask entry => position is masked out (as in FullAttention)
        s = jnp.where(mask_ref[0] != 0, -1e30, s)
    s = s - jnp.max(s, axis=-1, keepdims=True)
    p = jnp.exp(s)
    # Reciprocal runs on the EUP slot; approx=False keeps the softmax close to
    # the PyTorch reference (approx=True is a tiny further win if acceptable).
    p = p * pl.reciprocal(jnp.sum(p, axis=-1, keepdims=True), approx=False)

    if out_attn:
        attn_ref[0, 0] = p.astype(attn_ref.dtype)
    ctx_ref[0, 0] = _mxu(p, v).astype(ctx_ref.dtype)     # (L, E)


def attention_heads(x, p, n_heads, attn_mask=None, output_attention=True):
    # TODO(synk): for very long sequences, additionally tile L (flash-style
    # online softmax); here L fits comfortably in a single VMEM block.
    B, L, D = x.shape
    H = n_heads
    E = D // H

    kernel = functools.partial(_attn_head_kernel,
                               has_mask=attn_mask is not None,
                               out_attn=output_attention)

    in_specs = [
        pl.BlockSpec((1, L, D), lambda b, h: (b, 0, 0)),      # x (once per b)
        pl.BlockSpec((1, D, E), lambda b, h: (h, 0, 0)),      # wq (per head)
        pl.BlockSpec((1, 1, E), lambda b, h: (h, 0, 0)),      # bq
        pl.BlockSpec((1, D, E), lambda b, h: (h, 0, 0)),      # wk
        pl.BlockSpec((1, 1, E), lambda b, h: (h, 0, 0)),      # bk
        pl.BlockSpec((1, D, E), lambda b, h: (h, 0, 0)),      # wv
        pl.BlockSpec((1, 1, E), lambda b, h: (h, 0, 0)),      # bv
    ]
    args = [x, p["wq"], p["bq"], p["wk"], p["bk"], p["wv"], p["bv"]]
    if attn_mask is not None:
        # int8 mask: 4x less DMA / VMEM than the old fp32 mask.
        in_specs.append(pl.BlockSpec((1, L, L), lambda b, h: (b, 0, 0)))
        args.append(attn_mask.astype(jnp.int8))

    out_shape = [jax.ShapeDtypeStruct((B, H, L, E), CTX_DTYPE)]
    out_specs = [pl.BlockSpec((1, 1, L, E), lambda b, h: (b, h, 0, 0))]
    if output_attention:
        out_shape.append(jax.ShapeDtypeStruct((B, H, L, L), ATTN_MAP_DTYPE))
        out_specs.append(pl.BlockSpec((1, 1, L, L), lambda b, h: (b, h, 0, 0)))

    outs = pl.pallas_call(
        kernel,
        out_shape=tuple(out_shape),
        grid=(B, H),
        in_specs=in_specs,
        out_specs=tuple(out_specs),
        compiler_params=pltpu.CompilerParams(
            dimension_semantics=("parallel", "parallel"),
            vmem_limit_bytes=_VMEM_LIMIT),
    )(*args)

    if output_attention:
        return outs[0], outs[1]
    return outs[0], None


# ----------------------------------------------------------------------------
# Kernel B: head merge (per-head MXU accumulation) + out proj + residual + LN1
#           + FFN (ReLU) + residual + LN2 (+ fused final encoder LN)
#   grid = (B, L//TL); weights stay resident (index_map -> 0).
# ----------------------------------------------------------------------------

def _merge_ffn_ln_kernel(*refs, H, eps, final_ln):
    (ctx_ref, x_ref, wo_ref, bo_ref, g1_ref, be1_ref,
     w1_ref, b1_ref, w2_ref, b2_ref, g2_ref, be2_ref) = refs[:12]
    i = 12
    if final_ln:
        gf_ref, bf_ref = refs[i], refs[i + 1]
        i += 2
    o_ref = refs[i]

    x = x_ref[0]                                          # (TL, D) fp32

    # Output projection: concat_h(ctx_h) @ Wo == sum_h ctx_h @ Wo[h]
    # -> per-head accumulation, no concat / lane shuffles.  H is small & static.
    acc = _mxu(ctx_ref[0, 0], wo_ref[0])                  # (TL, D)
    for h in range(1, H):
        acc = acc + _mxu(ctx_ref[0, h], wo_ref[h])
    y = acc + bo_ref[...]

    x1 = _layernorm(x + y, g1_ref[...], be1_ref[...], eps)          # norm1
    hmid = jnp.maximum(_mxu(x1, w1_ref[...]) + b1_ref[...], 0.0)    # conv1+ReLU
    y2 = _mxu(hmid, w2_ref[...]) + b2_ref[...]                      # conv2
    out = _layernorm(x1 + y2, g2_ref[...], be2_ref[...], eps)       # norm2
    if final_ln:
        out = _layernorm(out, gf_ref[...], bf_ref[...], eps)        # encoder LN
    o_ref[0] = out.astype(o_ref.dtype)


def merge_ffn_layer(ctx, x, p, final_norm=None):
    B, H, L, E = ctx.shape
    D = H * E
    F = p["w1"].shape[1]
    TL = _choose_row_tile(L)

    kernel = functools.partial(_merge_ffn_ln_kernel, H=H, eps=_LN_EPS,
                               final_ln=final_norm is not None)

    in_specs = [
        pl.BlockSpec((1, H, TL, E), lambda b, l: (b, 0, l, 0)),   # ctx tile
        pl.BlockSpec((1, TL, D), lambda b, l: (b, l, 0)),         # residual x
        pl.BlockSpec((H, E, D), lambda b, l: (0, 0, 0)),          # wo (resident)
        pl.BlockSpec((1, D), lambda b, l: (0, 0)),                # bo
        pl.BlockSpec((1, D), lambda b, l: (0, 0)),                # gamma1
        pl.BlockSpec((1, D), lambda b, l: (0, 0)),                # beta1
        pl.BlockSpec((D, F), lambda b, l: (0, 0)),                # w1
        pl.BlockSpec((1, F), lambda b, l: (0, 0)),                # b1
        pl.BlockSpec((F, D), lambda b, l: (0, 0)),                # w2
        pl.BlockSpec((1, D), lambda b, l: (0, 0)),                # b2
        pl.BlockSpec((1, D), lambda b, l: (0, 0)),                # gamma2
        pl.BlockSpec((1, D), lambda b, l: (0, 0)),                # beta2
    ]
    args = [ctx, x, p["wo"], p["bo"], p["g1"], p["be1"],
            p["w1"], p["b1"], p["w2"], p["b2"], p["g2"], p["be2"]]
    if final_norm is not None:
        in_specs += [pl.BlockSpec((1, D), lambda b, l: (0, 0)),
                     pl.BlockSpec((1, D), lambda b, l: (0, 0))]
        args += [final_norm["gamma"].reshape(1, D),
                 final_norm["beta"].reshape(1, D)]

    return pl.pallas_call(
        kernel,
        out_shape=jax.ShapeDtypeStruct((B, L, D), jnp.float32),
        grid=(B, L // TL),
        in_specs=in_specs,
        out_specs=pl.BlockSpec((1, TL, D), lambda b, l: (b, l, 0)),
        compiler_params=pltpu.CompilerParams(
            dimension_semantics=("parallel", "parallel"),
            vmem_limit_bytes=_VMEM_LIMIT),
    )(*args)


# ----------------------------------------------------------------------------
# Encoder (pure glue; no JAX-level transposes between kernels)
# ----------------------------------------------------------------------------

def encoder_layer(x, p, n_heads, attn_mask=None, output_attention=True,
                  final_norm=None):
    ctx, attn = attention_heads(x, p, n_heads, attn_mask, output_attention)
    y = merge_ffn_layer(ctx, x, p, final_norm)
    return y, attn


def encoder_forward(x, layer_params, final_norm, n_heads,
                    attn_mask=None, output_attention=True):
    # conv_layers is None path of Encoder.forward; final LayerNorm is fused
    # into the last layer's Kernel B (no standalone LN pass over HBM).
    attns = []
    n = len(layer_params)
    for li, p in enumerate(layer_params):
        fused_final = final_norm if li == n - 1 else None
        x, attn = encoder_layer(x, p, n_heads, attn_mask, output_attention,
                                final_norm=fused_final)
        attns.append(attn)
    return x, attns


# ----------------------------------------------------------------------------
# Parameters: raw (PyTorch-style) init + one-time fusion/folding
# ----------------------------------------------------------------------------

def init_raw_params(key, n_layers, d_model, d_ff):
    layers = []
    for li in range(n_layers):
        k = jax.random.fold_in(key, li)
        ks = jax.random.split(k, 8)
        p = {
            "wq": 0.02 * jax.random.normal(ks[0], (d_model, d_model), jnp.float32),
            "bq": jnp.zeros((d_model,), jnp.float32),
            "wk": 0.02 * jax.random.normal(ks[1], (d_model, d_model), jnp.float32),
            "bk": jnp.zeros((d_model,), jnp.float32),
            "wv": 0.02 * jax.random.normal(ks[2], (d_model, d_model), jnp.float32),
            "bv": jnp.zeros((d_model,), jnp.float32),
            "wo": 0.02 * jax.random.normal(ks[3], (d_model, d_model), jnp.float32),
            "bo": jnp.zeros((d_model,), jnp.float32),
            "w1": 0.02 * jax.random.normal(ks[4], (d_model, d_ff), jnp.float32),
            "b1": jnp.zeros((d_ff,), jnp.float32),
            "w2": 0.02 * jax.random.normal(ks[5], (d_ff, d_model), jnp.float32),
            "b2": jnp.zeros((d_model,), jnp.float32),
            "g1": jnp.ones((d_model,), jnp.float32),
            "be1": jnp.zeros((d_model,), jnp.float32),
            "g2": jnp.ones((d_model,), jnp.float32),
            "be2": jnp.zeros((d_model,), jnp.float32),
        }
        layers.append(p)
    final_norm = {"gamma": jnp.ones((d_model,), jnp.float32),
                  "beta": jnp.zeros((d_model,), jnp.float32)}
    return layers, final_norm


def prepare_layer_params(raw, n_heads):
    # One-time host-side repacking:
    #  * per-head (H, D, E) Q/K/V weights (contiguous head blocks for Kernel A),
    #  * 1/sqrt(E) attention scale folded into the Q weights/bias,
    #  * Wo reshaped to (H, E, D) so the out-projection is a per-head
    #    accumulation (no head concat inside the kernel),
    #  * matmul weights stored in MXU_INPUT_DTYPE (bf16) to halve DMA/VMEM;
    #    biases and LayerNorm params stay fp32.
    D = raw["wq"].shape[0]
    H = n_heads
    E = D // H
    scale = 1.0 / (E ** 0.5)
    wdt = MXU_INPUT_DTYPE

    def per_head(w):  # (D_in, D_out) -> (H, D_in, E)
        return jnp.transpose(w.reshape(D, H, E), (1, 0, 2))

    return {
        "wq": per_head(raw["wq"] * scale).astype(wdt),
        "bq": (raw["bq"] * scale).reshape(H, 1, E),
        "wk": per_head(raw["wk"]).astype(wdt),
        "bk": raw["bk"].reshape(H, 1, E),
        "wv": per_head(raw["wv"]).astype(wdt),
        "bv": raw["bv"].reshape(H, 1, E),
        "wo": raw["wo"].reshape(H, E, D).astype(wdt),
        "bo": raw["bo"].reshape(1, D),
        "g1": raw["g1"].reshape(1, D), "be1": raw["be1"].reshape(1, D),
        "w1": raw["w1"].astype(wdt), "b1": raw["b1"].reshape(1, -1),
        "w2": raw["w2"].astype(wdt), "b2": raw["b2"].reshape(1, D),
        "g2": raw["g2"].reshape(1, D), "be2": raw["be2"].reshape(1, D),
    }


# ----------------------------------------------------------------------------
# Main
# ----------------------------------------------------------------------------

if __name__ == "__main__":
    # NOTE: production configs should use D, L as multiples of 128 for
    # lane-dense stores; these demo shapes just exercise correctness.
    B, L, D = 2, 8, 32
    n_heads = 4
    d_ff = 4 * D
    n_layers = 2

    key = jax.random.PRNGKey(0)
    kx, kp = jax.random.split(key)
    x = jax.random.normal(kx, (B, L, D), jnp.float32)

    raw_layers, final_norm = init_raw_params(kp, n_layers, D, d_ff)
    layer_params = [prepare_layer_params(p, n_heads) for p in raw_layers]

    fwd = jax.jit(functools.partial(encoder_forward, n_heads=n_heads,
                                    output_attention=True))
    out, attns = fwd(x, layer_params, final_norm)

    out = jax.block_until_ready(out)
    for a in attns:
        jax.block_until_ready(a)

    assert out.shape == (B, L, D)
    assert all(a.shape == (B, n_heads, L, L) for a in attns)
    print("KERNEL_OK")
</pallas_src>

<mosaic_0001>
module attributes {stable_mosaic.version = 11 : i64} {
  func.func @_merge_ffn_ln_kernel(%arg0: i32, %arg1: i32, %arg2: memref<1x4x8x8xbf16, #tpu.memory_space<vmem>>, %arg3: memref<1x8x32xf32, #tpu.memory_space<vmem>>, %arg4: memref<4x8x32xbf16, #tpu.memory_space<vmem>>, %arg5: memref<1x32xf32, #tpu.memory_space<vmem>>, %arg6: memref<1x32xf32, #tpu.memory_space<vmem>>, %arg7: memref<1x32xf32, #tpu.memory_space<vmem>>, %arg8: memref<32x128xbf16, #tpu.memory_space<vmem>>, %arg9: memref<1x128xf32, #tpu.memory_space<vmem>>, %arg10: memref<128x32xbf16, #tpu.memory_space<vmem>>, %arg11: memref<1x32xf32, #tpu.memory_space<vmem>>, %arg12: memref<1x32xf32, #tpu.memory_space<vmem>>, %arg13: memref<1x32xf32, #tpu.memory_space<vmem>>, %arg14: memref<1x8x32xf32, #tpu.memory_space<vmem>>) attributes {dimension_semantics = [#tpu.dimension_semantics<parallel>, #tpu.dimension_semantics<parallel>], iteration_bounds = array<i64: 2, 1>, scalar_prefetch = 0 : i64, scratch_operands = 0 : i64, tpu.core_type = #tpu.core_type<tc>, window_params = [{transform_indices = @transform_0, window_bounds = array<i64: 1, 4, 8, 8>}, {transform_indices = @transform_1, window_bounds = array<i64: 1, 8, 32>}, {pipeline_mode = #tpu.pipeline_mode<synchronous>, transform_indices = @transform_2, window_bounds = array<i64: 4, 8, 32>}, {pipeline_mode = #tpu.pipeline_mode<synchronous>, transform_indices = @transform_3, window_bounds = array<i64: 1, 32>}, {pipeline_mode = #tpu.pipeline_mode<synchronous>, transform_indices = @transform_4, window_bounds = array<i64: 1, 32>}, {pipeline_mode = #tpu.pipeline_mode<synchronous>, transform_indices = @transform_5, window_bounds = array<i64: 1, 32>}, {pipeline_mode = #tpu.pipeline_mode<synchronous>, transform_indices = @transform_6, window_bounds = array<i64: 32, 128>}, {pipeline_mode = #tpu.pipeline_mode<synchronous>, transform_indices = @transform_7, window_bounds = array<i64: 1, 128>}, {pipeline_mode = #tpu.pipeline_mode<synchronous>, transform_indices = @transform_8, window_bounds = array<i64: 128, 32>}, {pipeline_mode = #tpu.pipeline_mode<synchronous>, transform_indices = @transform_9, window_bounds = array<i64: 1, 32>}, {pipeline_mode = #tpu.pipeline_mode<synchronous>, transform_indices = @transform_10, window_bounds = array<i64: 1, 32>}, {pipeline_mode = #tpu.pipeline_mode<synchronous>, transform_indices = @transform_11, window_bounds = array<i64: 1, 32>}, {transform_indices = @transform_12, window_bounds = array<i64: 1, 8, 32>}]} {
    %c0 = arith.constant 0 : index
    %c0_0 = arith.constant 0 : index
    %c0_1 = arith.constant 0 : index
    %0 = vector.load %arg3[%c0, %c0_0, %c0_1] : memref<1x8x32xf32, #tpu.memory_space<vmem>>, vector<1x8x32xf32>
    %1 = vector.shape_cast %0 : vector<1x8x32xf32> to vector<8x32xf32>
    %c0_2 = arith.constant 0 : index
    %c0_3 = arith.constant 0 : index
    %c0_4 = arith.constant 0 : index
    %c0_5 = arith.constant 0 : index
    %2 = vector.load %arg2[%c0_2, %c0_3, %c0_4, %c0_5] : memref<1x4x8x8xbf16, #tpu.memory_space<vmem>>, vector<1x1x8x8xbf16>
    %3 = vector.shape_cast %2 : vector<1x1x8x8xbf16> to vector<8x8xbf16>
    %c0_6 = arith.constant 0 : index
    %c0_7 = arith.constant 0 : index
    %c0_8 = arith.constant 0 : index
    %4 = vector.load %arg4[%c0_6, %c0_7, %c0_8] : memref<4x8x32xbf16, #tpu.memory_space<vmem>>, vector<1x8x32xbf16>
    %5 = vector.shape_cast %4 : vector<1x8x32xbf16> to vector<8x32xbf16>
    %cst = arith.constant dense<0.000000e+00> : vector<8x32xf32>
    %6 = tpu.matmul %3, %5, %cst {dimension_numbers = #tpu.dot_dimension_numbers<[1], [0], [0], [1], [0, 0, 1, 1], [], []>} : vector<8x8xbf16>, vector<8x32xbf16>, vector<8x32xf32> -> vector<8x32xf32>
    %c0_9 = arith.constant 0 : index
    %c1 = arith.constant 1 : index
    %c0_10 = arith.constant 0 : index
    %c0_11 = arith.constant 0 : index
    %7 = vector.load %arg2[%c0_9, %c1, %c0_10, %c0_11] : memref<1x4x8x8xbf16, #tpu.memory_space<vmem>>, vector<1x1x8x8xbf16>
    %8 = vector.shape_cast %7 : vector<1x1x8x8xbf16> to vector<8x8xbf16>
    %c1_12 = arith.constant 1 : index
    %c0_13 = arith.constant 0 : index
    %c0_14 = arith.constant 0 : index
    %9 = vector.load %arg4[%c1_12, %c0_13, %c0_14] : memref<4x8x32xbf16, #tpu.memory_space<vmem>>, vector<1x8x32xbf16>
    %10 = vector.shape_cast %9 : vector<1x8x32xbf16> to vector<8x32xbf16>
    %cst_15 = arith.constant dense<0.000000e+00> : vector<8x32xf32>
    %11 = tpu.matmul %8, %10, %cst_15 {dimension_numbers = #tpu.dot_dimension_numbers<[1], [0], [0], [1], [0, 0, 1, 1], [], []>} : vector<8x8xbf16>, vector<8x32xbf16>, vector<8x32xf32> -> vector<8x32xf32>
    %12 = arith.addf %6, %11 : vector<8x32xf32>
    %c0_16 = arith.constant 0 : index
    %c2 = arith.constant 2 : index
    %c0_17 = arith.constant 0 : index
    %c0_18 = arith.constant 0 : index
    %13 = vector.load %arg2[%c0_16, %c2, %c0_17, %c0_18] : memref<1x4x8x8xbf16, #tpu.memory_space<vmem>>, vector<1x1x8x8xbf16>
    %14 = vector.shape_cast %13 : vector<1x1x8x8xbf16> to vector<8x8xbf16>
    %c2_19 = arith.constant 2 : index
    %c0_20 = arith.constant 0 : index
    %c0_21 = arith.constant 0 : index
    %15 = vector.load %arg4[%c2_19, %c0_20, %c0_21] : memref<4x8x32xbf16, #tpu.memory_space<vmem>>, vector<1x8x32xbf16>
    %16 = vector.shape_cast %15 : vector<1x8x32xbf16> to vector<8x32xbf16>
    %cst_22 = arith.constant dense<0.000000e+00> : vector<8x32xf32>
    %17 = tpu.matmul %14, %16, %cst_22 {dimension_numbers = #tpu.dot_dimension_numbers<[1], [0], [0], [1], [0, 0, 1, 1], [], []>} : vector<8x8xbf16>, vector<8x32xbf16>, vector<8x32xf32> -> vector<8x32xf32>
    %18 = arith.addf %12, %17 : vector<8x32xf32>
    %c0_23 = arith.constant 0 : index
    %c3 = arith.constant 3 : index
    %c0_24 = arith.constant 0 : index
    %c0_25 = arith.constant 0 : index
    %19 = vector.load %arg2[%c0_23, %c3, %c0_24, %c0_25] : memref<1x4x8x8xbf16, #tpu.memory_space<vmem>>, vector<1x1x8x8xbf16>
    %20 = vector.shape_cast %19 : vector<1x1x8x8xbf16> to vector<8x8xbf16>
    %c3_26 = arith.constant 3 : index
    %c0_27 = arith.constant 0 : index
    %c0_28 = arith.constant 0 : index
    %21 = vector.load %arg4[%c3_26, %c0_27, %c0_28] : memref<4x8x32xbf16, #tpu.memory_space<vmem>>, vector<1x8x32xbf16>
    %22 = vector.shape_cast %21 : vector<1x8x32xbf16> to vector<8x32xbf16>
    %cst_29 = arith.constant dense<0.000000e+00> : vector<8x32xf32>
    %23 = tpu.matmul %20, %22, %cst_29 {dimension_numbers = #tpu.dot_dimension_numbers<[1], [0], [0], [1], [0, 0, 1, 1], [], []>} : vector<8x8xbf16>, vector<8x32xbf16>, vector<8x32xf32> -> vector<8x32xf32>
    %24 = arith.addf %18, %23 : vector<8x32xf32>
    %c0_30 = arith.constant 0 : index
    %c0_31 = arith.constant 0 : index
    %25 = vector.load %arg5[%c0_30, %c0_31] : memref<1x32xf32, #tpu.memory_space<vmem>>, vector<1x32xf32>
    %26 = vector.broadcast %25 : vector<1x32xf32> to vector<8x32xf32>
    %27 = arith.addf %24, %26 : vector<8x32xf32>
    %28 = arith.addf %1, %27 : vector<8x32xf32>
    %c0_32 = arith.constant 0 : index
    %c0_33 = arith.constant 0 : index
    %29 = vector.load %arg6[%c0_32, %c0_33] : memref<1x32xf32, #tpu.memory_space<vmem>>, vector<1x32xf32>
    %c0_34 = arith.constant 0 : index
    %c0_35 = arith.constant 0 : index
    %30 = vector.load %arg7[%c0_34, %c0_35] : memref<1x32xf32, #tpu.memory_space<vmem>>, vector<1x32xf32>
    %cst_36 = arith.constant dense<0.000000e+00> : vector<8xf32>
    %31 = vector.multi_reduction <add>, %28, %cst_36 [1] : vector<8x32xf32> to vector<8xf32>
    %32 = vector.shape_cast %31 : vector<8xf32> to vector<8x1xf32>
    %cst_37 = arith.constant 3.200000e+01 : f32
    %33 = vector.broadcast %cst_37 : f32 to vector<8x1xf32>
    %34 = arith.divf %32, %33 : vector<8x1xf32>
    %35 = vector.broadcast %34 : vector<8x1xf32> to vector<8x32xf32>
    %36 = arith.subf %28, %35 : vector<8x32xf32>
    %37 = arith.mulf %36, %36 : vector<8x32xf32>
    %cst_38 = arith.constant dense<0.000000e+00> : vector<8xf32>
    %38 = vector.multi_reduction <add>, %37, %cst_38 [1] : vector<8x32xf32> to vector<8xf32>
    %39 = vector.shape_cast %38 : vector<8xf32> to vector<8x1xf32>
    %cst_39 = arith.constant 3.200000e+01 : f32
    %40 = vector.broadcast %cst_39 : f32 to vector<8x1xf32>
    %41 = arith.divf %39, %40 : vector<8x1xf32>
    %cst_40 = arith.constant 9.99999974E-6 : f32
    %42 = vector.broadcast %cst_40 : f32 to vector<8x1xf32>
    %43 = arith.addf %41, %42 : vector<8x1xf32>
    %44 = math.rsqrt %43 : vector<8x1xf32>
    %45 = vector.broadcast %44 : vector<8x1xf32> to vector<8x32xf32>
    %46 = arith.mulf %36, %45 : vector<8x32xf32>
    %47 = vector.broadcast %29 : vector<1x32xf32> to vector<8x32xf32>
    %48 = arith.mulf %46, %47 : vector<8x32xf32>
    %49 = vector.broadcast %30 : vector<1x32xf32> to vector<8x32xf32>
    %50 = arith.addf %48, %49 : vector<8x32xf32>
    %c0_41 = arith.constant 0 : index
    %c0_42 = arith.constant 0 : index
    %51 = vector.load %arg8[%c0_41, %c0_42] : memref<32x128xbf16, #tpu.memory_space<vmem>>, vector<32x128xbf16>
    %52 = arith.truncf %50 : vector<8x32xf32> to vector<8x32xbf16>
    %cst_43 = arith.constant dense<0.000000e+00> : vector<8x128xf32>
    %53 = tpu.matmul %52, %51, %cst_43 {dimension_numbers = #tpu.dot_dimension_numbers<[1], [0], [0], [1], [0, 0, 1, 1], [], []>} : vector<8x32xbf16>, vector<32x128xbf16>, vector<8x128xf32> -> vector<8x128xf32>
    %c0_44 = arith.constant 0 : index
    %c0_45 = arith.constant 0 : index
    %54 = vector.load %arg9[%c0_44, %c0_45] : memref<1x128xf32, #tpu.memory_space<vmem>>, vector<1x128xf32>
    %55 = vector.broadcast %54 : vector<1x128xf32> to vector<8x128xf32>
    %56 = arith.addf %53, %55 : vector<8x128xf32>
    %cst_46 = arith.constant 0.000000e+00 : f32
    %57 = vector.broadcast %cst_46 : f32 to vector<8x128xf32>
    %58 = arith.maximumf %56, %57 : vector<8x128xf32>
    %c0_47 = arith.constant 0 : index
    %c0_48 = arith.constant 0 : index
    %59 = vector.load %arg10[%c0_47, %c0_48] : memref<128x32xbf16, #tpu.memory_space<vmem>>, vector<128x32xbf16>
    %60 = arith.truncf %58 : vector<8x128xf32> to vector<8x128xbf16>
    %cst_49 = arith.constant dense<0.000000e+00> : vector<8x32xf32>
    %61 = tpu.matmul %60, %59, %cst_49 {dimension_numbers = #tpu.dot_dimension_numbers<[1], [0], [0], [1], [0, 0, 1, 1], [], []>} : vector<8x128xbf16>, vector<128x32xbf16>, vector<8x32xf32> -> vector<8x32xf32>
    %c0_50 = arith.constant 0 : index
    %c0_51 = arith.constant 0 : index
    %62 = vector.load %arg11[%c0_50, %c0_51] : memref<1x32xf32, #tpu.memory_space<vmem>>, vector<1x32xf32>
    %63 = vector.broadcast %62 : vector<1x32xf32> to vector<8x32xf32>
    %64 = arith.addf %61, %63 : vector<8x32xf32>
    %65 = arith.addf %50, %64 : vector<8x32xf32>
    %c0_52 = arith.constant 0 : index
    %c0_53 = arith.constant 0 : index
    %66 = vector.load %arg12[%c0_52, %c0_53] : memref<1x32xf32, #tpu.memory_space<vmem>>, vector<1x32xf32>
    %c0_54 = arith.constant 0 : index
    %c0_55 = arith.constant 0 : index
    %67 = vector.load %arg13[%c0_54, %c0_55] : memref<1x32xf32, #tpu.memory_space<vmem>>, vector<1x32xf32>
    %cst_56 = arith.constant dense<0.000000e+00> : vector<8xf32>
    %68 = vector.multi_reduction <add>, %65, %cst_56 [1] : vector<8x32xf32> to vector<8xf32>
    %69 = vector.shape_cast %68 : vector<8xf32> to vector<8x1xf32>
    %cst_57 = arith.constant 3.200000e+01 : f32
    %70 = vector.broadcast %cst_57 : f32 to vector<8x1xf32>
    %71 = arith.divf %69, %70 : vector<8x1xf32>
    %72 = vector.broadcast %71 : vector<8x1xf32> to vector<8x32xf32>
    %73 = arith.subf %65, %72 : vector<8x32xf32>
    %74 = arith.mulf %73, %73 : vector<8x32xf32>
    %cst_58 = arith.constant dense<0.000000e+00> : vector<8xf32>
    %75 = vector.multi_reduction <add>, %74, %cst_58 [1] : vector<8x32xf32> to vector<8xf32>
    %76 = vector.shape_cast %75 : vector<8xf32> to vector<8x1xf32>
    %cst_59 = arith.constant 3.200000e+01 : f32
    %77 = vector.broadcast %cst_59 : f32 to vector<8x1xf32>
    %78 = arith.divf %76, %77 : vector<8x1xf32>
    %cst_60 = arith.constant 9.99999974E-6 : f32
    %79 = vector.broadcast %cst_60 : f32 to vector<8x1xf32>
    %80 = arith.addf %78, %79 : vector<8x1xf32>
    %81 = math.rsqrt %80 : vector<8x1xf32>
    %82 = vector.broadcast %81 : vector<8x1xf32> to vector<8x32xf32>
    %83 = arith.mulf %73, %82 : vector<8x32xf32>
    %84 = vector.broadcast %66 : vector<1x32xf32> to vector<8x32xf32>
    %85 = arith.mulf %83, %84 : vector<8x32xf32>
    %86 = vector.broadcast %67 : vector<1x32xf32> to vector<8x32xf32>
    %87 = arith.addf %85, %86 : vector<8x32xf32>
    %c0_61 = arith.constant 0 : index
    %c0_62 = arith.constant 0 : index
    %c0_63 = arith.constant 0 : index
    %88 = vector.load %arg14[%c0_61, %c0_62, %c0_63] : memref<1x8x32xf32, #tpu.memory_space<vmem>>, vector<1x8x32xf32>
    %89 = vector.shape_cast %88 : vector<1x8x32xf32> to vector<8x32xf32>
    %90 = vector.shape_cast %87 : vector<8x32xf32> to vector<1x8x32xf32>
    tpu.vector_store %arg14[%c0_61, %c0_62, %c0_63], %90 {strides = array<i32>} : memref<1x8x32xf32, #tpu.memory_space<vmem>>, vector<1x8x32xf32>,
    return
  }
  func.func @transform_0(%arg0: i32, %arg1: i32) -> (i32, i32, i32, i32) {
    %c0_i32 = arith.constant 0 : i32
    %c0_i32_0 = arith.constant 0 : i32
    %c0_i32_1 = arith.constant 0 : i32
    return %arg0, %c0_i32, %arg1, %c0_i32_0 : i32, i32, i32, i32
  }
  func.func @transform_1(%arg0: i32, %arg1: i32) -> (i32, i32, i32) {
    %c0_i32 = arith.constant 0 : i32
    %c0_i32_0 = arith.constant 0 : i32
    return %arg0, %arg1, %c0_i32 : i32, i32, i32
  }
  func.func @transform_2(%arg0: i32, %arg1: i32) -> (i32, i32, i32) {
    %c0_i32 = arith.constant 0 : i32
    %c0_i32_0 = arith.constant 0 : i32
    %c0_i32_1 = arith.constant 0 : i32
    %c0_i32_2 = arith.constant 0 : i32
    return %c0_i32, %c0_i32_0, %c0_i32_1 : i32, i32, i32
  }
  func.func @transform_3(%arg0: i32, %arg1: i32) -> (i32, i32) {
    %c0_i32 = arith.constant 0 : i32
    %c0_i32_0 = arith.constant 0 : i32
    %c0_i32_1 = arith.constant 0 : i32
    return %c0_i32, %c0_i32_0 : i32, i32
  }
  func.func @transform_4(%arg0: i32, %arg1: i32) -> (i32, i32) {
    %c0_i32 = arith.constant 0 : i32
    %c0_i32_0 = arith.constant 0 : i32
    %c0_i32_1 = arith.constant 0 : i32
    return %c0_i32, %c0_i32_0 : i32, i32
  }
  func.func @transform_5(%arg0: i32, %arg1: i32) -> (i32, i32) {
    %c0_i32 = arith.constant 0 : i32
    %c0_i32_0 = arith.constant 0 : i32
    %c0_i32_1 = arith.constant 0 : i32
    return %c0_i32, %c0_i32_0 : i32, i32
  }
  func.func @transform_6(%arg0: i32, %arg1: i32) -> (i32, i32) {
    %c0_i32 = arith.constant 0 : i32
    %c0_i32_0 = arith.constant 0 : i32
    %c0_i32_1 = arith.constant 0 : i32
    return %c0_i32, %c0_i32_0 : i32, i32
  }
  func.func @transform_7(%arg0: i32, %arg1: i32) -> (i32, i32) {
    %c0_i32 = arith.constant 0 : i32
    %c0_i32_0 = arith.constant 0 : i32
    %c0_i32_1 = arith.constant 0 : i32
    return %c0_i32, %c0_i32_0 : i32, i32
  }
  func.func @transform_8(%arg0: i32, %arg1: i32) -> (i32, i32) {
    %c0_i32 = arith.constant 0 : i32
    %c0_i32_0 = arith.constant 0 : i32
    %c0_i32_1 = arith.constant 0 : i32
    return %c0_i32, %c0_i32_0 : i32, i32
  }
  func.func @transform_9(%arg0: i32, %arg1: i32) -> (i32, i32) {
    %c0_i32 = arith.constant 0 : i32
    %c0_i32_0 = arith.constant 0 : i32
    %c0_i32_1 = arith.constant 0 : i32
    return %c0_i32, %c0_i32_0 : i32, i32
  }
  func.func @transform_10(%arg0: i32, %arg1: i32) -> (i32, i32) {
    %c0_i32 = arith.constant 0 : i32
    %c0_i32_0 = arith.constant 0 : i32
    %c0_i32_1 = arith.constant 0 : i32
    return %c0_i32, %c0_i32_0 : i32, i32
  }
  func.func @transform_11(%arg0: i32, %arg1: i32) -> (i32, i32) {
    %c0_i32 = arith.constant 0 : i32
    %c0_i32_0 = arith.constant 0 : i32
    %c0_i32_1 = arith.constant 0 : i32
    return %c0_i32, %c0_i32_0 : i32, i32
  }
  func.func @transform_12(%arg0: i32, %arg1: i32) -> (i32, i32, i32) {
    %c0_i32 = arith.constant 0 : i32
    %c0_i32_0 = arith.constant 0 : i32
    return %arg0, %arg1, %c0_i32 : i32, i32, i32
  }
}

module attributes {stable_mosaic.version = 11 : i64} {
  func.func @_attn_head_kernel(%arg0: i32, %arg1: i32, %arg2: memref<1x8x32xf32, #tpu.memory_space<vmem>>, %arg3: memref<1x32x8xbf16, #tpu.memory_space<vmem>>, %arg4: memref<1x1x8xf32, #tpu.memory_space<vmem>>, %arg5: memref<1x32x8xbf16, #tpu.memory_space<vmem>>, %arg6: memref<1x1x8xf32, #tpu.memory_space<vmem>>, %arg7: memref<1x32x8xbf16, #tpu.memory_space<vmem>>, %arg8: memref<1x1x8xf32, #tpu.memory_space<vmem>>, %arg9: memref<1x1x8x8xbf16, #tpu.memory_space<vmem>>, %arg10: memref<1x1x8x8xf32, #tpu.memory_space<vmem>>) attributes {dimension_semantics = [#tpu.dimension_semantics<parallel>, #tpu.dimension_semantics<parallel>], iteration_bounds = array<i64: 2, 4>, scalar_prefetch = 0 : i64, scratch_operands = 0 : i64, tpu.core_type = #tpu.core_type<tc>, window_params = [{transform_indices = @transform_0, window_bounds = array<i64: 1, 8, 32>}, {transform_indices = @transform_1, window_bounds = array<i64: 1, 32, 8>}, {transform_indices = @transform_2, window_bounds = array<i64: 1, 1, 8>}, {transform_indices = @transform_3, window_bounds = array<i64: 1, 32, 8>}, {transform_indices = @transform_4, window_bounds = array<i64: 1, 1, 8>}, {transform_indices = @transform_5, window_bounds = array<i64: 1, 32, 8>}, {transform_indices = @transform_6, window_bounds = array<i64: 1, 1, 8>}, {transform_indices = @transform_7, window_bounds = array<i64: 1, 1, 8, 8>}, {transform_indices = @transform_8, window_bounds = array<i64: 1, 1, 8, 8>}]} {
    %c0 = arith.constant 0 : index
    %c0_0 = arith.constant 0 : index
    %c0_1 = arith.constant 0 : index
    %0 = vector.load %arg2[%c0, %c0_0, %c0_1] : memref<1x8x32xf32, #tpu.memory_space<vmem>>, vector<1x8x32xf32>
    %1 = vector.shape_cast %0 : vector<1x8x32xf32> to vector<8x32xf32>
    %2 = arith.truncf %1 : vector<8x32xf32> to vector<8x32xbf16>
    %c0_2 = arith.constant 0 : index
    %c0_3 = arith.constant 0 : index
    %c0_4 = arith.constant 0 : index
    %3 = vector.load %arg3[%c0_2, %c0_3, %c0_4] : memref<1x32x8xbf16, #tpu.memory_space<vmem>>, vector<1x32x8xbf16>
    %4 = vector.shape_cast %3 : vector<1x32x8xbf16> to vector<32x8xbf16>
    %cst = arith.constant dense<0.000000e+00> : vector<8x8xf32>
    %5 = tpu.matmul %2, %4, %cst {dimension_numbers = #tpu.dot_dimension_numbers<[1], [0], [0], [1], [0, 0, 1, 1], [], []>} : vector<8x32xbf16>, vector<32x8xbf16>, vector<8x8xf32> -> vector<8x8xf32>
    %c0_5 = arith.constant 0 : index
    %c0_6 = arith.constant 0 : index
    %c0_7 = arith.constant 0 : index
    %6 = vector.load %arg4[%c0_5, %c0_6, %c0_7] : memref<1x1x8xf32, #tpu.memory_space<vmem>>, vector<1x1x8xf32>
    %7 = vector.shape_cast %6 : vector<1x1x8xf32> to vector<1x8xf32>
    %8 = vector.broadcast %7 : vector<1x8xf32> to vector<8x8xf32>
    %9 = arith.addf %5, %8 : vector<8x8xf32>
    %c0_8 = arith.constant 0 : index
    %c0_9 = arith.constant 0 : index
    %c0_10 = arith.constant 0 : index
    %10 = vector.load %arg5[%c0_8, %c0_9, %c0_10] : memref<1x32x8xbf16, #tpu.memory_space<vmem>>, vector<1x32x8xbf16>
    %11 = vector.shape_cast %10 : vector<1x32x8xbf16> to vector<32x8xbf16>
    %cst_11 = arith.constant dense<0.000000e+00> : vector<8x8xf32>
    %12 = tpu.matmul %2, %11, %cst_11 {dimension_numbers = #tpu.dot_dimension_numbers<[1], [0], [0], [1], [0, 0, 1, 1], [], []>} : vector<8x32xbf16>, vector<32x8xbf16>, vector<8x8xf32> -> vector<8x8xf32>
    %c0_12 = arith.constant 0 : index
    %c0_13 = arith.constant 0 : index
    %c0_14 = arith.constant 0 : index
    %13 = vector.load %arg6[%c0_12, %c0_13, %c0_14] : memref<1x1x8xf32, #tpu.memory_space<vmem>>, vector<1x1x8xf32>
    %14 = vector.shape_cast %13 : vector<1x1x8xf32> to vector<1x8xf32>
    %15 = vector.broadcast %14 : vector<1x8xf32> to vector<8x8xf32>
    %16 = arith.addf %12, %15 : vector<8x8xf32>
    %c0_15 = arith.constant 0 : index
    %c0_16 = arith.constant 0 : index
    %c0_17 = arith.constant 0 : index
    %17 = vector.load %arg7[%c0_15, %c0_16, %c0_17] : memref<1x32x8xbf16, #tpu.memory_space<vmem>>, vector<1x32x8xbf16>
    %18 = vector.shape_cast %17 : vector<1x32x8xbf16> to vector<32x8xbf16>
    %cst_18 = arith.constant dense<0.000000e+00> : vector<8x8xf32>
    %19 = tpu.matmul %2, %18, %cst_18 {dimension_numbers = #tpu.dot_dimension_numbers<[1], [0], [0], [1], [0, 0, 1, 1], [], []>} : vector<8x32xbf16>, vector<32x8xbf16>, vector<8x8xf32> -> vector<8x8xf32>
    %c0_19 = arith.constant 0 : index
    %c0_20 = arith.constant 0 : index
    %c0_21 = arith.constant 0 : index
    %20 = vector.load %arg8[%c0_19, %c0_20, %c0_21] : memref<1x1x8xf32, #tpu.memory_space<vmem>>, vector<1x1x8xf32>
    %21 = vector.shape_cast %20 : vector<1x1x8xf32> to vector<1x8xf32>
    %22 = vector.broadcast %21 : vector<1x8xf32> to vector<8x8xf32>
    %23 = arith.addf %19, %22 : vector<8x8xf32>
    %24 = arith.truncf %9 : vector<8x8xf32> to vector<8x8xbf16>
    %25 = arith.truncf %16 : vector<8x8xf32> to vector<8x8xbf16>
    %cst_22 = arith.constant dense<0.000000e+00> : vector<8x8xf32>
    %26 = tpu.matmul %24, %25, %cst_22 {dimension_numbers = #tpu.dot_dimension_numbers<[1], [1], [0], [0], [0, 0, 1, 0], [], []>} : vector<8x8xbf16>, vector<8x8xbf16>, vector<8x8xf32> -> vector<8x8xf32>
    %cst_23 = arith.constant dense<0xFF800000> : vector<8xf32>
    %27 = vector.multi_reduction <maximumf>, %26, %cst_23 [1] : vector<8x8xf32> to vector<8xf32>
    %28 = vector.shape_cast %27 : vector<8xf32> to vector<8x1xf32>
    %29 = vector.broadcast %28 : vector<8x1xf32> to vector<8x8xf32>
    %30 = arith.subf %26, %29 : vector<8x8xf32>
    %31 = math.exp %30 : vector<8x8xf32>
    %cst_24 = arith.constant dense<0.000000e+00> : vector<8xf32>
    %32 = vector.multi_reduction <add>, %31, %cst_24 [1] : vector<8x8xf32> to vector<8xf32>
    %33 = vector.shape_cast %32 : vector<8xf32> to vector<8x1xf32>
    %34 = tpu.reciprocal %33 : vector<8x1xf32> -> vector<8x1xf32>
    %35 = vector.broadcast %34 : vector<8x1xf32> to vector<8x8xf32>
    %36 = arith.mulf %31, %35 : vector<8x8xf32>
    %c0_25 = arith.constant 0 : index
    %c0_26 = arith.constant 0 : index
    %c0_27 = arith.constant 0 : index
    %c0_28 = arith.constant 0 : index
    %37 = vector.load %arg10[%c0_25, %c0_26, %c0_27, %c0_28] : memref<1x1x8x8xf32, #tpu.memory_space<vmem>>, vector<1x1x8x8xf32>
    %38 = vector.shape_cast %37 : vector<1x1x8x8xf32> to vector<8x8xf32>
    %39 = vector.shape_cast %36 : vector<8x8xf32> to vector<1x1x8x8xf32>
    tpu.vector_store %arg10[%c0_25, %c0_26, %c0_27, %c0_28], %39 {strides = array<i32>} : memref<1x1x8x8xf32, #tpu.memory_space<vmem>>, vector<1x1x8x8xf32>,
    %40 = arith.truncf %36 : vector<8x8xf32> to vector<8x8xbf16>
    %41 = arith.truncf %23 : vector<8x8xf32> to vector<8x8xbf16>
    %cst_29 = arith.constant dense<0.000000e+00> : vector<8x8xf32>
    %42 = tpu.matmul %40, %41, %cst_29 {dimension_numbers = #tpu.dot_dimension_numbers<[1], [0], [0], [1], [0, 0, 1, 1], [], []>} : vector<8x8xbf16>, vector<8x8xbf16>, vector<8x8xf32> -> vector<8x8xf32>
    %43 = arith.truncf %42 : vector<8x8xf32> to vector<8x8xbf16>
    %c0_30 = arith.constant 0 : index
    %c0_31 = arith.constant 0 : index
    %c0_32 = arith.constant 0 : index
    %c0_33 = arith.constant 0 : index
    %44 = vector.load %arg9[%c0_30, %c0_31, %c0_32, %c0_33] : memref<1x1x8x8xbf16, #tpu.memory_space<vmem>>, vector<1x1x8x8xbf16>
    %45 = vector.shape_cast %44 : vector<1x1x8x8xbf16> to vector<8x8xbf16>
    %46 = vector.shape_cast %43 : vector<8x8xbf16> to vector<1x1x8x8xbf16>
    tpu.vector_store %arg9[%c0_30, %c0_31, %c0_32, %c0_33], %46 {strides = array<i32>} : memref<1x1x8x8xbf16, #tpu.memory_space<vmem>>, vector<1x1x8x8xbf16>,
    return
  }
  func.func @transform_0(%arg0: i32, %arg1: i32) -> (i32, i32, i32) {
    %c0_i32 = arith.constant 0 : i32
    %c0_i32_0 = arith.constant 0 : i32
    %c0_i32_1 = arith.constant 0 : i32
    return %arg0, %c0_i32, %c0_i32_0 : i32, i32, i32
  }
  func.func @transform_1(%arg0: i32, %arg1: i32) -> (i32, i32, i32) {
    %c0_i32 = arith.constant 0 : i32
    %c0_i32_0 = arith.constant 0 : i32
    %c0_i32_1 = arith.constant 0 : i32
    return %arg1, %c0_i32, %c0_i32_0 : i32, i32, i32
  }
  func.func @transform_2(%arg0: i32, %arg1: i32) -> (i32, i32, i32) {
    %c0_i32 = arith.constant 0 : i32
    %c0_i32_0 = arith.constant 0 : i32
    %c0_i32_1 = arith.constant 0 : i32
    return %arg1, %c0_i32, %c0_i32_0 : i32, i32, i32
  }
  func.func @transform_3(%arg0: i32, %arg1: i32) -> (i32, i32, i32) {
    %c0_i32 = arith.constant 0 : i32
    %c0_i32_0 = arith.constant 0 : i32
    %c0_i32_1 = arith.constant 0 : i32
    return %arg1, %c0_i32, %c0_i32_0 : i32, i32, i32
  }
  func.func @transform_4(%arg0: i32, %arg1: i32) -> (i32, i32, i32) {
    %c0_i32 = arith.constant 0 : i32
    %c0_i32_0 = arith.constant 0 : i32
    %c0_i32_1 = arith.constant 0 : i32
    return %arg1, %c0_i32, %c0_i32_0 : i32, i32, i32
  }
  func.func @transform_5(%arg0: i32, %arg1: i32) -> (i32, i32, i32) {
    %c0_i32 = arith.constant 0 : i32
    %c0_i32_0 = arith.constant 0 : i32
    %c0_i32_1 = arith.constant 0 : i32
    return %arg1, %c0_i32, %c0_i32_0 : i32, i32, i32
  }
  func.func @transform_6(%arg0: i32, %arg1: i32) -> (i32, i32, i32) {
    %c0_i32 = arith.constant 0 : i32
    %c0_i32_0 = arith.constant 0 : i32
    %c0_i32_1 = arith.constant 0 : i32
    return %arg1, %c0_i32, %c0_i32_0 : i32, i32, i32
  }
  func.func @transform_7(%arg0: i32, %arg1: i32) -> (i32, i32, i32, i32) {
    %c0_i32 = arith.constant 0 : i32
    %c0_i32_0 = arith.constant 0 : i32
    %c0_i32_1 = arith.constant 0 : i32
    return %arg0, %arg1, %c0_i32, %c0_i32_0 : i32, i32, i32, i32
  }
  func.func @transform_8(%arg0: i32, %arg1: i32) -> (i32, i32, i32, i32) {
    %c0_i32 = arith.constant 0 : i32
    %c0_i32_0 = arith.constant 0 : i32
    %c0_i32_1 = arith.constant 0 : i32
    return %arg0, %arg1, %c0_i32, %c0_i32_0 : i32, i32, i32, i32
  }
}

module attributes {stable_mosaic.version = 11 : i64} {
  func.func @_merge_ffn_ln_kernel(%arg0: i32, %arg1: i32, %arg2: memref<1x4x8x8xbf16, #tpu.memory_space<vmem>>, %arg3: memref<1x8x32xf32, #tpu.memory_space<vmem>>, %arg4: memref<4x8x32xbf16, #tpu.memory_space<vmem>>, %arg5: memref<1x32xf32, #tpu.memory_space<vmem>>, %arg6: memref<1x32xf32, #tpu.memory_space<vmem>>, %arg7: memref<1x32xf32, #tpu.memory_space<vmem>>, %arg8: memref<32x128xbf16, #tpu.memory_space<vmem>>, %arg9: memref<1x128xf32, #tpu.memory_space<vmem>>, %arg10: memref<128x32xbf16, #tpu.memory_space<vmem>>, %arg11: memref<1x32xf32, #tpu.memory_space<vmem>>, %arg12: memref<1x32xf32, #tpu.memory_space<vmem>>, %arg13: memref<1x32xf32, #tpu.memory_space<vmem>>, %arg14: memref<1x32xf32, #tpu.memory_space<vmem>>, %arg15: memref<1x32xf32, #tpu.memory_space<vmem>>, %arg16: memref<1x8x32xf32, #tpu.memory_space<vmem>>) attributes {dimension_semantics = [#tpu.dimension_semantics<parallel>, #tpu.dimension_semantics<parallel>], iteration_bounds = array<i64: 2, 1>, scalar_prefetch = 0 : i64, scratch_operands = 0 : i64, tpu.core_type = #tpu.core_type<tc>, window_params = [{transform_indices = @transform_0, window_bounds = array<i64: 1, 4, 8, 8>}, {transform_indices = @transform_1, window_bounds = array<i64: 1, 8, 32>}, {pipeline_mode = #tpu.pipeline_mode<synchronous>, transform_indices = @transform_2, window_bounds = array<i64: 4, 8, 32>}, {pipeline_mode = #tpu.pipeline_mode<synchronous>, transform_indices = @transform_3, window_bounds = array<i64: 1, 32>}, {pipeline_mode = #tpu.pipeline_mode<synchronous>, transform_indices = @transform_4, window_bounds = array<i64: 1, 32>}, {pipeline_mode = #tpu.pipeline_mode<synchronous>, transform_indices = @transform_5, window_bounds = array<i64: 1, 32>}, {pipeline_mode = #tpu.pipeline_mode<synchronous>, transform_indices = @transform_6, window_bounds = array<i64: 32, 128>}, {pipeline_mode = #tpu.pipeline_mode<synchronous>, transform_indices = @transform_7, window_bounds = array<i64: 1, 128>}, {pipeline_mode = #tpu.pipeline_mode<synchronous>, transform_indices = @transform_8, window_bounds = array<i64: 128, 32>}, {pipeline_mode = #tpu.pipeline_mode<synchronous>, transform_indices = @transform_9, window_bounds = array<i64: 1, 32>}, {pipeline_mode = #tpu.pipeline_mode<synchronous>, transform_indices = @transform_10, window_bounds = array<i64: 1, 32>}, {pipeline_mode = #tpu.pipeline_mode<synchronous>, transform_indices = @transform_11, window_bounds = array<i64: 1, 32>}, {pipeline_mode = #tpu.pipeline_mode<synchronous>, transform_indices = @transform_12, window_bounds = array<i64: 1, 32>}, {pipeline_mode = #tpu.pipeline_mode<synchronous>, transform_indices = @transform_13, window_bounds = array<i64: 1, 32>}, {transform_indices = @transform_14, window_bounds = array<i64: 1, 8, 32>}]} {
    %c0 = arith.constant 0 : index
    %c0_0 = arith.constant 0 : index
    %c0_1 = arith.constant 0 : index
    %0 = vector.load %arg3[%c0, %c0_0, %c0_1] : memref<1x8x32xf32, #tpu.memory_space<vmem>>, vector<1x8x32xf32>
    %1 = vector.shape_cast %0 : vector<1x8x32xf32> to vector<8x32xf32>
    %c0_2 = arith.constant 0 : index
    %c0_3 = arith.constant 0 : index
    %c0_4 = arith.constant 0 : index
    %c0_5 = arith.constant 0 : index
    %2 = vector.load %arg2[%c0_2, %c0_3, %c0_4, %c0_5] : memref<1x4x8x8xbf16, #tpu.memory_space<vmem>>, vector<1x1x8x8xbf16>
    %3 = vector.shape_cast %2 : vector<1x1x8x8xbf16> to vector<8x8xbf16>
    %c0_6 = arith.constant 0 : index
    %c0_7 = arith.constant 0 : index
    %c0_8 = arith.constant 0 : index
    %4 = vector.load %arg4[%c0_6, %c0_7, %c0_8] : memref<4x8x32xbf16, #tpu.memory_space<vmem>>, vector<1x8x32xbf16>
    %5 = vector.shape_cast %4 : vector<1x8x32xbf16> to vector<8x32xbf16>
    %cst = arith.constant dense<0.000000e+00> : vector<8x32xf32>
    %6 = tpu.matmul %3, %5, %cst {dimension_numbers = #tpu.dot_dimension_numbers<[1], [0], [0], [1], [0, 0, 1, 1], [], []>} : vector<8x8xbf16>, vector<8x32xbf16>, vector<8x32xf32> -> vector<8x32xf32>
    %c0_9 = arith.constant 0 : index
    %c1 = arith.constant 1 : index
    %c0_10 = arith.constant 0 : index
    %c0_11 = arith.constant 0 : index
    %7 = vector.load %arg2[%c0_9, %c1, %c0_10, %c0_11] : memref<1x4x8x8xbf16, #tpu.memory_space<vmem>>, vector<1x1x8x8xbf16>
    %8 = vector.shape_cast %7 : vector<1x1x8x8xbf16> to vector<8x8xbf16>
    %c1_12 = arith.constant 1 : index
    %c0_13 = arith.constant 0 : index
    %c0_14 = arith.constant 0 : index
    %9 = vector.load %arg4[%c1_12, %c0_13, %c0_14] : memref<4x8x32xbf16, #tpu.memory_space<vmem>>, vector<1x8x32xbf16>
    %10 = vector.shape_cast %9 : vector<1x8x32xbf16> to vector<8x32xbf16>
    %cst_15 = arith.constant dense<0.000000e+00> : vector<8x32xf32>
    %11 = tpu.matmul %8, %10, %cst_15 {dimension_numbers = #tpu.dot_dimension_numbers<[1], [0], [0], [1], [0, 0, 1, 1], [], []>} : vector<8x8xbf16>, vector<8x32xbf16>, vector<8x32xf32> -> vector<8x32xf32>
    %12 = arith.addf %6, %11 : vector<8x32xf32>
    %c0_16 = arith.constant 0 : index
    %c2 = arith.constant 2 : index
    %c0_17 = arith.constant 0 : index
    %c0_18 = arith.constant 0 : index
    %13 = vector.load %arg2[%c0_16, %c2, %c0_17, %c0_18] : memref<1x4x8x8xbf16, #tpu.memory_space<vmem>>, vector<1x1x8x8xbf16>
    %14 = vector.shape_cast %13 : vector<1x1x8x8xbf16> to vector<8x8xbf16>
    %c2_19 = arith.constant 2 : index
    %c0_20 = arith.constant 0 : index
    %c0_21 = arith.constant 0 : index
    %15 = vector.load %arg4[%c2_19, %c0_20, %c0_21] : memref<4x8x32xbf16, #tpu.memory_space<vmem>>, vector<1x8x32xbf16>
    %16 = vector.shape_cast %15 : vector<1x8x32xbf16> to vector<8x32xbf16>
    %cst_22 = arith.constant dense<0.000000e+00> : vector<8x32xf32>
    %17 = tpu.matmul %14, %16, %cst_22 {dimension_numbers = #tpu.dot_dimension_numbers<[1], [0], [0], [1], [0, 0, 1, 1], [], []>} : vector<8x8xbf16>, vector<8x32xbf16>, vector<8x32xf32> -> vector<8x32xf32>
    %18 = arith.addf %12, %17 : vector<8x32xf32>
    %c0_23 = arith.constant 0 : index
    %c3 = arith.constant 3 : index
    %c0_24 = arith.constant 0 : index
    %c0_25 = arith.constant 0 : index
    %19 = vector.load %arg2[%c0_23, %c3, %c0_24, %c0_25] : memref<1x4x8x8xbf16, #tpu.memory_space<vmem>>, vector<1x1x8x8xbf16>
    %20 = vector.shape_cast %19 : vector<1x1x8x8xbf16> to vector<8x8xbf16>
    %c3_26 = arith.constant 3 : index
    %c0_27 = arith.constant 0 : index
    %c0_28 = arith.constant 0 : index
    %21 = vector.load %arg4[%c3_26, %c0_27, %c0_28] : memref<4x8x32xbf16, #tpu.memory_space<vmem>>, vector<1x8x32xbf16>
    %22 = vector.shape_cast %21 : vector<1x8x32xbf16> to vector<8x32xbf16>
    %cst_29 = arith.constant dense<0.000000e+00> : vector<8x32xf32>
    %23 = tpu.matmul %20, %22, %cst_29 {dimension_numbers = #tpu.dot_dimension_numbers<[1], [0], [0], [1], [0, 0, 1, 1], [], []>} : vector<8x8xbf16>, vector<8x32xbf16>, vector<8x32xf32> -> vector<8x32xf32>
    %24 = arith.addf %18, %23 : vector<8x32xf32>
    %c0_30 = arith.constant 0 : index
    %c0_31 = arith.constant 0 : index
    %25 = vector.load %arg5[%c0_30, %c0_31] : memref<1x32xf32, #tpu.memory_space<vmem>>, vector<1x32xf32>
    %26 = vector.broadcast %25 : vector<1x32xf32> to vector<8x32xf32>
    %27 = arith.addf %24, %26 : vector<8x32xf32>
    %28 = arith.addf %1, %27 : vector<8x32xf32>
    %c0_32 = arith.constant 0 : index
    %c0_33 = arith.constant 0 : index
    %29 = vector.load %arg6[%c0_32, %c0_33] : memref<1x32xf32, #tpu.memory_space<vmem>>, vector<1x32xf32>
    %c0_34 = arith.constant 0 : index
    %c0_35 = arith.constant 0 : index
    %30 = vector.load %arg7[%c0_34, %c0_35] : memref<1x32xf32, #tpu.memory_space<vmem>>, vector<1x32xf32>
    %cst_36 = arith.constant dense<0.000000e+00> : vector<8xf32>
    %31 = vector.multi_reduction <add>, %28, %cst_36 [1] : vector<8x32xf32> to vector<8xf32>
    %32 = vector.shape_cast %31 : vector<8xf32> to vector<8x1xf32>
    %cst_37 = arith.constant 3.200000e+01 : f32
    %33 = vector.broadcast %cst_37 : f32 to vector<8x1xf32>
    %34 = arith.divf %32, %33 : vector<8x1xf32>
    %35 = vector.broadcast %34 : vector<8x1xf32> to vector<8x32xf32>
    %36 = arith.subf %28, %35 : vector<8x32xf32>
    %37 = arith.mulf %36, %36 : vector<8x32xf32>
    %cst_38 = arith.constant dense<0.000000e+00> : vector<8xf32>
    %38 = vector.multi_reduction <add>, %37, %cst_38 [1] : vector<8x32xf32> to vector<8xf32>
    %39 = vector.shape_cast %38 : vector<8xf32> to vector<8x1xf32>
    %cst_39 = arith.constant 3.200000e+01 : f32
    %40 = vector.broadcast %cst_39 : f32 to vector<8x1xf32>
    %41 = arith.divf %39, %40 : vector<8x1xf32>
    %cst_40 = arith.constant 9.99999974E-6 : f32
    %42 = vector.broadcast %cst_40 : f32 to vector<8x1xf32>
    %43 = arith.addf %41, %42 : vector<8x1xf32>
    %44 = math.rsqrt %43 : vector<8x1xf32>
    %45 = vector.broadcast %44 : vector<8x1xf32> to vector<8x32xf32>
    %46 = arith.mulf %36, %45 : vector<8x32xf32>
    %47 = vector.broadcast %29 : vector<1x32xf32> to vector<8x32xf32>
    %48 = arith.mulf %46, %47 : vector<8x32xf32>
    %49 = vector.broadcast %30 : vector<1x32xf32> to vector<8x32xf32>
    %50 = arith.addf %48, %49 : vector<8x32xf32>
    %c0_41 = arith.constant 0 : index
    %c0_42 = arith.constant 0 : index
    %51 = vector.load %arg8[%c0_41, %c0_42] : memref<32x128xbf16, #tpu.memory_space<vmem>>, vector<32x128xbf16>
    %52 = arith.truncf %50 : vector<8x32xf32> to vector<8x32xbf16>
    %cst_43 = arith.constant dense<0.000000e+00> : vector<8x128xf32>
    %53 = tpu.matmul %52, %51, %cst_43 {dimension_numbers = #tpu.dot_dimension_numbers<[1], [0], [0], [1], [0, 0, 1, 1], [], []>} : vector<8x32xbf16>, vector<32x128xbf16>, vector<8x128xf32> -> vector<8x128xf32>
    %c0_44 = arith.constant 0 : index
    %c0_45 = arith.constant 0 : index
    %54 = vector.load %arg9[%c0_44, %c0_45] : memref<1x128xf32, #tpu.memory_space<vmem>>, vector<1x128xf32>
    %55 = vector.broadcast %54 : vector<1x128xf32> to vector<8x128xf32>
    %56 = arith.addf %53, %55 : vector<8x128xf32>
    %cst_46 = arith.constant 0.000000e+00 : f32
    %57 = vector.broadcast %cst_46 : f32 to vector<8x128xf32>
    %58 = arith.maximumf %56, %57 : vector<8x128xf32>
    %c0_47 = arith.constant 0 : index
    %c0_48 = arith.constant 0 : index
    %59 = vector.load %arg10[%c0_47, %c0_48] : memref<128x32xbf16, #tpu.memory_space<vmem>>, vector<128x32xbf16>
    %60 = arith.truncf %58 : vector<8x128xf32> to vector<8x128xbf16>
    %cst_49 = arith.constant dense<0.000000e+00> : vector<8x32xf32>
    %61 = tpu.matmul %60, %59, %cst_49 {dimension_numbers = #tpu.dot_dimension_numbers<[1], [0], [0], [1], [0, 0, 1, 1], [], []>} : vector<8x128xbf16>, vector<128x32xbf16>, vector<8x32xf32> -> vector<8x32xf32>
    %c0_50 = arith.constant 0 : index
    %c0_51 = arith.constant 0 : index
    %62 = vector.load %arg11[%c0_50, %c0_51] : memref<1x32xf32, #tpu.memory_space<vmem>>, vector<1x32xf32>
    %63 = vector.broadcast %62 : vector<1x32xf32> to vector<8x32xf32>
    %64 = arith.addf %61, %63 : vector<8x32xf32>
    %65 = arith.addf %50, %64 : vector<8x32xf32>
    %c0_52 = arith.constant 0 : index
    %c0_53 = arith.constant 0 : index
    %66 = vector.load %arg12[%c0_52, %c0_53] : memref<1x32xf32, #tpu.memory_space<vmem>>, vector<1x32xf32>
    %c0_54 = arith.constant 0 : index
    %c0_55 = arith.constant 0 : index
    %67 = vector.load %arg13[%c0_54, %c0_55] : memref<1x32xf32, #tpu.memory_space<vmem>>, vector<1x32xf32>
    %cst_56 = arith.constant dense<0.000000e+00> : vector<8xf32>
    %68 = vector.multi_reduction <add>, %65, %cst_56 [1] : vector<8x32xf32> to vector<8xf32>
    %69 = vector.shape_cast %68 : vector<8xf32> to vector<8x1xf32>
    %cst_57 = arith.constant 3.200000e+01 : f32
    %70 = vector.broadcast %cst_57 : f32 to vector<8x1xf32>
    %71 = arith.divf %69, %70 : vector<8x1xf32>
    %72 = vector.broadcast %71 : vector<8x1xf32> to vector<8x32xf32>
    %73 = arith.subf %65, %72 : vector<8x32xf32>
    %74 = arith.mulf %73, %73 : vector<8x32xf32>
    %cst_58 = arith.constant dense<0.000000e+00> : vector<8xf32>
    %75 = vector.multi_reduction <add>, %74, %cst_58 [1] : vector<8x32xf32> to vector<8xf32>
    %76 = vector.shape_cast %75 : vector<8xf32> to vector<8x1xf32>
    %cst_59 = arith.constant 3.200000e+01 : f32
    %77 = vector.broadcast %cst_59 : f32 to vector<8x1xf32>
    %78 = arith.divf %76, %77 : vector<8x1xf32>
    %cst_60 = arith.constant 9.99999974E-6 : f32
    %79 = vector.broadcast %cst_60 : f32 to vector<8x1xf32>
    %80 = arith.addf %78, %79 : vector<8x1xf32>
    %81 = math.rsqrt %80 : vector<8x1xf32>
    %82 = vector.broadcast %81 : vector<8x1xf32> to vector<8x32xf32>
    %83 = arith.mulf %73, %82 : vector<8x32xf32>
    %84 = vector.broadcast %66 : vector<1x32xf32> to vector<8x32xf32>
    %85 = arith.mulf %83, %84 : vector<8x32xf32>
    %86 = vector.broadcast %67 : vector<1x32xf32> to vector<8x32xf32>
    %87 = arith.addf %85, %86 : vector<8x32xf32>
    %c0_61 = arith.constant 0 : index
    %c0_62 = arith.constant 0 : index
    %88 = vector.load %arg14[%c0_61, %c0_62] : memref<1x32xf32, #tpu.memory_space<vmem>>, vector<1x32xf32>
    %c0_63 = arith.constant 0 : index
    %c0_64 = arith.constant 0 : index
    %89 = vector.load %arg15[%c0_63, %c0_64] : memref<1x32xf32, #tpu.memory_space<vmem>>, vector<1x32xf32>
    %cst_65 = arith.constant dense<0.000000e+00> : vector<8xf32>
    %90 = vector.multi_reduction <add>, %87, %cst_65 [1] : vector<8x32xf32> to vector<8xf32>
    %91 = vector.shape_cast %90 : vector<8xf32> to vector<8x1xf32>
    %cst_66 = arith.constant 3.200000e+01 : f32
    %92 = vector.broadcast %cst_66 : f32 to vector<8x1xf32>
    %93 = arith.divf %91, %92 : vector<8x1xf32>
    %94 = vector.broadcast %93 : vector<8x1xf32> to vector<8x32xf32>
    %95 = arith.subf %87, %94 : vector<8x32xf32>
    %96 = arith.mulf %95, %95 : vector<8x32xf32>
    %cst_67 = arith.constant dense<0.000000e+00> : vector<8xf32>
    %97 = vector.multi_reduction <add>, %96, %cst_67 [1] : vector<8x32xf32> to vector<8xf32>
    %98 = vector.shape_cast %97 : vector<8xf32> to vector<8x1xf32>
    %cst_68 = arith.constant 3.200000e+01 : f32
    %99 = vector.broadcast %cst_68 : f32 to vector<8x1xf32>
    %100 = arith.divf %98, %99 : vector<8x1xf32>
    %cst_69 = arith.constant 9.99999974E-6 : f32
    %101 = vector.broadcast %cst_69 : f32 to vector<8x1xf32>
    %102 = arith.addf %100, %101 : vector<8x1xf32>
    %103 = math.rsqrt %102 : vector<8x1xf32>
    %104 = vector.broadcast %103 : vector<8x1xf32> to vector<8x32xf32>
    %105 = arith.mulf %95, %104 : vector<8x32xf32>
    %106 = vector.broadcast %88 : vector<1x32xf32> to vector<8x32xf32>
    %107 = arith.mulf %105, %106 : vector<8x32xf32>
    %108 = vector.broadcast %89 : vector<1x32xf32> to vector<8x32xf32>
    %109 = arith.addf %107, %108 : vector<8x32xf32>
    %c0_70 = arith.constant 0 : index
    %c0_71 = arith.constant 0 : index
    %c0_72 = arith.constant 0 : index
    %110 = vector.load %arg16[%c0_70, %c0_71, %c0_72] : memref<1x8x32xf32, #tpu.memory_space<vmem>>, vector<1x8x32xf32>
    %111 = vector.shape_cast %110 : vector<1x8x32xf32> to vector<8x32xf32>
    %112 = vector.shape_cast %109 : vector<8x32xf32> to vector<1x8x32xf32>
    tpu.vector_store %arg16[%c0_70, %c0_71, %c0_72], %112 {strides = array<i32>} : memref<1x8x32xf32, #tpu.memory_space<vmem>>, vector<1x8x32xf32>,
    return
  }
  func.func @transform_0(%arg0: i32, %arg1: i32) -> (i32, i32, i32, i32) {
    %c0_i32 = arith.constant 0 : i32
    %c0_i32_0 = arith.constant 0 : i32
    %c0_i32_1 = arith.constant 0 : i32
    return %arg0, %c0_i32, %arg1, %c0_i32_0 : i32, i32, i32, i32
  }
  func.func @transform_1(%arg0: i32, %arg1: i32) -> (i32, i32, i32) {
    %c0_i32 = arith.constant 0 : i32
    %c0_i32_0 = arith.constant 0 : i32
    return %arg0, %arg1, %c0_i32 : i32, i32, i32
  }
  func.func @transform_2(%arg0: i32, %arg1: i32) -> (i32, i32, i32) {
    %c0_i32 = arith.constant 0 : i32
    %c0_i32_0 = arith.constant 0 : i32
    %c0_i32_1 = arith.constant 0 : i32
    %c0_i32_2 = arith.constant 0 : i32
    return %c0_i32, %c0_i32_0, %c0_i32_1 : i32, i32, i32
  }
  func.func @transform_3(%arg0: i32, %arg1: i32) -> (i32, i32) {
    %c0_i32 = arith.constant 0 : i32
    %c0_i32_0 = arith.constant 0 : i32
    %c0_i32_1 = arith.constant 0 : i32
    return %c0_i32, %c0_i32_0 : i32, i32
  }
  func.func @transform_4(%arg0: i32, %arg1: i32) -> (i32, i32) {
    %c0_i32 = arith.constant 0 : i32
    %c0_i32_0 = arith.constant 0 : i32
    %c0_i32_1 = arith.constant 0 : i32
    return %c0_i32, %c0_i32_0 : i32, i32
  }
  func.func @transform_5(%arg0: i32, %arg1: i32) -> (i32, i32) {
    %c0_i32 = arith.constant 0 : i32
    %c0_i32_0 = arith.constant 0 : i32
    %c0_i32_1 = arith.constant 0 : i32
    return %c0_i32, %c0_i32_0 : i32, i32
  }
  func.func @transform_6(%arg0: i32, %arg1: i32) -> (i32, i32) {
    %c0_i32 = arith.constant 0 : i32
    %c0_i32_0 = arith.constant 0 : i32
    %c0_i32_1 = arith.constant 0 : i32
    return %c0_i32, %c0_i32_0 : i32, i32
  }
  func.func @transform_7(%arg0: i32, %arg1: i32) -> (i32, i32) {
    %c0_i32 = arith.constant 0 : i32
    %c0_i32_0 = arith.constant 0 : i32
    %c0_i32_1 = arith.constant 0 : i32
    return %c0_i32, %c0_i32_0 : i32, i32
  }
  func.func @transform_8(%arg0: i32, %arg1: i32) -> (i32, i32) {
    %c0_i32 = arith.constant 0 : i32
    %c0_i32_0 = arith.constant 0 : i32
    %c0_i32_1 = arith.constant 0 : i32
    return %c0_i32, %c0_i32_0 : i32, i32
  }
  func.func @transform_9(%arg0: i32, %arg1: i32) -> (i32, i32) {
    %c0_i32 = arith.constant 0 : i32
    %c0_i32_0 = arith.constant 0 : i32
    %c0_i32_1 = arith.constant 0 : i32
    return %c0_i32, %c0_i32_0 : i32, i32
  }
  func.func @transform_10(%arg0: i32, %arg1: i32) -> (i32, i32) {
    %c0_i32 = arith.constant 0 : i32
    %c0_i32_0 = arith.constant 0 : i32
    %c0_i32_1 = arith.constant 0 : i32
    return %c0_i32, %c0_i32_0 : i32, i32
  }
  func.func @transform_11(%arg0: i32, %arg1: i32) -> (i32, i32) {
    %c0_i32 = arith.constant 0 : i32
    %c0_i32_0 = arith.constant 0 : i32
    %c0_i32_1 = arith.constant 0 : i32
    return %c0_i32, %c0_i32_0 : i32, i32
  }
  func.func @transform_12(%arg0: i32, %arg1: i32) -> (i32, i32) {
    %c0_i32 = arith.constant 0 : i32
    %c0_i32_0 = arith.constant 0 : i32
    %c0_i32_1 = arith.constant 0 : i32
    return %c0_i32, %c0_i32_0 : i32, i32
  }
  func.func @transform_13(%arg0: i32, %arg1: i32) -> (i32, i32) {
    %c0_i32 = arith.constant 0 : i32
    %c0_i32_0 = arith.constant 0 : i32
    %c0_i32_1 = arith.constant 0 : i32
    return %c0_i32, %c0_i32_0 : i32, i32
  }
  func.func @transform_14(%arg0: i32, %arg1: i32) -> (i32, i32, i32) {
    %c0_i32 = arith.constant 0 : i32
    %c0_i32_0 = arith.constant 0 : i32
    return %arg0, %arg1, %c0_i32 : i32, i32, i32
  }
}

</mosaic_0001>

<llo_original>
// kernel: encoder_forward.5
$region0: #{encoder_forward.5}
  #allocation0 [shape = 'u32[]', space=smem, size = 0x4, offset = 0x4, fixed_abs, tag = 'smem constant byte address 0x4 - core index']
  #allocation1 [shape = 'u32[144,128]{1,0:T(1,128)}', space=vmem, size = 0x12000, scoped, tag = 'internal scratch']
  %s0 = inlined_call_operand.vmem [shape: bf16[2,4,8,8], index: 0, kind: input, shape index: {}]
  %s1 = inlined_call_operand.vmem [shape: f32[2,8,32], index: 1, kind: input, shape index: {}]
  %s2 = inlined_call_operand.vmem [shape: bf16[4,8,32], index: 2, kind: input, shape index: {}]
  %s3 = inlined_call_operand.vmem [shape: f32[1,32], index: 3, kind: input, shape index: {}]
  %s4 = inlined_call_operand.vmem [shape: f32[1,32], index: 4, kind: input, shape index: {}]
  %s5 = inlined_call_operand.vmem [shape: f32[1,32], index: 5, kind: input, shape index: {}]
  %s6 = inlined_call_operand.vmem [shape: bf16[32,128], index: 6, kind: input, shape index: {}]
  %s7 = inlined_call_operand.vmem [shape: f32[1,128], index: 7, kind: input, shape index: {}]
  %s8 = inlined_call_operand.vmem [shape: bf16[128,32], index: 8, kind: input, shape index: {}]
  %s9 = inlined_call_operand.vmem [shape: f32[1,32], index: 9, kind: input, shape index: {}]
  %s10 = inlined_call_operand.vmem [shape: f32[1,32], index: 10, kind: input, shape index: {}]
  %s11 = inlined_call_operand.vmem [shape: f32[1,32], index: 11, kind: input, shape index: {}]
  %s12 = inlined_call_operand.vmem [shape: f32[2,8,32], index: 12, kind: output, shape index: {}]
  %s13 = sld [smem:[#allocation0]]
  $region81: #{encoder_forward.5} parent=0
    _
  %s15 = ssub.s32 1, %s13
  %s16 = scalar_select 0, %s15, %s13
  loop: start=0, step=1, limit=4
  $region2: #{encoder_forward.5} parent=0 // loop_pre_header
    _
  $region3: #{encoder_forward.5} parent=0 // loop_header
    %s18 = sphi 0, %s22
    %p19 = scmp.ge.s32.totalorder %s18, 4
    %s25 = sphi 0, %s37
    %s26 = sphi 0, %s33
    %s27 = sphi 0, %s25
    %s28 = sphi 0, %s26
    %s29 = sphi 0, %s27
    %s30 = sphi 0, %s28
    %s42 = sphi 0, %s44
    %s45 = sphi 0, %s42
    %s46 = sphi 0, %s45
    %s62 = sphi 0, %s46
    %s70 = sphi 0, %s72
    %s73 = sphi 0, %s70
    %s74 = sphi 0, %s73
    %s90 = sphi 0, %s74
    %s94 = sphi 0, %s94
    %s96 = sphi 0, %s94
    %s97 = sphi 0, %s96
    %s111 = sphi 0, %s97
    %s115 = sphi 0, %s115
    %s117 = sphi 0, %s115
    %s118 = sphi 0, %s117
    %s132 = sphi 0, %s118
    %s136 = sphi 0, %s136
    %s138 = sphi 0, %s136
    %s139 = sphi 0, %s138
    %s153 = sphi 0, %s139
    %s157 = sphi 0, %s157
    %s159 = sphi 0, %s157
    %s160 = sphi 0, %s159
    %s174 = sphi 0, %s160
    %s178 = sphi 0, %s178
    %s180 = sphi 0, %s178
    %s181 = sphi 0, %s180
    %s195 = sphi 0, %s181
    %s199 = sphi 0, %s199
    %s201 = sphi 0, %s199
    %s202 = sphi 0, %s201
    %s216 = sphi 0, %s202
    %s220 = sphi 0, %s220
    %s222 = sphi 0, %s220
    %s223 = sphi 0, %s222
    %s237 = sphi 0, %s223
    %s241 = sphi 0, %s241
    %s243 = sphi 0, %s241
    %s244 = sphi 0, %s243
    %s258 = sphi 0, %s244
    %s262 = sphi 0, %s262
    %s264 = sphi 0, %s262
    %s265 = sphi 0, %s264
    %s279 = sphi 0, %s265
    %s283 = sphi 0, %s283
    %s285 = sphi 0, %s283
    %s286 = sphi 0, %s285
    %s300 = sphi 0, %s286
    %s308 = sphi 0, %s310
    %s311 = sphi 0, %s308
    %s312 = sphi 0, %s311
    %s328 = sphi 0, %s312
  $region4: #{encoder_forward.5} parent=0 // loop_header_branch
    %21 = sbr.rel (%p19) target = $region8
  $region5: #{encoder_forward.5} parent=0 // loop_body
    %s23 = ssub.s32 %s18, 1
    %s24 = ssub.s32 %s18, 2
    %s31 = sadd.s32 1, %s26
    %p32 = scmp.ge.s32.totalorder %s31, 1
    %s33 = scalar_select %p32, 0, %s31
    %s34 = sadd.s32 1, %s25
    %s35 = scalar_select %p32, %s34, %s25
    %p36 = scmp.ge.s32.totalorder %s35, 2
    %s37 = scalar_select %p36, 0, %s35
    %s38 = ssub.s32 %s25, %s37
    %s39 = ssub.s32 %s26, %s33
    %s40 = sor.u32 %s38, %s39
    %p41 = scmp.eq.s32.totalorder %s40, 0
    %s43 = sadd.s32 %s42, 1
    %s44 = scalar_select %p41, %s42, %s43
    %p47 = pneg %p41
    %p48 = scmp.eq.s32.totalorder %s18, 1
    %p49 = por %p47, %p48
    %p50 = scmp.ne.s32.totalorder %s42, %s45
    %p51 = scmp.eq.s32.totalorder %s18, 0
    %p52 = por %p50, %p51
    %p53 = scmp.ne.s32.totalorder %s42, %s45
    %p54 = scmp.eq.s32.totalorder %s23, 1
    %p55 = por %p53, %p54
    %p56 = scmp.ne.s32.totalorder %s45, %s46
    %p57 = scmp.eq.s32.totalorder %s23, 0
    %p58 = por %p56, %p57
    %p59 = scmp.ne.s32.totalorder %s45, %s46
    %p60 = scmp.eq.s32.totalorder %s24, 1
    %p61 = por %p59, %p60
    %p63 = scmp.ne.s32.totalorder %s46, %s62
    %p64 = scmp.eq.s32.totalorder %s24, 0
    %p65 = por %p63, %p64
    %s66 = ssub.s32 %s25, %s37
    %s67 = ssub.s32 %s26, %s33
    %s68 = sor.u32 %s66, %s67
    %p69 = scmp.eq.s32.totalorder %s68, 0
    %s71 = sadd.s32 %s70, 1
    %s72 = scalar_select %p69, %s70, %s71
    %p75 = pneg %p69
    %p76 = scmp.eq.s32.totalorder %s18, 1
    %p77 = por %p75, %p76
    %p78 = scmp.ne.s32.totalorder %s70, %s73
    %p79 = scmp.eq.s32.totalorder %s18, 0
    %p80 = por %p78, %p79
    %p81 = scmp.ne.s32.totalorder %s70, %s73
    %p82 = scmp.eq.s32.totalorder %s23, 1
    %p83 = por %p81, %p82
    %p84 = scmp.ne.s32.totalorder %s73, %s74
    %p85 = scmp.eq.s32.totalorder %s23, 0
    %p86 = por %p84, %p85
    %p87 = scmp.ne.s32.totalorder %s73, %s74
    %p88 = scmp.eq.s32.totalorder %s24, 1
    %p89 = por %p87, %p88
    %p91 = scmp.ne.s32.totalorder %s74, %s90
    %p92 = scmp.eq.s32.totalorder %s24, 0
    %p93 = por %p91, %p92
    %s95 = sadd.s32 %s94, 1
    %p98 = scmp.eq.s32.totalorder %s18, 1
    %p99 = scmp.ne.s32.totalorder %s94, %s96
    %p100 = scmp.eq.s32.totalorder %s18, 0
    %p101 = por %p99, %p100
    %p102 = scmp.ne.s32.totalorder %s94, %s96
    %p103 = scmp.eq.s32.totalorder %s23, 1
    %p104 = por %p102, %p103
    %p105 = scmp.ne.s32.totalorder %s96, %s97
    %p106 = scmp.eq.s32.totalorder %s23, 0
    %p107 = por %p105, %p106
    %p108 = scmp.ne.s32.totalorder %s96, %s97
    %p109 = scmp.eq.s32.totalorder %s24, 1
    %p110 = por %p108, %p109
    %p112 = scmp.ne.s32.totalorder %s97, %s111
    %p113 = scmp.eq.s32.totalorder %s24, 0
    %p114 = por %p112, %p113
    %s116 = sadd.s32 %s115, 1
    %p119 = scmp.eq.s32.totalorder %s18, 1
    %p120 = scmp.ne.s32.totalorder %s115, %s117
    %p121 = scmp.eq.s32.totalorder %s18, 0
    %p122 = por %p120, %p121
    %p123 = scmp.ne.s32.totalorder %s115, %s117
    %p124 = scmp.eq.s32.totalorder %s23, 1
    %p125 = por %p123, %p124
    %p126 = scmp.ne.s32.totalorder %s117, %s118
    %p127 = scmp.eq.s32.totalorder %s23, 0
    %p128 = por %p126, %p127
    %p129 = scmp.ne.s32.totalorder %s117, %s118
    %p130 = scmp.eq.s32.totalorder %s24, 1
    %p131 = por %p129, %p130
    %p133 = scmp.ne.s32.totalorder %s118, %s132
    %p134 = scmp.eq.s32.totalorder %s24, 0
    %p135 = por %p133, %p134
    %s137 = sadd.s32 %s136, 1
    %p140 = scmp.eq.s32.totalorder %s18, 1
    %p141 = scmp.ne.s32.totalorder %s136, %s138
    %p142 = scmp.eq.s32.totalorder %s18, 0
    %p143 = por %p141, %p142
    %p144 = scmp.ne.s32.totalorder %s136, %s138
    %p145 = scmp.eq.s32.totalorder %s23, 1
    %p146 = por %p144, %p145
    %p147 = scmp.ne.s32.totalorder %s138, %s139
    %p148 = scmp.eq.s32.totalorder %s23, 0
    %p149 = por %p147, %p148
    %p150 = scmp.ne.s32.totalorder %s138, %s139
    %p151 = scmp.eq.s32.totalorder %s24, 1
    %p152 = por %p150, %p151
    %p154 = scmp.ne.s32.totalorder %s139, %s153
    %p155 = scmp.eq.s32.totalorder %s24, 0
    %p156 = por %p154, %p155
    %s158 = sadd.s32 %s157, 1
    %p161 = scmp.eq.s32.totalorder %s18, 1
    %p162 = scmp.ne.s32.totalorder %s157, %s159
    %p163 = scmp.eq.s32.totalorder %s18, 0
    %p164 = por %p162, %p163
    %p165 = scmp.ne.s32.totalorder %s157, %s159
    %p166 = scmp.eq.s32.totalorder %s23, 1
    %p167 = por %p165, %p166
    %p168 = scmp.ne.s32.totalorder %s159, %s160
    %p169 = scmp.eq.s32.totalorder %s23, 0
    %p170 = por %p168, %p169
    %p171 = scmp.ne.s32.totalorder %s159, %s160
    %p172 = scmp.eq.s32.totalorder %s24, 1
    %p173 = por %p171, %p172
    %p175 = scmp.ne.s32.totalorder %s160, %s174
    %p176 = scmp.eq.s32.totalorder %s24, 0
    %p177 = por %p175, %p176
    %s179 = sadd.s32 %s178, 1
    %p182 = scmp.eq.s32.totalorder %s18, 1
    %p183 = scmp.ne.s32.totalorder %s178, %s180
    %p184 = scmp.eq.s32.totalorder %s18, 0
    %p185 = por %p183, %p184
    %p186 = scmp.ne.s32.totalorder %s178, %s180
    %p187 = scmp.eq.s32.totalorder %s23, 1
    %p188 = por %p186, %p187
    %p189 = scmp.ne.s32.totalorder %s180, %s181
    %p190 = scmp.eq.s32.totalorder %s23, 0
    %p191 = por %p189, %p190
    %p192 = scmp.ne.s32.totalorder %s180, %s181
    %p193 = scmp.eq.s32.totalorder %s24, 1
    %p194 = por %p192, %p193
    %p196 = scmp.ne.s32.totalorder %s181, %s195
    %p197 = scmp.eq.s32.totalorder %s24, 0
    %p198 = por %p196, %p197
    %s200 = sadd.s32 %s199, 1
    %p203 = scmp.eq.s32.totalorder %s18, 1
    %p204 = scmp.ne.s32.totalorder %s199, %s201
    %p205 = scmp.eq.s32.totalorder %s18, 0
    %p206 = por %p204, %p205
    %p207 = scmp.ne.s32.totalorder %s199, %s201
    %p208 = scmp.eq.s32.totalorder %s23, 1
    %p209 = por %p207, %p208
    %p210 = scmp.ne.s32.totalorder %s201, %s202
    %p211 = scmp.eq.s32.totalorder %s23, 0
    %p212 = por %p210, %p211
    %p213 = scmp.ne.s32.totalorder %s201, %s202
    %p214 = scmp.eq.s32.totalorder %s24, 1
    %p215 = por %p213, %p214
    %p217 = scmp.ne.s32.totalorder %s202, %s216
    %p218 = scmp.eq.s32.totalorder %s24, 0
    %p219 = por %p217, %p218
    %s221 = sadd.s32 %s220, 1
    %p224 = scmp.eq.s32.totalorder %s18, 1
    %p225 = scmp.ne.s32.totalorder %s220, %s222
    %p226 = scmp.eq.s32.totalorder %s18, 0
    %p227 = por %p225, %p226
    %p228 = scmp.ne.s32.totalorder %s220, %s222
    %p229 = scmp.eq.s32.totalorder %s23, 1
    %p230 = por %p228, %p229
    %p231 = scmp.ne.s32.totalorder %s222, %s223
    %p232 = scmp.eq.s32.totalorder %s23, 0
    %p233 = por %p231, %p232
    %p234 = scmp.ne.s32.totalorder %s222, %s223
    %p235 = scmp.eq.s32.totalorder %s24, 1
    %p236 = por %p234, %p235
    %p238 = scmp.ne.s32.totalorder %s223, %s237
    %p239 = scmp.eq.s32.totalorder %s24, 0
    %p240 = por %p238, %p239
    %s242 = sadd.s32 %s241, 1
    %p245 = scmp.eq.s32.totalorder %s18, 1
    %p246 = scmp.ne.s32.totalorder %s241, %s243
    %p247 = scmp.eq.s32.totalorder %s18, 0
    %p248 = por %p246, %p247
    %p249 = scmp.ne.s32.totalorder %s241, %s243
    %p250 = scmp.eq.s32.totalorder %s23, 1
    %p251 = por %p249, %p250
    %p252 = scmp.ne.s32.totalorder %s243, %s244
    %p253 = scmp.eq.s32.totalorder %s23, 0
    %p254 = por %p252, %p253
    %p255 = scmp.ne.s32.totalorder %s243, %s244
    %p256 = scmp.eq.s32.totalorder %s24, 1
    %p257 = por %p255, %p256
    %p259 = scmp.ne.s32.totalorder %s244, %s258
    %p260 = scmp.eq.s32.totalorder %s24, 0
    %p261 = por %p259, %p260
    %s263 = sadd.s32 %s262, 1
    %p266 = scmp.eq.s32.totalorder %s18, 1
    %p267 = scmp.ne.s32.totalorder %s262, %s264
    %p268 = scmp.eq.s32.totalorder %s18, 0
    %p269 = por %p267, %p268
    %p270 = scmp.ne.s32.totalorder %s262, %s264
    %p271 = scmp.eq.s32.totalorder %s23, 1
    %p272 = por %p270, %p271
    %p273 = scmp.ne.s32.totalorder %s264, %s265
    %p274 = scmp.eq.s32.totalorder %s23, 0
    %p275 = por %p273, %p274
    %p276 = scmp.ne.s32.totalorder %s264, %s265
    %p277 = scmp.eq.s32.totalorder %s24, 1
    %p278 = por %p276, %p277
    %p280 = scmp.ne.s32.totalorder %s265, %s279
    %p281 = scmp.eq.s32.totalorder %s24, 0
    %p282 = por %p280, %p281
    %s284 = sadd.s32 %s283, 1
    %p287 = scmp.eq.s32.totalorder %s18, 1
    %p288 = scmp.ne.s32.totalorder %s283, %s285
    %p289 = scmp.eq.s32.totalorder %s18, 0
    %p290 = por %p288, %p289
    %p291 = scmp.ne.s32.totalorder %s283, %s285
    %p292 = scmp.eq.s32.totalorder %s23, 1
    %p293 = por %p291, %p292
    %p294 = scmp.ne.s32.totalorder %s285, %s286
    %p295 = scmp.eq.s32.totalorder %s23, 0
    %p296 = por %p294, %p295
    %p297 = scmp.ne.s32.totalorder %s285, %s286
    %p298 = scmp.eq.s32.totalorder %s24, 1
    %p299 = por %p297, %p298
    %p301 = scmp.ne.s32.totalorder %s286, %s300
    %p302 = scmp.eq.s32.totalorder %s24, 0
    %p303 = por %p301, %p302
    %s304 = ssub.s32 %s25, %s37
    %s305 = ssub.s32 %s26, %s33
    %s306 = sor.u32 %s304, %s305
    %p307 = scmp.eq.s32.totalorder %s306, 0
    %s309 = sadd.s32 %s308, 1
    %s310 = scalar_select %p307, %s308, %s309
    %p313 = pneg %p307
    %p314 = scmp.eq.s32.totalorder %s18, 1
    %p315 = por %p313, %p314
    %p316 = scmp.ne.s32.totalorder %s308, %s311
    %p317 = scmp.eq.s32.totalorder %s18, 0
    %p318 = por %p316, %p317
    %p319 = scmp.ne.s32.totalorder %s308, %s311
    %p320 = scmp.eq.s32.totalorder %s23, 1
    %p321 = por %p319, %p320
    %p322 = scmp.ne.s32.totalorder %s311, %s312
    %p323 = scmp.eq.s32.totalorder %s23, 0
    %p324 = por %p322, %p323
    %p325 = scmp.ne.s32.totalorder %s311, %s312
    %p326 = scmp.eq.s32.totalorder %s24, 1
    %p327 = por %p325, %p326
    %p329 = scmp.ne.s32.totalorder %s312, %s328
    %p330 = scmp.eq.s32.totalorder %s24, 0
    %p331 = por %p329, %p330
    %p332 = scmp.le.s32.totalorder 1, %s18
    %p333 = scmp.lt.s32.totalorder %s18, 3
    %p334 = pnand %p332, %p333
    %p335 = pneg %p334
    // Predicated region
    $region9: #{encoder_forward.5} parent=5 // pred_check
      _
    $region10: #{encoder_forward.5} parent=5 // pred_check_branch
      %337 = sbr.rel (%p334) target = $region12
    $region11: #{encoder_forward.5} parent=5 // pred_region
      %s338 = ssub.s32 %s18, 1
      // Predicated region
      $region13: #{encoder_forward.5} parent=11 // pred_check
        %p339 = pneg %p107
      $region14: #{encoder_forward.5} parent=11 // pred_check_branch
        %341 = sbr.rel (%p339) target = $region16
      $region15: #{encoder_forward.5} parent=11 // pred_region
        _
      $region16: #{encoder_forward.5} parent=11 // pred_fallthru
        _
      // Predicated region
      $region17: #{encoder_forward.5} parent=11 // pred_check
        %p342 = pneg %p128
      $region18: #{encoder_forward.5} parent=11 // pred_check_branch
        %344 = sbr.rel (%p342) target = $region20
      $region19: #{encoder_forward.5} parent=11 // pred_region
        _
      $region20: #{encoder_forward.5} parent=11 // pred_fallthru
        _
      // Predicated region
      $region21: #{encoder_forward.5} parent=11 // pred_check
        %p345 = pneg %p149
      $region22: #{encoder_forward.5} parent=11 // pred_check_branch
        %347 = sbr.rel (%p345) target = $region24
      $region23: #{encoder_forward.5} parent=11 // pred_region
        _
      $region24: #{encoder_forward.5} parent=11 // pred_fallthru
        _
      // Predicated region
      $region25: #{encoder_forward.5} parent=11 // pred_check
        %p348 = pneg %p170
      $region26: #{encoder_forward.5} parent=11 // pred_check_branch
        %350 = sbr.rel (%p348) target = $region28
      $region27: #{encoder_forward.5} parent=11 // pred_region
        _
      $region28: #{encoder_forward.5} parent=11 // pred_fallthru
        _
      // Predicated region
      $region29: #{encoder_forward.5} parent=11 // pred_check
        %p351 = pneg %p191
      $region30: #{encoder_forward.5} parent=11 // pred_check_branch
        %353 = sbr.rel (%p351) target = $region32
      $region31: #{encoder_forward.5} parent=11 // pred_region
        _
      $region32: #{encoder_forward.5} parent=11 // pred_fallthru
        _
      // Predicated region
      $region33: #{encoder_forward.5} parent=11 // pred_check
        %p354 = pneg %p212
      $region34: #{encoder_forward.5} parent=11 // pred_check_branch
        %356 = sbr.rel (%p354) target = $region36
      $region35: #{encoder_forward.5} parent=11 // pred_region
        _
      $region36: #{encoder_forward.5} parent=11 // pred_fallthru
        _
      // Predicated region
      $region37: #{encoder_forward.5} parent=11 // pred_check
        %p357 = pneg %p233
      $region38: #{encoder_forward.5} parent=11 // pred_check_branch
        %359 = sbr.rel (%p357) target = $region40
      $region39: #{encoder_forward.5} parent=11 // pred_region
        _
      $region40: #{encoder_forward.5} parent=11 // pred_fallthru
        _
      // Predicated region
      $region41: #{encoder_forward.5} parent=11 // pred_check
        %p360 = pneg %p254
      $region42: #{encoder_forward.5} parent=11 // pred_check_branch
        %362 = sbr.rel (%p360) target = $region44
      $region43: #{encoder_forward.5} parent=11 // pred_region
        _
      $region44: #{encoder_forward.5} parent=11 // pred_fallthru
        _
      // Predicated region
      $region45: #{encoder_forward.5} parent=11 // pred_check
        %p363 = pneg %p275
      $region46: #{encoder_forward.5} parent=11 // pred_check_branch
        %365 = sbr.rel (%p363) target = $region48
      $region47: #{encoder_forward.5} parent=11 // pred_region
        _
      $region48: #{encoder_forward.5} parent=11 // pred_fallthru
        _
      // Predicated region
      $region49: #{encoder_forward.5} parent=11 // pred_check
        %p366 = pneg %p296
      $region50: #{encoder_forward.5} parent=11 // pred_check_branch
        %368 = sbr.rel (%p366) target = $region52
      $region51: #{encoder_forward.5} parent=11 // pred_region
        _
      $region52: #{encoder_forward.5} parent=11 // pred_fallthru
        _
    $region12: #{encoder_forward.5} parent=5 // pred_fallthru
      _
    %p369 = scmp.lt.s32.totalorder %s18, 2
    // Predicated region
    $region53: #{encoder_forward.5} parent=5 // pred_check
      %p370 = pneg %p369
    $region54: #{encoder_forward.5} parent=5 // pred_check_branch
      %372 = sbr.rel (%p370) target = $region56
    $region55: #{encoder_forward.5} parent=5 // pred_region
      // Predicated region
      $region57: #{encoder_forward.5} parent=55 // pred_check
        %p373 = pneg %p52
      $region58: #{encoder_forward.5} parent=55 // pred_check_branch
        %375 = sbr.rel (%p373) target = $region60
      $region59: #{encoder_forward.5} parent=55 // pred_region
        %p376 = scmp.lt.s32.totalorder %s25, 1
        %s377 = scalar_select %p376, %s25, 1
        %p378 = scmp.lt.s32.totalorder %s26, 0
        %s379 = scalar_select %p378, %s26, 0
        %s380 = smul.addr %s377, 4
        %s381 = sadd.s32 %s379, %s380
        %s382 = smul.addr %s381, 4
        %s383 = scalar_lea.vmem %s0, %s382
      $region60: #{encoder_forward.5} parent=55 // pred_fallthru
        _
      // Predicated region
      $region61: #{encoder_forward.5} parent=55 // pred_check
        %p384 = pneg %p80
      $region62: #{encoder_forward.5} parent=55 // pred_check_branch
        %386 = sbr.rel (%p384) target = $region64
      $region63: #{encoder_forward.5} parent=55 // pred_region
        %p387 = scmp.lt.s32.totalorder %s25, 1
        %s388 = scalar_select %p387, %s25, 1
        %p389 = scmp.lt.s32.totalorder %s26, 0
        %s390 = scalar_select %p389, %s26, 0
        %s391 = sadd.s32 %s390, %s388
        %s392 = smul.addr %s391, 8
        %s393 = scalar_lea.vmem %s1, %s392
      $region64: #{encoder_forward.5} parent=55 // pred_fallthru
        _
    $region56: #{encoder_forward.5} parent=5 // pred_fallthru
      _
    %p394 = scmp.le.s32.totalorder 1, %s18
    %p395 = scmp.lt.s32.totalorder %s18, 3
    %p396 = pnand %p394, %p395
    %p397 = pneg %p396
    // Predicated region
    $region65: #{encoder_forward.5} parent=5 // pred_check
      _
    $region66: #{encoder_forward.5} parent=5 // pred_check_branch
      %399 = sbr.rel (%p396) target = $region68
    $region67: #{encoder_forward.5} parent=5 // pred_region
      %s400 = ssub.s32 %s18, 1
      %p401 = scmp.lt.s32.totalorder %s27, 1
      %s402 = scalar_select %p401, %s27, 1
      %p403 = scmp.lt.s32.totalorder %s28, 0
      %s404 = scalar_select %p403, %s28, 0
      %s405 = smul.addr %s402, 4
      %s406 = sadd.s32 %s404, %s405
      %s407 = smul.addr %s406, 4
      %s408 = scalar_lea.vmem %s0, %s407
      %p409 = pneg %p58
      %p410 = pneg %p55
      %p411 = scmp.lt.s32.totalorder %s27, 1
      %s412 = scalar_select %p411, %s27, 1
      %p413 = scmp.lt.s32.totalorder %s28, 0
      %s414 = scalar_select %p413, %s28, 0
      %s415 = sadd.s32 %s414, %s412
      %s416 = smul.addr %s415, 8
      %s417 = scalar_lea.vmem %s1, %s416
      %p418 = pneg %p86
      %p419 = pneg %p83
      %p420 = pneg %p107
      %p421 = pneg %p104
      %p422 = pneg %p128
      %p423 = pneg %p125
      %p424 = pneg %p149
      %p425 = pneg %p146
      %p426 = pneg %p170
      %p427 = pneg %p167
      %p428 = pneg %p191
      %p429 = pneg %p188
      %p430 = pneg %p212
      %p431 = pneg %p209
      %p432 = pneg %p233
      %p433 = pneg %p230
      %p434 = pneg %p254
      %p435 = pneg %p251
      %p436 = pneg %p275
      %p437 = pneg %p272
      %p438 = pneg %p296
      %p439 = pneg %p293
      %p440 = pneg %p324
      %p441 = pneg %p321
      %p442 = scmp.lt.s32.totalorder %s27, 1
      %s443 = scalar_select %p442, %s27, 1
      %p444 = scmp.lt.s32.totalorder %s28, 0
      %s445 = scalar_select %p444, %s28, 0
      %s446 = sadd.s32 %s445, %s443
      %s447 = smul.addr %s446, 8
      %s448 = scalar_lea.vmem %s12, %s447
      %p449 = scmp.lt.s32.totalorder %s27, 1
      %s450 = scalar_select %p449, %s27, 1
      %p451 = scmp.lt.s32.totalorder %s28, 0
      %s452 = scalar_select %p451, %s28, 0
      %s453 = smul.addr %s450, 4
      %s454 = sadd.s32 %s452, %s453
      %s455 = smul.addr %s454, 4
      %s456 = scalar_lea.vmem %s0, %s455
      %p457 = scmp.lt.s32.totalorder %s27, 1
      %s458 = scalar_select %p457, %s27, 1
      %p459 = scmp.lt.s32.totalorder %s28, 0
      %s460 = scalar_select %p459, %s28, 0
      %s461 = sadd.s32 %s460, %s458
      %s462 = smul.addr %s461, 8
      %s463 = scalar_lea.vmem %s1, %s462
      %p464 = scmp.lt.s32.totalorder %s27, 1
      %s465 = scalar_select %p464, %s27, 1
      %p466 = scmp.lt.s32.totalorder %s28, 0
      %s467 = scalar_select %p466, %s28, 0
      %s468 = sadd.s32 %s467, %s465
      %s469 = smul.addr %s468, 8
      %s470 = scalar_lea.vmem %s12, %s469
      %v472 = vld [vmem:[%s463] sm:$0xff]
      %v473 = vld [vmem:[%s456] sm:$0xf]
      %v474 = vld [vmem:[%s2] sm:$0xf]
      %s475 = scalar_lea.vmem %s456, 4
      %v476 = vld [vmem:[%s475] sm:$0xf]
      %s477 = scalar_lea.vmem %s2, 4
      %v478 = vld [vmem:[%s477] sm:$0xf]
      %vm479 = vcmask 64512
      %v481 = vsel %vm479, %v476, 0
      %vm483 = vcmask 1043456
      %v485 = vsel %vm483, %v478, 0
      %487 = vmatprep.subr.bf16.mxu0 0
      %488 = vmatpush1.bf16.msra.mxu0 0
      %489 = vmatprep.subr.bf16.mxu0 0
      %490 = vmatpush1.bf16.msra.mxu0 0
      %491 = vmatprep.subr.bf16.mxu0 0
      %492 = vmatpush1.bf16.msra.mxu0 0
      %493 = vmatprep.subr.bf16.mxu0 0
      %494 = vmatpush1.bf16.msra.mxu0 0
      %495 = vmatprep.subr.bf16.mxu0 0
      %496 = vmatpush1.bf16.msra.mxu0 0
      %497 = vmatprep.subr.bf16.mxu0 0
      %498 = vmatpush1.bf16.msra.mxu0 0
      %499 = vmatprep.subr.bf16.mxu0 0
      %500 = vmatpush1.bf16.msra.mxu0 0
      %501 = vmatprep.subr.bf16.mxu0 0
      %502 = vmatpush1.bf16.msra.mxu0 %v485
      %503 = vmatprep.subr.bf16.mxu0 0
      %504 = vmatpush2.bf16.msra.mxu0 0
      %505 = vmatprep.subr.bf16.mxu0 0
      %506 = vmatpush2.bf16.msra.mxu0 0
      %507 = vmatprep.subr.bf16.mxu0 0
      %508 = vmatpush2.bf16.msra.mxu0 0
      %509 = vmatprep.subr.bf16.mxu0 0
      %510 = vmatpush2.bf16.msra.mxu0 0
      %511 = vmatprep.subr.bf16.mxu0 0
      %512 = vmatpush2.bf16.msra.mxu0 0
      %513 = vmatprep.subr.bf16.mxu0 0
      %514 = vmatpush2.bf16.msra.mxu0 0
      %515 = vmatprep.subr.bf16.mxu0 0
      %516 = vmatpush2.bf16.msra.mxu0 0
      %517 = vmatprep.subr.bf16.mxu0 0
      %518 = vmatpush2.bf16.msra.mxu0 0
      %519 = vmatprep.mubr.bf16.mxu0 0
      %520 = vmatmul.mubr.bf16.gmra.mxu0 %v481
      %v521 = vpop.f32.mrf.mxu0
      %v522 = vadd.f32 0.0, %v521
      %v523 = vpop.f32.mrf.mxu0
      %v524 = vpop.f32.mrf.mxu0
      %v525 = vpop.f32.mrf.mxu0
      %526 = vdwg.mxu0
      %v528 = vsel %vm479, %v473, 0
      %v531 = vsel %vm483, %v474, 0
      %533 = vmatprep.subr.bf16.mxu0 0
      %534 = vmatpush1.bf16.msra.mxu0 0
      %535 = vmatprep.subr.bf16.mxu0 0
      %536 = vmatpush1.bf16.msra.mxu0 0
      %537 = vmatprep.subr.bf16.mxu0 0
      %538 = vmatpush1.bf16.msra.mxu0 0
      %539 = vmatprep.subr.bf16.mxu0 0
      %540 = vmatpush1.bf16.msra.mxu0 0
      %541 = vmatprep.subr.bf16.mxu0 0
      %542 = vmatpush1.bf16.msra.mxu0 0
      %543 = vmatprep.subr.bf16.mxu0 0
      %544 = vmatpush1.bf16.msra.mxu0 0
      %545 = vmatprep.subr.bf16.mxu0 0
      %546 = vmatpush1.bf16.msra.mxu0 0
      %547 = vmatprep.subr.bf16.mxu0 0
      %548 = vmatpush1.bf16.msra.mxu0 %v531
      %549 = vmatprep.subr.bf16.mxu0 0
      %550 = vmatpush2.bf16.msra.mxu0 0
      %551 = vmatprep.subr.bf16.mxu0 0
      %552 = vmatpush2.bf16.msra.mxu0 0
      %553 = vmatprep.subr.bf16.mxu0 0
      %554 = vmatpush2.bf16.msra.mxu0 0
      %555 = vmatprep.subr.bf16.mxu0 0
      %556 = vmatpush2.bf16.msra.mxu0 0
      %557 = vmatprep.subr.bf16.mxu0 0
      %558 = vmatpush2.bf16.msra.mxu0 0
      %559 = vmatprep.subr.bf16.mxu0 0
      %560 = vmatpush2.bf16.msra.mxu0 0
      %561 = vmatprep.subr.bf16.mxu0 0
      %562 = vmatpush2.bf16.msra.mxu0 0
      %563 = vmatprep.subr.bf16.mxu0 0
      %564 = vmatpush2.bf16.msra.mxu0 0
      %565 = vmatprep.mubr.bf16.mxu0 0
      %566 = vmatmul.mubr.bf16.gmra.mxu0 %v528
      %v567 = vpop.f32.mrf.mxu0
      %v568 = vadd.f32 %v522, %v567
      %v569 = vpop.f32.mrf.mxu0
      %v570 = vpop.f32.mrf.mxu0
      %v571 = vpop.f32.mrf.mxu0
      %572 = vdwg.mxu0
      %s573 = scalar_lea.vmem %s456, 8
      %v574 = vld [vmem:[%s573] sm:$0xf]
      %s575 = scalar_lea.vmem %s2, 8
      %v576 = vld [vmem:[%s575] sm:$0xf]
      %v578 = vsel %vm479, %v574, 0
      %v581 = vsel %vm483, %v576, 0
      %583 = vmatprep.subr.bf16.mxu0 0
      %584 = vmatpush1.bf16.msra.mxu0 0
      %585 = vmatprep.subr.bf16.mxu0 0
      %586 = vmatpush1.bf16.msra.mxu0 0
      %587 = vmatprep.subr.bf16.mxu0 0
      %588 = vmatpush1.bf16.msra.mxu0 0
      %589 = vmatprep.subr.bf16.mxu0 0
      %590 = vmatpush1.bf16.msra.mxu0 0
      %591 = vmatprep.subr.bf16.mxu0 0
      %592 = vmatpush1.bf16.msra.mxu0 0
      %593 = vmatprep.subr.bf16.mxu0 0
      %594 = vmatpush1.bf16.msra.mxu0 0
      %595 = vmatprep.subr.bf16.mxu0 0
      %596 = vmatpush1.bf16.msra.mxu0 0
      %597 = vmatprep.subr.bf16.mxu0 0
      %598 = vmatpush1.bf16.msra.mxu0 %v581
      %599 = vmatprep.subr.bf16.mxu0 0
      %600 = vmatpush2.bf16.msra.mxu0 0
      %601 = vmatprep.subr.bf16.mxu0 0
      %602 = vmatpush2.bf16.msra.mxu0 0
      %603 = vmatprep.subr.bf16.mxu0 0
      %604 = vmatpush2.bf16.msra.mxu0 0
      %605 = vmatprep.subr.bf16.mxu0 0
      %606 = vmatpush2.bf16.msra.mxu0 0
      %607 = vmatprep.subr.bf16.mxu0 0
      %608 = vmatpush2.bf16.msra.mxu0 0
      %609 = vmatprep.subr.bf16.mxu0 0
      %610 = vmatpush2.bf16.msra.mxu0 0
      %611 = vmatprep.subr.bf16.mxu0 0
      %612 = vmatpush2.bf16.msra.mxu0 0
      %613 = vmatprep.subr.bf16.mxu0 0
      %614 = vmatpush2.bf16.msra.mxu0 0
      %615 = vmatprep.mubr.bf16.mxu0 0
      %616 = vmatmul.mubr.bf16.gmra.mxu0 %v578
      %v617 = vpop.f32.mrf.mxu0
      %v618 = vadd.f32 0.0, %v617
      %v619 = vpop.f32.mrf.mxu0
      %v620 = vpop.f32.mrf.mxu0
      %v621 = vpop.f32.mrf.mxu0
      %622 = vdwg.mxu0
      %v623 = vadd.f32 %v568, %v618
      %s624 = scalar_lea.vmem %s456, 12
      %v625 = vld [vmem:[%s624] sm:$0xf]
      %s626 = scalar_lea.vmem %s2, 12
      %v627 = vld [vmem:[%s626] sm:$0xf]
      %v629 = vsel %vm479, %v625, 0
      %v632 = vsel %vm483, %v627, 0
      %634 = vmatprep.subr.bf16.mxu0 0
      %635 = vmatpush1.bf16.msra.mxu0 0
      %636 = vmatprep.subr.bf16.mxu0 0
      %637 = vmatpush1.bf16.msra.mxu0 0
      %638 = vmatprep.subr.bf16.mxu0 0
      %639 = vmatpush1.bf16.msra.mxu0 0
      %640 = vmatprep.subr.bf16.mxu0 0
      %641 = vmatpush1.bf16.msra.mxu0 0
      %642 = vmatprep.subr.bf16.mxu0 0
      %643 = vmatpush1.bf16.msra.mxu0 0
      %644 = vmatprep.subr.bf16.mxu0 0
      %645 = vmatpush1.bf16.msra.mxu0 0
      %646 = vmatprep.subr.bf16.mxu0 0
      %647 = vmatpush1.bf16.msra.mxu0 0
      %648 = vmatprep.subr.bf16.mxu0 0
      %649 = vmatpush1.bf16.msra.mxu0 %v632
      %650 = vmatprep.subr.bf16.mxu0 0
      %651 = vmatpush2.bf16.msra.mxu0 0
      %652 = vmatprep.subr.bf16.mxu0 0
      %653 = vmatpush2.bf16.msra.mxu0 0
      %654 = vmatprep.subr.bf16.mxu0 0
      %655 = vmatpush2.bf16.msra.mxu0 0
      %656 = vmatprep.subr.bf16.mxu0 0
      %657 = vmatpush2.bf16.msra.mxu0 0
      %658 = vmatprep.subr.bf16.mxu0 0
      %659 = vmatpush2.bf16.msra.mxu0 0
      %660 = vmatprep.subr.bf16.mxu0 0
      %661 = vmatpush2.bf16.msra.mxu0 0
      %662 = vmatprep.subr.bf16.mxu0 0
      %663 = vmatpush2.bf16.msra.mxu0 0
      %664 = vmatprep.subr.bf16.mxu0 0
      %665 = vmatpush2.bf16.msra.mxu0 0
      %666 = vmatprep.mubr.bf16.mxu0 0
      %667 = vmatmul.mubr.bf16.gmra.mxu0 %v629
      %v668 = vpop.f32.mrf.mxu0
      %v669 = vadd.f32 0.0, %v668
      %v670 = vpop.f32.mrf.mxu0
      %v671 = vpop.f32.mrf.mxu0
      %v672 = vpop.f32.mrf.mxu0
      %673 = vdwg.mxu0
      %v674 = vadd.f32 %v623, %v669
      %v675 = vld [vmem:[%s3] sm:$0x1]
      %v677 = vlaneseq
      %v678 = vshrl.u32 %v677, 7
      %v679 = vsub.s32 0, %v678
      %v680 = vrot.slane %v675, %v679
      %v682 = vadd.f32 %v674, %v680
      %v683 = vadd.f32 %v472, %v682
      %v684 = vld [vmem:[%s4] sm:$0x1]
      %v685 = vld [vmem:[%s5] sm:$0x1]
      %vm686 = vcmask 261120
      %v687 = vsel %vm686, %v683, 0.0
      %688 = vadd.xlane.f32.xlu0 %v687
      %v689 = vpop.xlane.xlu0 %688
      %v690 = vrcp.pop 32.0
      %v691 = vmul.f32 %v689, %v690
      %v692 = vsub.f32 %v683, %v691
      %v693 = vmul.f32 %v692, %v692
      %v694 = vsel %vm686, %v693, 0.0
      %695 = vadd.xlane.f32.xlu0 %v694
      %v696 = vpop.xlane.xlu0 %695
      %v697 = vmul.f32 %v696, %v690
      %v698 = vadd.f32 %v697, 1e-05
      %v699 = vrsqrt.pop %v698
      %v700 = vmul.f32 %v692, %v699
      %v702 = vlaneseq
      %v703 = vshrl.u32 %v702, 7
      %v704 = vsub.s32 0, %v703
      %v705 = vrot.slane %v684, %v704
      %v707 = vmul.f32 %v700, %v705
      %v709 = vlaneseq
      %v710 = vshrl.u32 %v709, 7
      %v711 = vsub.s32 0, %v710
      %v712 = vrot.slane %v685, %v711
      %v714 = vadd.f32 %v707, %v712
      %v715 = vld [vmem:[%s6] sm:$0xf]
      %v716 = vld [vmem:[%s6 + $0x4] sm:$0xf]
      %v717 = vld [vmem:[%s6 + $0x8] sm:$0xf]
      %v718 = vld [vmem:[%s6 + $0xc] sm:$0xf]
      %v719 = vpack.c.bf16 %v714, %v714
      %v720 = vld [vmem:[%s7] sm:$0x1]
      %v722 = vlaneseq
      %v723 = vshrl.u32 %v722, 7
      %v724 = vsub.s32 0, %v723
      %v725 = vrot.slane %v720, %v724
      %v731 = vunpack.c.l.b16 %v715
      %v732 = vunpack.c.l.b16 %v716
      %v733 = vunpack.c.l.b16 %v717
      %v734 = vunpack.c.l.b16 %v718
      %v735 = vpack.c.b16 %v732, %v731
      %v736 = vpack.c.b16 %v734, %v733
      %v740 = vsel %vm686, %v719, 0
      %742 = vmatprep.subr.bf16.mxu0 0
      %743 = vmatpush1.bf16.msra.mxu0 0
      %744 = vmatprep.subr.bf16.mxu0 0
      %745 = vmatpush1.bf16.msra.mxu0 0
      %746 = vmatprep.subr.bf16.mxu0 0
      %747 = vmatpush1.bf16.msra.mxu0 0
      %748 = vmatprep.subr.bf16.mxu0 0
      %749 = vmatpush1.bf16.msra.mxu0 0
      %750 = vmatprep.subr.bf16.mxu0 0
      %751 = vmatpush1.bf16.msra.mxu0 0
      %752 = vmatprep.subr.bf16.mxu0 0
      %753 = vmatpush1.bf16.msra.mxu0 0
      %754 = vmatprep.subr.bf16.mxu0 0
      %755 = vmatpush1.bf16.msra.mxu0 %v736
      %756 = vmatprep.subr.bf16.mxu0 0
      %757 = vmatpush1.bf16.msra.mxu0 %v735
      %758 = vmatprep.subr.bf16.mxu0 0
      %759 = vmatpush2.bf16.msra.mxu0 0
      %760 = vmatprep.subr.bf16.mxu0 0
      %761 = vmatpush2.bf16.msra.mxu0 0
      %762 = vmatprep.subr.bf16.mxu0 0
      %763 = vmatpush2.bf16.msra.mxu0 0
      %764 = vmatprep.subr.bf16.mxu0 0
      %765 = vmatpush2.bf16.msra.mxu0 0
      %766 = vmatprep.subr.bf16.mxu0 0
      %767 = vmatpush2.bf16.msra.mxu0 0
      %768 = vmatprep.subr.bf16.mxu0 0
      %769 = vmatpush2.bf16.msra.mxu0 0
      %770 = vmatprep.subr.bf16.mxu0 0
      %771 = vmatpush2.bf16.msra.mxu0 0
      %772 = vmatprep.subr.bf16.mxu0 0
      %773 = vmatpush2.bf16.msra.mxu0 0
      %774 = vmatprep.mubr.bf16.mxu0 0
      %775 = vmatmul.mubr.bf16.gmra.mxu0 %v740
      %v776 = vpop.f32.mrf.mxu0
      %v777 = vadd.f32 %v725, %v776
      %v778 = vpop.f32.mrf.mxu0
      %v779 = vpop.f32.mrf.mxu0
      %v780 = vpop.f32.mrf.mxu0
      %781 = vdwg.mxu0
      %v782 = vmax.f32 %v777, 0.0
      %v783 = vld [vmem:[%s8] sm:$0xf]
      %v784 = vld [vmem:[%s8 + $0x4] sm:$0xf]
      %v785 = vld [vmem:[%s8 + $0x8] sm:$0xf]
      %v786 = vld [vmem:[%s8 + $0xc] sm:$0xf]
      %v787 = vld [vmem:[%s8 + $0x10] sm:$0xf]
      %v788 = vld [vmem:[%s8 + $0x14] sm:$0xf]
      %v789 = vld [vmem:[%s8 + $0x18] sm:$0xf]
      %v790 = vld [vmem:[%s8 + $0x1c] sm:$0xf]
      %v791 = vld [vmem:[%s8 + $0x20] sm:$0xf]
      %v792 = vld [vmem:[%s8 + $0x24] sm:$0xf]
      %v793 = vld [vmem:[%s8 + $0x28] sm:$0xf]
      %v794 = vld [vmem:[%s8 + $0x2c] sm:$0xf]
      %v795 = vld [vmem:[%s8 + $0x30] sm:$0xf]
      %v796 = vld [vmem:[%s8 + $0x34] sm:$0xf]
      %v797 = vld [vmem:[%s8 + $0x38] sm:$0xf]
      %v798 = vld [vmem:[%s8 + $0x3c] sm:$0xf]
      %v799 = vpack.c.bf16 %v782, %v782
      %v800 = vld [vmem:[%s9] sm:$0x1]
      %v802 = vlaneseq
      %v803 = vshrl.u32 %v802, 7
      %v804 = vsub.s32 0, %v803
      %v805 = vrot.slane %v800, %v804
      %v823 = vunpack.c.l.b16 %v783
      %v824 = vunpack.c.l.b16 %v784
      %v825 = vunpack.c.l.b16 %v785
      %v826 = vunpack.c.l.b16 %v786
      %v827 = vunpack.c.l.b16 %v787
      %v828 = vunpack.c.l.b16 %v788
      %v829 = vunpack.c.l.b16 %v789
      %v830 = vunpack.c.l.b16 %v790
      %v831 = vunpack.c.l.b16 %v791
      %v832 = vunpack.c.l.b16 %v792
      %v833 = vunpack.c.l.b16 %v793
      %v834 = vunpack.c.l.b16 %v794
      %v835 = vunpack.c.l.b16 %v795
      %v836 = vunpack.c.l.b16 %v796
      %v837 = vunpack.c.l.b16 %v797
      %v838 = vunpack.c.l.b16 %v798
      %v839 = vpack.c.b16 %v824, %v823
      %v840 = vpack.c.b16 %v826, %v825
      %v841 = vpack.c.b16 %v828, %v827
      %v842 = vpack.c.b16 %v830, %v829
      %v843 = vpack.c.b16 %v832, %v831
      %v844 = vpack.c.b16 %v834, %v833
      %v845 = vpack.c.b16 %v836, %v835
      %v846 = vpack.c.b16 %v838, %v837
      %855 = vmatprep.subr.bf16.mxu0 0
      %856 = vmatpush1.bf16.msra.mxu0 %v846
      %857 = vmatprep.subr.bf16.mxu0 0
      %858 = vmatpush1.bf16.msra.mxu0 %v845
      %859 = vmatprep.subr.bf16.mxu0 0
      %860 = vmatpush1.bf16.msra.mxu0 %v844
      %861 = vmatprep.subr.bf16.mxu0 0
      %862 = vmatpush1.bf16.msra.mxu0 %v843
      %863 = vmatprep.subr.bf16.mxu0 0
      %864 = vmatpush1.bf16.msra.mxu0 %v842
      %865 = vmatprep.subr.bf16.mxu0 0
      %866 = vmatpush1.bf16.msra.mxu0 %v841
      %867 = vmatprep.subr.bf16.mxu0 0
      %868 = vmatpush1.bf16.msra.mxu0 %v840
      %869 = vmatprep.subr.bf16.mxu0 0
      %870 = vmatpush1.bf16.msra.mxu0 %v839
      %871 = vmatprep.subr.bf16.mxu0 0
      %872 = vmatpush2.bf16.msra.mxu0 0
      %873 = vmatprep.subr.bf16.mxu0 0
      %874 = vmatpush2.bf16.msra.mxu0 0
      %875 = vmatprep.subr.bf16.mxu0 0
      %876 = vmatpush2.bf16.msra.mxu0 0
      %877 = vmatprep.subr.bf16.mxu0 0
      %878 = vmatpush2.bf16.msra.mxu0 0
      %879 = vmatprep.subr.bf16.mxu0 0
      %880 = vmatpush2.bf16.msra.mxu0 0
      %881 = vmatprep.subr.bf16.mxu0 0
      %882 = vmatpush2.bf16.msra.mxu0 0
      %883 = vmatprep.subr.bf16.mxu0 0
      %884 = vmatpush2.bf16.msra.mxu0 0
      %885 = vmatprep.subr.bf16.mxu0 0
      %886 = vmatpush2.bf16.msra.mxu0 0
      %887 = vmatprep.mubr.bf16.mxu0 0
      %888 = vmatmul.mubr.bf16.gmra.mxu0 %v799
      %v889 = vpop.f32.mrf.mxu0
      %v890 = vadd.f32 %v805, %v889
      %v891 = vpop.f32.mrf.mxu0
      %v892 = vpop.f32.mrf.mxu0
      %v893 = vpop.f32.mrf.mxu0
      %894 = vdwg.mxu0
      %v895 = vadd.f32 %v714, %v890
      %v896 = vld [vmem:[%s10] sm:$0x1]
      %v897 = vld [vmem:[%s11] sm:$0x1]
      %v898 = vsel %vm686, %v895, 0.0
      %899 = vadd.xlane.f32.xlu0 %v898
      %v900 = vpop.xlane.xlu0 %899
      %v901 = vmul.f32 %v900, %v690
      %v902 = vsub.f32 %v895, %v901
      %v903 = vmul.f32 %v902, %v902
      %v904 = vsel %vm686, %v903, 0.0
      %905 = vadd.xlane.f32.xlu0 %v904
      %v906 = vpop.xlane.xlu0 %905
      %v907 = vmul.f32 %v906, %v690
      %v908 = vadd.f32 %v907, 1e-05
      %v909 = vrsqrt.pop %v908
      %v910 = vmul.f32 %v902, %v909
      %v912 = vlaneseq
      %v913 = vshrl.u32 %v912, 7
      %v914 = vsub.s32 0, %v913
      %v915 = vrot.slane %v896, %v914
      %v917 = vmul.f32 %v910, %v915
      %v919 = vlaneseq
      %v920 = vshrl.u32 %v919, 7
      %v921 = vsub.s32 0, %v920
      %v922 = vrot.slane %v897, %v921
      %v924 = vadd.f32 %v917, %v922
      %925 = vst.msk [vmem:[%s470] sm:$0xff] %vm686, %v924
      %p926 = scmp.lt.s32.totalorder %s27, 1
      %s927 = scalar_select %p926, %s27, 1
      %p928 = scmp.lt.s32.totalorder %s28, 0
      %s929 = scalar_select %p928, %s28, 0
      %s930 = sadd.s32 %s929, %s927
      %s931 = smul.addr %s930, 8
      %s932 = scalar_lea.vmem %s12, %s931
      // Predicated region
      $region69: #{encoder_forward.5} parent=67 // pred_check
        %p933 = pneg %p321
      $region70: #{encoder_forward.5} parent=67 // pred_check_branch
        %935 = sbr.rel (%p933) target = $region72
      $region71: #{encoder_forward.5} parent=67 // pred_region
        _
      $region72: #{encoder_forward.5} parent=67 // pred_fallthru
        _
    $region68: #{encoder_forward.5} parent=5 // pred_fallthru
      _
    %p936 = scmp.le.s32.totalorder 2, %s18
    // Predicated region
    $region73: #{encoder_forward.5} parent=5 // pred_check
      %p937 = pneg %p936
    $region74: #{encoder_forward.5} parent=5 // pred_check_branch
      %939 = sbr.rel (%p937) target = $region76
    $region75: #{encoder_forward.5} parent=5 // pred_region
      %s940 = ssub.s32 %s18, 2
      // Predicated region
      $region77: #{encoder_forward.5} parent=75 // pred_check
        %p941 = pneg %p327
      $region78: #{encoder_forward.5} parent=75 // pred_check_branch
        %943 = sbr.rel (%p941) target = $region80
      $region79: #{encoder_forward.5} parent=75 // pred_region
        %p944 = scmp.lt.s32.totalorder %s29, 1
        %s945 = scalar_select %p944, %s29, 1
        %p946 = scmp.lt.s32.totalorder %s30, 0
        %s947 = scalar_select %p946, %s30, 0
        %s948 = sadd.s32 %s947, %s945
        %s949 = smul.addr %s948, 8
        %s950 = scalar_lea.vmem %s12, %s949
      $region80: #{encoder_forward.5} parent=75 // pred_fallthru
        _
    $region76: #{encoder_forward.5} parent=5 // pred_fallthru
      _
  $region6: #{encoder_forward.5} parent=0 // loop_footer
    %s22 = sadd.s32 1, %s18
  $region7: #{encoder_forward.5} parent=0 // loop_footer_branch
    %17 = sbr.rel target = $region3
  $region8: #{encoder_forward.5} parent=0 // loop_exit
    _

// kernel: encoder_forward.4
$region0: #{encoder_forward.4}
  #allocation0 [shape = 'u32[]', space=smem, size = 0x4, offset = 0x4, fixed_abs, tag = 'smem constant byte address 0x4 - core index']
  #allocation1 [shape = 'u32[144,128]{1,0:T(1,128)}', space=vmem, size = 0x12000, scoped, tag = 'internal scratch']
  %s0 = inlined_call_operand.vmem [shape: f32[2,8,32], index: 0, kind: input, shape index: {}]
  %s1 = inlined_call_operand.vmem [shape: bf16[4,32,8], index: 1, kind: input, shape index: {}]
  %s2 = inlined_call_operand.vmem [shape: f32[4,1,8], index: 2, kind: input, shape index: {}]
  %s3 = inlined_call_operand.vmem [shape: bf16[4,32,8], index: 3, kind: input, shape index: {}]
  %s4 = inlined_call_operand.vmem [shape: f32[4,1,8], index: 4, kind: input, shape index: {}]
  %s5 = inlined_call_operand.vmem [shape: bf16[4,32,8], index: 5, kind: input, shape index: {}]
  %s6 = inlined_call_operand.vmem [shape: f32[4,1,8], index: 6, kind: input, shape index: {}]
  %s7 = inlined_call_operand.vmem [shape: bf16[2,4,8,8], index: 7, kind: output, shape index: {0}]
  %s8 = inlined_call_operand.hbm [shape: f32[2,4,8,8], index: 8, kind: output, shape index: {1}]
  %9 = xla_tuple %s7, %s8
  %s10 = sld [smem:[#allocation0]]
  $region69: #{encoder_forward.4} parent=0
    _
  %s12 = ssub.s32 1, %s10
  %s13 = scalar_select 0, %s12, %s10
  $region1: #{encoder_forward.4} parent=0
    #allocation2 [shape = 'u8[8192]{0}', space=vmem, size = 0x2000, scoped, tag = 'output window, operand 1']
    #allocation3 [shape = 's32[2]{0}', space=sflag, size = 0x8, scoped, tag = 'scoped memory for encoder_forward.4']
    %14 = vsyncpa [#allocation3], 0
    %s15 = scalar_lea.sflag [#allocation3], 1
    %16 = vsyncpa %s15, 0
    loop: start=0, step=1, limit=10
    $region2: #{encoder_forward.4} parent=1 // loop_pre_header
      _
    $region3: #{encoder_forward.4} parent=1 // loop_header
      %s18 = sphi 0, %s22
      %p19 = scmp.ge.s32.totalorder %s18, 10
      %s25 = sphi 0, %s37
      %s26 = sphi 0, %s33
      %s27 = sphi 0, %s25
      %s28 = sphi 0, %s26
      %s29 = sphi 0, %s27
      %s30 = sphi 0, %s28
      %s40 = sphi 0, %s42
      %s43 = sphi 0, %s40
      %s44 = sphi 0, %s43
      %s60 = sphi 0, %s44
      %s66 = sphi 0, %s68
      %s69 = sphi 0, %s66
      %s70 = sphi 0, %s69
      %s86 = sphi 0, %s70
      %s92 = sphi 0, %s94
      %s95 = sphi 0, %s92
      %s96 = sphi 0, %s95
      %s112 = sphi 0, %s96
      %s118 = sphi 0, %s120
      %s121 = sphi 0, %s118
      %s122 = sphi 0, %s121
      %s138 = sphi 0, %s122
      %s144 = sphi 0, %s146
      %s147 = sphi 0, %s144
      %s148 = sphi 0, %s147
      %s164 = sphi 0, %s148
      %s170 = sphi 0, %s172
      %s173 = sphi 0, %s170
      %s174 = sphi 0, %s173
      %s190 = sphi 0, %s174
      %s196 = sphi 0, %s198
      %s199 = sphi 0, %s196
      %s200 = sphi 0, %s199
      %s216 = sphi 0, %s200
      %s224 = sphi 0, %s226
      %s227 = sphi 0, %s224
      %s228 = sphi 0, %s227
      %s244 = sphi 0, %s228
      %s252 = sphi 0, %s254
      %s255 = sphi 0, %s252
      %s256 = sphi 0, %s255
      %s272 = sphi 0, %s256
    $region4: #{encoder_forward.4} parent=1 // loop_header_branch
      %21 = sbr.rel (%p19) target = $region8
    $region5: #{encoder_forward.4} parent=1 // loop_body
      %s23 = ssub.s32 %s18, 1
      %s24 = ssub.s32 %s18, 2
      %s31 = sadd.s32 1, %s26
      %p32 = scmp.ge.s32.totalorder %s31, 4
      %s33 = scalar_select %p32, 0, %s31
      %s34 = sadd.s32 1, %s25
      %s35 = scalar_select %p32, %s34, %s25
      %p36 = scmp.ge.s32.totalorder %s35, 2
      %s37 = scalar_select %p36, 0, %s35
      %s38 = ssub.s32 %s25, %s37
      %p39 = scmp.eq.s32.totalorder %s38, 0
      %s41 = sadd.s32 %s40, 1
      %s42 = scalar_select %p39, %s40, %s41
      %p45 = pneg %p39
      %p46 = scmp.eq.s32.totalorder %s18, 7
      %p47 = por %p45, %p46
      %p48 = scmp.ne.s32.totalorder %s40, %s43
      %p49 = scmp.eq.s32.totalorder %s18, 0
      %p50 = por %p48, %p49
      %p51 = scmp.ne.s32.totalorder %s40, %s43
      %p52 = scmp.eq.s32.totalorder %s23, 7
      %p53 = por %p51, %p52
      %p54 = scmp.ne.s32.totalorder %s43, %s44
      %p55 = scmp.eq.s32.totalorder %s23, 0
      %p56 = por %p54, %p55
      %p57 = scmp.ne.s32.totalorder %s43, %s44
      %p58 = scmp.eq.s32.totalorder %s24, 7
      %p59 = por %p57, %p58
      %p61 = scmp.ne.s32.totalorder %s44, %s60
      %p62 = scmp.eq.s32.totalorder %s24, 0
      %p63 = por %p61, %p62
      %s64 = ssub.s32 %s26, %s33
      %p65 = scmp.eq.s32.totalorder %s64, 0
      %s67 = sadd.s32 %s66, 1
      %s68 = scalar_select %p65, %s66, %s67
      %p71 = pneg %p65
      %p72 = scmp.eq.s32.totalorder %s18, 7
      %p73 = por %p71, %p72
      %p74 = scmp.ne.s32.totalorder %s66, %s69
      %p75 = scmp.eq.s32.totalorder %s18, 0
      %p76 = por %p74, %p75
      %p77 = scmp.ne.s32.totalorder %s66, %s69
      %p78 = scmp.eq.s32.totalorder %s23, 7
      %p79 = por %p77, %p78
      %p80 = scmp.ne.s32.totalorder %s69, %s70
      %p81 = scmp.eq.s32.totalorder %s23, 0
      %p82 = por %p80, %p81
      %p83 = scmp.ne.s32.totalorder %s69, %s70
      %p84 = scmp.eq.s32.totalorder %s24, 7
      %p85 = por %p83, %p84
      %p87 = scmp.ne.s32.totalorder %s70, %s86
      %p88 = scmp.eq.s32.totalorder %s24, 0
      %p89 = por %p87, %p88
      %s90 = ssub.s32 %s26, %s33
      %p91 = scmp.eq.s32.totalorder %s90, 0
      %s93 = sadd.s32 %s92, 1
      %s94 = scalar_select %p91, %s92, %s93
      %p97 = pneg %p91
      %p98 = scmp.eq.s32.totalorder %s18, 7
      %p99 = por %p97, %p98
      %p100 = scmp.ne.s32.totalorder %s92, %s95
      %p101 = scmp.eq.s32.totalorder %s18, 0
      %p102 = por %p100, %p101
      %p103 = scmp.ne.s32.totalorder %s92, %s95
      %p104 = scmp.eq.s32.totalorder %s23, 7
      %p105 = por %p103, %p104
      %p106 = scmp.ne.s32.totalorder %s95, %s96
      %p107 = scmp.eq.s32.totalorder %s23, 0
      %p108 = por %p106, %p107
      %p109 = scmp.ne.s32.totalorder %s95, %s96
      %p110 = scmp.eq.s32.totalorder %s24, 7
      %p111 = por %p109, %p110
      %p113 = scmp.ne.s32.totalorder %s96, %s112
      %p114 = scmp.eq.s32.totalorder %s24, 0
      %p115 = por %p113, %p114
      %s116 = ssub.s32 %s26, %s33
      %p117 = scmp.eq.s32.totalorder %s116, 0
      %s119 = sadd.s32 %s118, 1
      %s120 = scalar_select %p117, %s118, %s119
      %p123 = pneg %p117
      %p124 = scmp.eq.s32.totalorder %s18, 7
      %p125 = por %p123, %p124
      %p126 = scmp.ne.s32.totalorder %s118, %s121
      %p127 = scmp.eq.s32.totalorder %s18, 0
      %p128 = por %p126, %p127
      %p129 = scmp.ne.s32.totalorder %s118, %s121
      %p130 = scmp.eq.s32.totalorder %s23, 7
      %p131 = por %p129, %p130
      %p132 = scmp.ne.s32.totalorder %s121, %s122
      %p133 = scmp.eq.s32.totalorder %s23, 0
      %p134 = por %p132, %p133
      %p135 = scmp.ne.s32.totalorder %s121, %s122
      %p136 = scmp.eq.s32.totalorder %s24, 7
      %p137 = por %p135, %p136
      %p139 = scmp.ne.s32.totalorder %s122, %s138
      %p140 = scmp.eq.s32.totalorder %s24, 0
      %p141 = por %p139, %p140
      %s142 = ssub.s32 %s26, %s33
      %p143 = scmp.eq.s32.totalorder %s142, 0
      %s145 = sadd.s32 %s144, 1
      %s146 = scalar_select %p143, %s144, %s145
      %p149 = pneg %p143
      %p150 = scmp.eq.s32.totalorder %s18, 7
      %p151 = por %p149, %p150
      %p152 = scmp.ne.s32.totalorder %s144, %s147
      %p153 = scmp.eq.s32.totalorder %s18, 0
      %p154 = por %p152, %p153
      %p155 = scmp.ne.s32.totalorder %s144, %s147
      %p156 = scmp.eq.s32.totalorder %s23, 7
      %p157 = por %p155, %p156
      %p158 = scmp.ne.s32.totalorder %s147, %s148
      %p159 = scmp.eq.s32.totalorder %s23, 0
      %p160 = por %p158, %p159
      %p161 = scmp.ne.s32.totalorder %s147, %s148
      %p162 = scmp.eq.s32.totalorder %s24, 7
      %p163 = por %p161, %p162
      %p165 = scmp.ne.s32.totalorder %s148, %s164
      %p166 = scmp.eq.s32.totalorder %s24, 0
      %p167 = por %p165, %p166
      %s168 = ssub.s32 %s26, %s33
      %p169 = scmp.eq.s32.totalorder %s168, 0
      %s171 = sadd.s32 %s170, 1
      %s172 = scalar_select %p169, %s170, %s171
      %p175 = pneg %p169
      %p176 = scmp.eq.s32.totalorder %s18, 7
      %p177 = por %p175, %p176
      %p178 = scmp.ne.s32.totalorder %s170, %s173
      %p179 = scmp.eq.s32.totalorder %s18, 0
      %p180 = por %p178, %p179
      %p181 = scmp.ne.s32.totalorder %s170, %s173
      %p182 = scmp.eq.s32.totalorder %s23, 7
      %p183 = por %p181, %p182
      %p184 = scmp.ne.s32.totalorder %s173, %s174
      %p185 = scmp.eq.s32.totalorder %s23, 0
      %p186 = por %p184, %p185
      %p187 = scmp.ne.s32.totalorder %s173, %s174
      %p188 = scmp.eq.s32.totalorder %s24, 7
      %p189 = por %p187, %p188
      %p191 = scmp.ne.s32.totalorder %s174, %s190
      %p192 = scmp.eq.s32.totalorder %s24, 0
      %p193 = por %p191, %p192
      %s194 = ssub.s32 %s26, %s33
      %p195 = scmp.eq.s32.totalorder %s194, 0
      %s197 = sadd.s32 %s196, 1
      %s198 = scalar_select %p195, %s196, %s197
      %p201 = pneg %p195
      %p202 = scmp.eq.s32.totalorder %s18, 7
      %p203 = por %p201, %p202
      %p204 = scmp.ne.s32.totalorder %s196, %s199
      %p205 = scmp.eq.s32.totalorder %s18, 0
      %p206 = por %p204, %p205
      %p207 = scmp.ne.s32.totalorder %s196, %s199
      %p208 = scmp.eq.s32.totalorder %s23, 7
      %p209 = por %p207, %p208
      %p210 = scmp.ne.s32.totalorder %s199, %s200
      %p211 = scmp.eq.s32.totalorder %s23, 0
      %p212 = por %p210, %p211
      %p213 = scmp.ne.s32.totalorder %s199, %s200
      %p214 = scmp.eq.s32.totalorder %s24, 7
      %p215 = por %p213, %p214
      %p217 = scmp.ne.s32.totalorder %s200, %s216
      %p218 = scmp.eq.s32.totalorder %s24, 0
      %p219 = por %p217, %p218
      %s220 = ssub.s32 %s25, %s37
      %s221 = ssub.s32 %s26, %s33
      %s222 = sor.u32 %s220, %s221
      %p223 = scmp.eq.s32.totalorder %s222, 0
      %s225 = sadd.s32 %s224, 1
      %s226 = scalar_select %p223, %s224, %s225
      %p229 = pneg %p223
      %p230 = scmp.eq.s32.totalorder %s18, 7
      %p231 = por %p229, %p230
      %p232 = scmp.ne.s32.totalorder %s224, %s227
      %p233 = scmp.eq.s32.totalorder %s18, 0
      %p234 = por %p232, %p233
      %p235 = scmp.ne.s32.totalorder %s224, %s227
      %p236 = scmp.eq.s32.totalorder %s23, 7
      %p237 = por %p235, %p236
      %p238 = scmp.ne.s32.totalorder %s227, %s228
      %p239 = scmp.eq.s32.totalorder %s23, 0
      %p240 = por %p238, %p239
      %p241 = scmp.ne.s32.totalorder %s227, %s228
      %p242 = scmp.eq.s32.totalorder %s24, 7
      %p243 = por %p241, %p242
      %p245 = scmp.ne.s32.totalorder %s228, %s244
      %p246 = scmp.eq.s32.totalorder %s24, 0
      %p247 = por %p245, %p246
      %s248 = ssub.s32 %s25, %s37
      %s249 = ssub.s32 %s26, %s33
      %s250 = sor.u32 %s248, %s249
      %p251 = scmp.eq.s32.totalorder %s250, 0
      %s253 = sadd.s32 %s252, 1
      %s254 = scalar_select %p251, %s252, %s253
      %p257 = pneg %p251
      %p258 = scmp.eq.s32.totalorder %s18, 7
      %p259 = por %p257, %p258
      %p260 = scmp.ne.s32.totalorder %s252, %s255
      %p261 = scmp.eq.s32.totalorder %s18, 0
      %p262 = por %p260, %p261
      %p263 = scmp.ne.s32.totalorder %s252, %s255
      %p264 = scmp.eq.s32.totalorder %s23, 7
      %p265 = por %p263, %p264
      %p266 = scmp.ne.s32.totalorder %s255, %s256
      %p267 = scmp.eq.s32.totalorder %s23, 0
      %p268 = por %p266, %p267
      %p269 = scmp.ne.s32.totalorder %s255, %s256
      %p270 = scmp.eq.s32.totalorder %s24, 7
      %p271 = por %p269, %p270
      %p273 = scmp.ne.s32.totalorder %s256, %s272
      %p274 = scmp.eq.s32.totalorder %s24, 0
      %p275 = por %p273, %p274
      %p276 = scmp.le.s32.totalorder 1, %s18
      %p277 = scmp.lt.s32.totalorder %s18, 9
      %p278 = pnand %p276, %p277
      %p279 = pneg %p278
      // Predicated region
      $region9: #{encoder_forward.4} parent=5 // pred_check
        _
      $region10: #{encoder_forward.4} parent=5 // pred_check_branch
        %281 = sbr.rel (%p278) target = $region12
      $region11: #{encoder_forward.4} parent=5 // pred_region
        %s282 = ssub.s32 %s18, 1
      $region12: #{encoder_forward.4} parent=5 // pred_fallthru
        _
      %p283 = scmp.lt.s32.totalorder %s18, 8
      // Predicated region
      $region13: #{encoder_forward.4} parent=5 // pred_check
        %p284 = pneg %p283
      $region14: #{encoder_forward.4} parent=5 // pred_check_branch
        %286 = sbr.rel (%p284) target = $region16
      $region15: #{encoder_forward.4} parent=5 // pred_region
        // Predicated region
        $region17: #{encoder_forward.4} parent=15 // pred_check
          %p287 = pneg %p50
        $region18: #{encoder_forward.4} parent=15 // pred_check_branch
          %289 = sbr.rel (%p287) target = $region20
        $region19: #{encoder_forward.4} parent=15 // pred_region
          %p290 = scmp.lt.s32.totalorder %s25, 1
          %s291 = scalar_select %p290, %s25, 1
          %s292 = smul.addr %s291, 8
          %s293 = scalar_lea.vmem %s0, %s292
        $region20: #{encoder_forward.4} parent=15 // pred_fallthru
          _
        // Predicated region
        $region21: #{encoder_forward.4} parent=15 // pred_check
          %p294 = pneg %p76
        $region22: #{encoder_forward.4} parent=15 // pred_check_branch
          %296 = sbr.rel (%p294) target = $region24
        $region23: #{encoder_forward.4} parent=15 // pred_region
          %p297 = scmp.lt.s32.totalorder %s26, 3
          %s298 = scalar_select %p297, %s26, 3
          %s299 = smul.addr %s298, 4
          %s300 = smul.addr %s299, 4
          %s301 = scalar_lea.vmem %s1, %s300
        $region24: #{encoder_forward.4} parent=15 // pred_fallthru
          _
        // Predicated region
        $region25: #{encoder_forward.4} parent=15 // pred_check
          %p302 = pneg %p102
        $region26: #{encoder_forward.4} parent=15 // pred_check_branch
          %304 = sbr.rel (%p302) target = $region28
        $region27: #{encoder_forward.4} parent=15 // pred_region
          %p305 = scmp.lt.s32.totalorder %s26, 3
          %s306 = scalar_select %p305, %s26, 3
          %s307 = scalar_lea.vmem %s2, %s306
        $region28: #{encoder_forward.4} parent=15 // pred_fallthru
          _
        // Predicated region
        $region29: #{encoder_forward.4} parent=15 // pred_check
          %p308 = pneg %p128
        $region30: #{encoder_forward.4} parent=15 // pred_check_branch
          %310 = sbr.rel (%p308) target = $region32
        $region31: #{encoder_forward.4} parent=15 // pred_region
          %p311 = scmp.lt.s32.totalorder %s26, 3
          %s312 = scalar_select %p311, %s26, 3
          %s313 = smul.addr %s312, 4
          %s314 = smul.addr %s313, 4
          %s315 = scalar_lea.vmem %s3, %s314
        $region32: #{encoder_forward.4} parent=15 // pred_fallthru
          _
        // Predicated region
        $region33: #{encoder_forward.4} parent=15 // pred_check
          %p316 = pneg %p154
        $region34: #{encoder_forward.4} parent=15 // pred_check_branch
          %318 = sbr.rel (%p316) target = $region36
        $region35: #{encoder_forward.4} parent=15 // pred_region
          %p319 = scmp.lt.s32.totalorder %s26, 3
          %s320 = scalar_select %p319, %s26, 3
          %s321 = scalar_lea.vmem %s4, %s320
        $region36: #{encoder_forward.4} parent=15 // pred_fallthru
          _
        // Predicated region
        $region37: #{encoder_forward.4} parent=15 // pred_check
          %p322 = pneg %p180
        $region38: #{encoder_forward.4} parent=15 // pred_check_branch
          %324 = sbr.rel (%p322) target = $region40
        $region39: #{encoder_forward.4} parent=15 // pred_region
          %p325 = scmp.lt.s32.totalorder %s26, 3
          %s326 = scalar_select %p325, %s26, 3
          %s327 = smul.addr %s326, 4
          %s328 = smul.addr %s327, 4
          %s329 = scalar_lea.vmem %s5, %s328
        $region40: #{encoder_forward.4} parent=15 // pred_fallthru
          _
        // Predicated region
        $region41: #{encoder_forward.4} parent=15 // pred_check
          %p330 = pneg %p206
        $region42: #{encoder_forward.4} parent=15 // pred_check_branch
          %332 = sbr.rel (%p330) target = $region44
        $region43: #{encoder_forward.4} parent=15 // pred_region
          %p333 = scmp.lt.s32.totalorder %s26, 3
          %s334 = scalar_select %p333, %s26, 3
          %s335 = scalar_lea.vmem %s6, %s334
        $region44: #{encoder_forward.4} parent=15 // pred_fallthru
          _
      $region16: #{encoder_forward.4} parent=5 // pred_fallthru
        _
      %p336 = scmp.le.s32.totalorder 1, %s18
      %p337 = scmp.lt.s32.totalorder %s18, 9
      %p338 = pnand %p336, %p337
      %p339 = pneg %p338
      // Predicated region
      $region45: #{encoder_forward.4} parent=5 // pred_check
        _
      $region46: #{encoder_forward.4} parent=5 // pred_check_branch
        %341 = sbr.rel (%p338) target = $region48
      $region47: #{encoder_forward.4} parent=5 // pred_region
        %s342 = ssub.s32 %s18, 1
        %p343 = scmp.lt.s32.totalorder %s27, 1
        %s344 = scalar_select %p343, %s27, 1
        %s345 = smul.addr %s344, 8
        %s346 = scalar_lea.vmem %s0, %s345
        %p347 = pneg %p56
        %p348 = pneg %p53
        %p349 = scmp.lt.s32.totalorder %s28, 3
        %s350 = scalar_select %p349, %s28, 3
        %s351 = smul.addr %s350, 4
        %s352 = smul.addr %s351, 4
        %s353 = scalar_lea.vmem %s1, %s352
        %p354 = pneg %p82
        %p355 = pneg %p79
        %p356 = scmp.lt.s32.totalorder %s28, 3
        %s357 = scalar_select %p356, %s28, 3
        %s358 = scalar_lea.vmem %s2, %s357
        %p359 = pneg %p108
        %p360 = pneg %p105
        %p361 = scmp.lt.s32.totalorder %s28, 3
        %s362 = scalar_select %p361, %s28, 3
        %s363 = smul.addr %s362, 4
        %s364 = smul.addr %s363, 4
        %s365 = scalar_lea.vmem %s3, %s364
        %p366 = pneg %p134
        %p367 = pneg %p131
        %p368 = scmp.lt.s32.totalorder %s28, 3
        %s369 = scalar_select %p368, %s28, 3
        %s370 = scalar_lea.vmem %s4, %s369
        %p371 = pneg %p160
        %p372 = pneg %p157
        %p373 = scmp.lt.s32.totalorder %s28, 3
        %s374 = scalar_select %p373, %s28, 3
        %s375 = smul.addr %s374, 4
        %s376 = smul.addr %s375, 4
        %s377 = scalar_lea.vmem %s5, %s376
        %p378 = pneg %p186
        %p379 = pneg %p183
        %p380 = scmp.lt.s32.totalorder %s28, 3
        %s381 = scalar_select %p380, %s28, 3
        %s382 = scalar_lea.vmem %s6, %s381
        %p383 = pneg %p212
        %p384 = pneg %p209
        %p385 = pneg %p240
        %p386 = pneg %p237
        %p387 = scmp.lt.s32.totalorder %s27, 1
        %s388 = scalar_select %p387, %s27, 1
        %p389 = scmp.lt.s32.totalorder %s28, 3
        %s390 = scalar_select %p389, %s28, 3
        %s391 = smul.addr %s388, 4
        %s392 = sadd.s32 %s390, %s391
        %s393 = smul.addr %s392, 4
        %s394 = scalar_lea.vmem %s7, %s393
        %p395 = pneg %p268
        %p396 = pneg %p265
        %s397 = sand.u32 %s255, 1
        %s398 = scalar_lea.sflag [#allocation3], %s397
        %s399 = sand.u32 %s255, 1
        %s400 = smul.addr %s399, 8
        %s401 = scalar_lea.vmem [#allocation2], %s400
        %p402 = scmp.lt.s32.totalorder %s27, 1
        %s403 = scalar_select %p402, %s27, 1
        %s404 = smul.addr %s403, 8
        %s405 = scalar_lea.vmem %s0, %s404
        %p406 = scmp.lt.s32.totalorder %s28, 3
        %s407 = scalar_select %p406, %s28, 3
        %s408 = smul.addr %s407, 4
        %s409 = smul.addr %s408, 4
        %s410 = scalar_lea.vmem %s1, %s409
        %p411 = scmp.lt.s32.totalorder %s28, 3
        %s412 = scalar_select %p411, %s28, 3
        %s413 = scalar_lea.vmem %s2, %s412
        %p414 = scmp.lt.s32.totalorder %s28, 3
        %s415 = scalar_select %p414, %s28, 3
        %s416 = smul.addr %s415, 4
        %s417 = smul.addr %s416, 4
        %s418 = scalar_lea.vmem %s3, %s417
        %p419 = scmp.lt.s32.totalorder %s28, 3
        %s420 = scalar_select %p419, %s28, 3
        %s421 = scalar_lea.vmem %s4, %s420
        %p422 = scmp.lt.s32.totalorder %s28, 3
        %s423 = scalar_select %p422, %s28, 3
        %s424 = smul.addr %s423, 4
        %s425 = smul.addr %s424, 4
        %s426 = scalar_lea.vmem %s5, %s425
        %p427 = scmp.lt.s32.totalorder %s28, 3
        %s428 = scalar_select %p427, %s28, 3
        %s429 = scalar_lea.vmem %s6, %s428
        %p430 = scmp.lt.s32.totalorder %s27, 1
        %s431 = scalar_select %p430, %s27, 1
        %p432 = scmp.lt.s32.totalorder %s28, 3
        %s433 = scalar_select %p432, %s28, 3
        %s434 = smul.addr %s431, 4
        %s435 = sadd.s32 %s433, %s434
        %s436 = smul.addr %s435, 4
        %s437 = scalar_lea.vmem %s7, %s436
        %v439 = vld [vmem:[%s405] sm:$0xff]
        %v440 = vpack.c.bf16 %v439, %v439
        %v441 = vld [vmem:[%s410] sm:$0xf]
        %v442 = vld [vmem:[%s410 + $0x4] sm:$0xf]
        %v443 = vld [vmem:[%s410 + $0x8] sm:$0xf]
        %v444 = vld [vmem:[%s410 + $0xc] sm:$0xf]
        %v445 = vld [vmem:[%s413] sm:$0x1]
        %v447 = vlaneseq
        %v448 = vshrl.u32 %v447, 7
        %v449 = vsub.s32 0, %v448
        %v450 = vrot.slane %v445, %v449
        %v456 = vunpack.c.l.b16 %v441
        %v457 = vunpack.c.l.b16 %v442
        %v458 = vunpack.c.l.b16 %v443
        %v459 = vunpack.c.l.b16 %v444
        %v460 = vpack.c.b16 %v457, %v456
        %v461 = vpack.c.b16 %v459, %v458
        %vm464 = vcmask 261120
        %v466 = vsel %vm464, %v440, 0
        %468 = vmatprep.subr.bf16.mxu0 0
        %469 = vmatpush1.bf16.msra.mxu0 0
        %470 = vmatprep.subr.bf16.mxu0 0
        %471 = vmatpush1.bf16.msra.mxu0 0
        %472 = vmatprep.subr.bf16.mxu0 0
        %473 = vmatpush1.bf16.msra.mxu0 0
        %474 = vmatprep.subr.bf16.mxu0 0
        %475 = vmatpush1.bf16.msra.mxu0 0
        %476 = vmatprep.subr.bf16.mxu0 0
        %477 = vmatpush1.bf16.msra.mxu0 0
        %478 = vmatprep.subr.bf16.mxu0 0
        %479 = vmatpush1.bf16.msra.mxu0 0
        %480 = vmatprep.subr.bf16.mxu0 0
        %481 = vmatpush1.bf16.msra.mxu0 %v461
        %482 = vmatprep.subr.bf16.mxu0 0
        %483 = vmatpush1.bf16.msra.mxu0 %v460
        %484 = vmatprep.subr.bf16.mxu0 0
        %485 = vmatpush2.bf16.msra.mxu0 0
        %486 = vmatprep.subr.bf16.mxu0 0
        %487 = vmatpush2.bf16.msra.mxu0 0
        %488 = vmatprep.subr.bf16.mxu0 0
        %489 = vmatpush2.bf16.msra.mxu0 0
        %490 = vmatprep.subr.bf16.mxu0 0
        %491 = vmatpush2.bf16.msra.mxu0 0
        %492 = vmatprep.subr.bf16.mxu0 0
        %493 = vmatpush2.bf16.msra.mxu0 0
        %494 = vmatprep.subr.bf16.mxu0 0
        %495 = vmatpush2.bf16.msra.mxu0 0
        %496 = vmatprep.subr.bf16.mxu0 0
        %497 = vmatpush2.bf16.msra.mxu0 0
        %498 = vmatprep.subr.bf16.mxu0 0
        %499 = vmatpush2.bf16.msra.mxu0 0
        %500 = vmatprep.mubr.bf16.mxu0 0
        %501 = vmatmul.mubr.bf16.gmra.mxu0 %v466
        %v502 = vpop.f32.mrf.mxu0
        %v503 = vadd.f32 %v450, %v502
        %v504 = vpop.f32.mrf.mxu0
        %v505 = vpop.f32.mrf.mxu0
        %v506 = vpop.f32.mrf.mxu0
        %507 = vdwg.mxu0
        %v508 = vld [vmem:[%s418] sm:$0xf]
        %v509 = vld [vmem:[%s418 + $0x4] sm:$0xf]
        %v510 = vld [vmem:[%s418 + $0x8] sm:$0xf]
        %v511 = vld [vmem:[%s418 + $0xc] sm:$0xf]
        %v512 = vld [vmem:[%s421] sm:$0x1]
        %v514 = vlaneseq
        %v515 = vshrl.u32 %v514, 7
        %v516 = vsub.s32 0, %v515
        %v517 = vrot.slane %v512, %v516
        %v523 = vunpack.c.l.b16 %v508
        %v524 = vunpack.c.l.b16 %v509
        %v525 = vunpack.c.l.b16 %v510
        %v526 = vunpack.c.l.b16 %v511
        %v527 = vpack.c.b16 %v524, %v523
        %v528 = vpack.c.b16 %v526, %v525
        %531 = vmatprep.subr.bf16.mxu0 0
        %532 = vmatpush1.bf16.msra.mxu0 0
        %533 = vmatprep.subr.bf16.mxu0 0
        %534 = vmatpush1.bf16.msra.mxu0 0
        %535 = vmatprep.subr.bf16.mxu0 0
        %536 = vmatpush1.bf16.msra.mxu0 0
        %537 = vmatprep.subr.bf16.mxu0 0
        %538 = vmatpush1.bf16.msra.mxu0 0
        %539 = vmatprep.subr.bf16.mxu0 0
        %540 = vmatpush1.bf16.msra.mxu0 0
        %541 = vmatprep.subr.bf16.mxu0 0
        %542 = vmatpush1.bf16.msra.mxu0 0
        %543 = vmatprep.subr.bf16.mxu0 0
        %544 = vmatpush1.bf16.msra.mxu0 %v528
        %545 = vmatprep.subr.bf16.mxu0 0
        %546 = vmatpush1.bf16.msra.mxu0 %v527
        %547 = vmatprep.subr.bf16.mxu0 0
        %548 = vmatpush2.bf16.msra.mxu0 0
        %549 = vmatprep.subr.bf16.mxu0 0
        %550 = vmatpush2.bf16.msra.mxu0 0
        %551 = vmatprep.subr.bf16.mxu0 0
        %552 = vmatpush2.bf16.msra.mxu0 0
        %553 = vmatprep.subr.bf16.mxu0 0
        %554 = vmatpush2.bf16.msra.mxu0 0
        %555 = vmatprep.subr.bf16.mxu0 0
        %556 = vmatpush2.bf16.msra.mxu0 0
        %557 = vmatprep.subr.bf16.mxu0 0
        %558 = vmatpush2.bf16.msra.mxu0 0
        %559 = vmatprep.subr.bf16.mxu0 0
        %560 = vmatpush2.bf16.msra.mxu0 0
        %561 = vmatprep.subr.bf16.mxu0 0
        %562 = vmatpush2.bf16.msra.mxu0 0
        %563 = vmatprep.mubr.bf16.mxu0 0
        %564 = vmatmul.mubr.bf16.gmra.mxu0 %v466
        %v565 = vpop.f32.mrf.mxu0
        %v566 = vadd.f32 %v517, %v565
        %v567 = vpop.f32.mrf.mxu0
        %v568 = vpop.f32.mrf.mxu0
        %v569 = vpop.f32.mrf.mxu0
        %570 = vdwg.mxu0
        %v571 = vld [vmem:[%s426] sm:$0xf]
        %v572 = vld [vmem:[%s426 + $0x4] sm:$0xf]
        %v573 = vld [vmem:[%s426 + $0x8] sm:$0xf]
        %v574 = vld [vmem:[%s426 + $0xc] sm:$0xf]
        %v575 = vld [vmem:[%s429] sm:$0x1]
        %v577 = vlaneseq
        %v578 = vshrl.u32 %v577, 7
        %v579 = vsub.s32 0, %v578
        %v580 = vrot.slane %v575, %v579
        %v586 = vunpack.c.l.b16 %v571
        %v587 = vunpack.c.l.b16 %v572
        %v588 = vunpack.c.l.b16 %v573
        %v589 = vunpack.c.l.b16 %v574
        %v590 = vpack.c.b16 %v587, %v586
        %v591 = vpack.c.b16 %v589, %v588
        %594 = vmatprep.subr.bf16.mxu0 0
        %595 = vmatpush1.bf16.msra.mxu0 0
        %596 = vmatprep.subr.bf16.mxu0 0
        %597 = vmatpush1.bf16.msra.mxu0 0
        %598 = vmatprep.subr.bf16.mxu0 0
        %599 = vmatpush1.bf16.msra.mxu0 0
        %600 = vmatprep.subr.bf16.mxu0 0
        %601 = vmatpush1.bf16.msra.mxu0 0
        %602 = vmatprep.subr.bf16.mxu0 0
        %603 = vmatpush1.bf16.msra.mxu0 0
        %604 = vmatprep.subr.bf16.mxu0 0
        %605 = vmatpush1.bf16.msra.mxu0 0
        %606 = vmatprep.subr.bf16.mxu0 0
        %607 = vmatpush1.bf16.msra.mxu0 %v591
        %608 = vmatprep.subr.bf16.mxu0 0
        %609 = vmatpush1.bf16.msra.mxu0 %v590
        %610 = vmatprep.subr.bf16.mxu0 0
        %611 = vmatpush2.bf16.msra.mxu0 0
        %612 = vmatprep.subr.bf16.mxu0 0
        %613 = vmatpush2.bf16.msra.mxu0 0
        %614 = vmatprep.subr.bf16.mxu0 0
        %615 = vmatpush2.bf16.msra.mxu0 0
        %616 = vmatprep.subr.bf16.mxu0 0
        %617 = vmatpush2.bf16.msra.mxu0 0
        %618 = vmatprep.subr.bf16.mxu0 0
        %619 = vmatpush2.bf16.msra.mxu0 0
        %620 = vmatprep.subr.bf16.mxu0 0
        %621 = vmatpush2.bf16.msra.mxu0 0
        %622 = vmatprep.subr.bf16.mxu0 0
        %623 = vmatpush2.bf16.msra.mxu0 0
        %624 = vmatprep.subr.bf16.mxu0 0
        %625 = vmatpush2.bf16.msra.mxu0 0
        %626 = vmatprep.mubr.bf16.mxu0 0
        %627 = vmatmul.mubr.bf16.gmra.mxu0 %v466
        %v628 = vpop.f32.mrf.mxu0
        %v629 = vadd.f32 %v580, %v628
        %v630 = vpop.f32.mrf.mxu0
        %v631 = vpop.f32.mrf.mxu0
        %v632 = vpop.f32.mrf.mxu0
        %633 = vdwg.mxu0
        %v634 = vpack.c.bf16 %v503, %v503
        %v635 = vpack.c.bf16 %v566, %v566
        %vm636 = vcmask 64512
        %v638 = vsel %vm636, %v634, 0
        %v641 = vsel %vm636, %v635, 0
        %643 = vmatprep.subr.bf16.mxu0 0
        %644 = vmatpush1.bf16.xpose.msra.mxu0 0
        %645 = vmatprep.subr.bf16.mxu0 0
        %646 = vmatpush1.bf16.xpose.msra.mxu0 0
        %647 = vmatprep.subr.bf16.mxu0 0
        %648 = vmatpush1.bf16.xpose.msra.mxu0 0
        %649 = vmatprep.subr.bf16.mxu0 0
        %650 = vmatpush1.bf16.xpose.msra.mxu0 0
        %651 = vmatprep.subr.bf16.mxu0 0
        %652 = vmatpush1.bf16.xpose.msra.mxu0 0
        %653 = vmatprep.subr.bf16.mxu0 0
        %654 = vmatpush1.bf16.xpose.msra.mxu0 0
        %655 = vmatprep.subr.bf16.mxu0 0
        %656 = vmatpush1.bf16.xpose.msra.mxu0 0
        %657 = vmatprep.subr.bf16.mxu0 0
        %658 = vmatpush1.bf16.xpose.msra.mxu0 %v641
        %659 = vmatprep.subr.bf16.mxu0 0
        %660 = vmatpush2.bf16.xpose.msra.mxu0 0
        %661 = vmatprep.subr.bf16.mxu0 0
        %662 = vmatpush2.bf16.xpose.msra.mxu0 0
        %663 = vmatprep.subr.bf16.mxu0 0
        %664 = vmatpush2.bf16.xpose.msra.mxu0 0
        %665 = vmatprep.subr.bf16.mxu0 0
        %666 = vmatpush2.bf16.xpose.msra.mxu0 0
        %667 = vmatprep.subr.bf16.mxu0 0
        %668 = vmatpush2.bf16.xpose.msra.mxu0 0
        %669 = vmatprep.subr.bf16.mxu0 0
        %670 = vmatpush2.bf16.xpose.msra.mxu0 0
        %671 = vmatprep.subr.bf16.mxu0 0
        %672 = vmatpush2.bf16.xpose.msra.mxu0 0
        %673 = vmatprep.subr.bf16.mxu0 0
        %674 = vmatpush2.bf16.xpose.msra.mxu0 0
        %675 = vmatprep.mubr.bf16.mxu0 0
        %676 = vmatmul.mubr.bf16.gmra.mxu0 %v638
        %v677 = vpop.f32.mrf.mxu0
        %v678 = vadd.f32 0.0, %v677
        %v679 = vpop.f32.mrf.mxu0
        %v680 = vpop.f32.mrf.mxu0
        %v681 = vpop.f32.mrf.mxu0
        %682 = vdwg.mxu0
        %v683 = vsel %vm636, %v678, -inf
        %684 = vmax.xlane.f32.xlu0 %v683
        %v685 = vpop.xlane.xlu0 %684
        %v686 = vsub.f32 %v678, %v685
        %v687 = vmul.f32 %v686, 1.442695
        %v688 = vpow.pop %v687
        %v689 = vsel %vm636, %v688, 0.0
        %690 = vadd.xlane.f32.xlu0 %v689
        %v691 = vpop.xlane.xlu0 %690
        %v692 = vrcp.pop %v691
        %v693 = vmul.f32 %v688, %v692
        %694 = vst.msk [vmem:[%s401] sm:$0xff] %vm636, %v693
        %v695 = vpack.c.bf16 %v693, %v693
        %v696 = vpack.c.bf16 %v629, %v629
        %v698 = vsel %vm636, %v695, 0
        %vm700 = vcmask 1043456
        %v702 = vsel %vm700, %v696, 0
        %704 = vmatprep.subr.bf16.mxu0 0
        %705 = vmatpush1.bf16.msra.mxu0 0
        %706 = vmatprep.subr.bf16.mxu0 0
        %707 = vmatpush1.bf16.msra.mxu0 0
        %708 = vmatprep.subr.bf16.mxu0 0
        %709 = vmatpush1.bf16.msra.mxu0 0
        %710 = vmatprep.subr.bf16.mxu0 0
        %711 = vmatpush1.bf16.msra.mxu0 0
        %712 = vmatprep.subr.bf16.mxu0 0
        %713 = vmatpush1.bf16.msra.mxu0 0
        %714 = vmatprep.subr.bf16.mxu0 0
        %715 = vmatpush1.bf16.msra.mxu0 0
        %716 = vmatprep.subr.bf16.mxu0 0
        %717 = vmatpush1.bf16.msra.mxu0 0
        %718 = vmatprep.subr.bf16.mxu0 0
        %719 = vmatpush1.bf16.msra.mxu0 %v702
        %720 = vmatprep.subr.bf16.mxu0 0
        %721 = vmatpush2.bf16.msra.mxu0 0
        %722 = vmatprep.subr.bf16.mxu0 0
        %723 = vmatpush2.bf16.msra.mxu0 0
        %724 = vmatprep.subr.bf16.mxu0 0
        %725 = vmatpush2.bf16.msra.mxu0 0
        %726 = vmatprep.subr.bf16.mxu0 0
        %727 = vmatpush2.bf16.msra.mxu0 0
        %728 = vmatprep.subr.bf16.mxu0 0
        %729 = vmatpush2.bf16.msra.mxu0 0
        %730 = vmatprep.subr.bf16.mxu0 0
        %731 = vmatpush2.bf16.msra.mxu0 0
        %732 = vmatprep.subr.bf16.mxu0 0
        %733 = vmatpush2.bf16.msra.mxu0 0
        %734 = vmatprep.subr.bf16.mxu0 0
        %735 = vmatpush2.bf16.msra.mxu0 0
        %736 = vmatprep.mubr.bf16.mxu0 0
        %737 = vmatmul.mubr.bf16.gmra.mxu0 %v698
        %v738 = vpop.f32.mrf.mxu0
        %v739 = vadd.f32 0.0, %v738
        %v740 = vpop.f32.mrf.mxu0
        %v741 = vpop.f32.mrf.mxu0
        %v742 = vpop.f32.mrf.mxu0
        %743 = vdwg.mxu0
        %v744 = vpack.c.bf16 %v739, %v739
        %vm745 = vcmask 60416
        %746 = vst.msk [vmem:[%s437] sm:$0xf] %vm745, %v744
        %p747 = scmp.lt.s32.totalorder %s27, 1
        %s748 = scalar_select %p747, %s27, 1
        %p749 = scmp.lt.s32.totalorder %s28, 3
        %s750 = scalar_select %p749, %s28, 3
        %s751 = smul.addr %s748, 4
        %s752 = sadd.s32 %s750, %s751
        %s753 = smul.addr %s752, 4
        %s754 = scalar_lea.vmem %s7, %s753
        %s755 = sand.u32 %s255, 1
        %s756 = scalar_lea.sflag [#allocation3], %s755
        %s757 = sand.u32 %s255, 1
        %s758 = smul.addr %s757, 8
        %s759 = scalar_lea.vmem [#allocation2], %s758
        // Predicated region
        $region49: #{encoder_forward.4} parent=47 // pred_check
          %p760 = pneg %p237
        $region50: #{encoder_forward.4} parent=47 // pred_check_branch
          %762 = sbr.rel (%p760) target = $region52
        $region51: #{encoder_forward.4} parent=47 // pred_region
          _
        $region52: #{encoder_forward.4} parent=47 // pred_fallthru
          _
        // Predicated region
        $region53: #{encoder_forward.4} parent=47 // pred_check
          %p763 = pneg %p265
        $region54: #{encoder_forward.4} parent=47 // pred_check_branch
          %765 = sbr.rel (%p763) target = $region56
        $region55: #{encoder_forward.4} parent=47 // pred_region
          %s767 = ssub.s32 128, 128
          %768 = vsyncadd %s756, %s767
          %s769 = smul.addr %s27, 4
          %s770 = sadd.s32 %s28, %s769
          %s771 = smul.addr %s770, 128
          %s772 = scalar_lea.hbm %s8, %s771
          %s774 = sshll.u32 %s759, 4
          %s775 = int_to_ptr.vmem [resolvable:$true] %s774
          %777 = dma.vmem_to_hbm [thread:$0]  %s775, 128, %s772, %s756
        $region56: #{encoder_forward.4} parent=47 // pred_fallthru
          _
      $region48: #{encoder_forward.4} parent=5 // pred_fallthru
        _
      %p778 = scmp.le.s32.totalorder 2, %s18
      // Predicated region
      $region57: #{encoder_forward.4} parent=5 // pred_check
        %p779 = pneg %p778
      $region58: #{encoder_forward.4} parent=5 // pred_check_branch
        %781 = sbr.rel (%p779) target = $region60
      $region59: #{encoder_forward.4} parent=5 // pred_region
        %s782 = ssub.s32 %s18, 2
        // Predicated region
        $region61: #{encoder_forward.4} parent=59 // pred_check
          %p783 = pneg %p243
        $region62: #{encoder_forward.4} parent=59 // pred_check_branch
          %785 = sbr.rel (%p783) target = $region64
        $region63: #{encoder_forward.4} parent=59 // pred_region
          %p786 = scmp.lt.s32.totalorder %s29, 1
          %s787 = scalar_select %p786, %s29, 1
          %p788 = scmp.lt.s32.totalorder %s30, 3
          %s789 = scalar_select %p788, %s30, 3
          %s790 = smul.addr %s787, 4
          %s791 = sadd.s32 %s789, %s790
          %s792 = smul.addr %s791, 4
          %s793 = scalar_lea.vmem %s7, %s792
        $region64: #{encoder_forward.4} parent=59 // pred_fallthru
          _
        // Predicated region
        $region65: #{encoder_forward.4} parent=59 // pred_check
          %p794 = pneg %p271
        $region66: #{encoder_forward.4} parent=59 // pred_check_branch
          %796 = sbr.rel (%p794) target = $region68
        $region67: #{encoder_forward.4} parent=59 // pred_region
          %s797 = sand.u32 %s256, 1
          %s798 = scalar_lea.sflag [#allocation3], %s797
          %s799 = sand.u32 %s256, 1
          %s800 = smul.addr %s799, 8
          %s801 = scalar_lea.vmem [#allocation2], %s800
          %802 = dma.done %s798, 128
        $region68: #{encoder_forward.4} parent=59 // pred_fallthru
          _
      $region60: #{encoder_forward.4} parent=5 // pred_fallthru
        _
    $region6: #{encoder_forward.4} parent=1 // loop_footer
      %s22 = sadd.s32 1, %s18
    $region7: #{encoder_forward.4} parent=1 // loop_footer_branch
      %17 = sbr.rel target = $region3
    $region8: #{encoder_forward.4} parent=1 // loop_exit
      _
    %803 = vsyncpa [#allocation3], 1
    %s804 = scalar_lea.sflag [#allocation3], 1
    %805 = vsyncpa %s804, 1

// kernel: encoder_forward.7
$region0: #{encoder_forward.7}
  #allocation0 [shape = 'u32[]', space=smem, size = 0x4, offset = 0x4, fixed_abs, tag = 'smem constant byte address 0x4 - core index']
  #allocation1 [shape = 'u32[144,128]{1,0:T(1,128)}', space=vmem, size = 0x12000, scoped, tag = 'internal scratch']
  %s0 = inlined_call_operand.vmem [shape: bf16[2,4,8,8], index: 0, kind: input, shape index: {}]
  %s1 = inlined_call_operand.vmem [shape: f32[2,8,32], index: 1, kind: input, shape index: {}]
  %s2 = inlined_call_operand.vmem [shape: bf16[4,8,32], index: 2, kind: input, shape index: {}]
  %s3 = inlined_call_operand.vmem [shape: f32[1,32], index: 3, kind: input, shape index: {}]
  %s4 = inlined_call_operand.vmem [shape: f32[1,32], index: 4, kind: input, shape index: {}]
  %s5 = inlined_call_operand.vmem [shape: f32[1,32], index: 5, kind: input, shape index: {}]
  %s6 = inlined_call_operand.vmem [shape: bf16[32,128], index: 6, kind: input, shape index: {}]
  %s7 = inlined_call_operand.vmem [shape: f32[1,128], index: 7, kind: input, shape index: {}]
  %s8 = inlined_call_operand.vmem [shape: bf16[128,32], index: 8, kind: input, shape index: {}]
  %s9 = inlined_call_operand.vmem [shape: f32[1,32], index: 9, kind: input, shape index: {}]
  %s10 = inlined_call_operand.vmem [shape: f32[1,32], index: 10, kind: input, shape index: {}]
  %s11 = inlined_call_operand.vmem [shape: f32[1,32], index: 11, kind: input, shape index: {}]
  %s12 = inlined_call_operand.vmem [shape: f32[1,32], index: 12, kind: input, shape index: {}]
  %s13 = inlined_call_operand.vmem [shape: f32[1,32], index: 13, kind: input, shape index: {}]
  %s14 = inlined_call_operand.hbm [shape: f32[2,8,32], index: 14, kind: output, shape index: {}]
  %s15 = sld [smem:[#allocation0]]
  $region89: #{encoder_forward.7} parent=0
    _
  %s17 = ssub.s32 1, %s15
  %s18 = scalar_select 0, %s17, %s15
  $region1: #{encoder_forward.7} parent=0
    #allocation2 [shape = 'u8[8192]{0}', space=vmem, size = 0x2000, scoped, tag = 'output window, operand 0']
    #allocation3 [shape = 's32[2]{0}', space=sflag, size = 0x8, scoped, tag = 'scoped memory for encoder_forward.7']
    %19 = vsyncpa [#allocation3], 0
    %s20 = scalar_lea.sflag [#allocation3], 1
    %21 = vsyncpa %s20, 0
    loop: start=0, step=1, limit=4
    $region2: #{encoder_forward.7} parent=1 // loop_pre_header
      _
    $region3: #{encoder_forward.7} parent=1 // loop_header
      %s23 = sphi 0, %s27
      %p24 = scmp.ge.s32.totalorder %s23, 4
      %s30 = sphi 0, %s42
      %s31 = sphi 0, %s38
      %s32 = sphi 0, %s30
      %s33 = sphi 0, %s31
      %s34 = sphi 0, %s32
      %s35 = sphi 0, %s33
      %s47 = sphi 0, %s49
      %s50 = sphi 0, %s47
      %s51 = sphi 0, %s50
      %s67 = sphi 0, %s51
      %s75 = sphi 0, %s77
      %s78 = sphi 0, %s75
      %s79 = sphi 0, %s78
      %s95 = sphi 0, %s79
      %s99 = sphi 0, %s99
      %s101 = sphi 0, %s99
      %s102 = sphi 0, %s101
      %s116 = sphi 0, %s102
      %s120 = sphi 0, %s120
      %s122 = sphi 0, %s120
      %s123 = sphi 0, %s122
      %s137 = sphi 0, %s123
      %s141 = sphi 0, %s141
      %s143 = sphi 0, %s141
      %s144 = sphi 0, %s143
      %s158 = sphi 0, %s144
      %s162 = sphi 0, %s162
      %s164 = sphi 0, %s162
      %s165 = sphi 0, %s164
      %s179 = sphi 0, %s165
      %s183 = sphi 0, %s183
      %s185 = sphi 0, %s183
      %s186 = sphi 0, %s185
      %s200 = sphi 0, %s186
      %s204 = sphi 0, %s204
      %s206 = sphi 0, %s204
      %s207 = sphi 0, %s206
      %s221 = sphi 0, %s207
      %s225 = sphi 0, %s225
      %s227 = sphi 0, %s225
      %s228 = sphi 0, %s227
      %s242 = sphi 0, %s228
      %s246 = sphi 0, %s246
      %s248 = sphi 0, %s246
      %s249 = sphi 0, %s248
      %s263 = sphi 0, %s249
      %s267 = sphi 0, %s267
      %s269 = sphi 0, %s267
      %s270 = sphi 0, %s269
      %s284 = sphi 0, %s270
      %s288 = sphi 0, %s288
      %s290 = sphi 0, %s288
      %s291 = sphi 0, %s290
      %s305 = sphi 0, %s291
      %s309 = sphi 0, %s309
      %s311 = sphi 0, %s309
      %s312 = sphi 0, %s311
      %s326 = sphi 0, %s312
      %s330 = sphi 0, %s330
      %s332 = sphi 0, %s330
      %s333 = sphi 0, %s332
      %s347 = sphi 0, %s333
      %s355 = sphi 0, %s357
      %s358 = sphi 0, %s355
      %s359 = sphi 0, %s358
      %s375 = sphi 0, %s359
    $region4: #{encoder_forward.7} parent=1 // loop_header_branch
      %26 = sbr.rel (%p24) target = $region8
    $region5: #{encoder_forward.7} parent=1 // loop_body
      %s28 = ssub.s32 %s23, 1
      %s29 = ssub.s32 %s23, 2
      %s36 = sadd.s32 1, %s31
      %p37 = scmp.ge.s32.totalorder %s36, 1
      %s38 = scalar_select %p37, 0, %s36
      %s39 = sadd.s32 1, %s30
      %s40 = scalar_select %p37, %s39, %s30
      %p41 = scmp.ge.s32.totalorder %s40, 2
      %s42 = scalar_select %p41, 0, %s40
      %s43 = ssub.s32 %s30, %s42
      %s44 = ssub.s32 %s31, %s38
      %s45 = sor.u32 %s43, %s44
      %p46 = scmp.eq.s32.totalorder %s45, 0
      %s48 = sadd.s32 %s47, 1
      %s49 = scalar_select %p46, %s47, %s48
      %p52 = pneg %p46
      %p53 = scmp.eq.s32.totalorder %s23, 1
      %p54 = por %p52, %p53
      %p55 = scmp.ne.s32.totalorder %s47, %s50
      %p56 = scmp.eq.s32.totalorder %s23, 0
      %p57 = por %p55, %p56
      %p58 = scmp.ne.s32.totalorder %s47, %s50
      %p59 = scmp.eq.s32.totalorder %s28, 1
      %p60 = por %p58, %p59
      %p61 = scmp.ne.s32.totalorder %s50, %s51
      %p62 = scmp.eq.s32.totalorder %s28, 0
      %p63 = por %p61, %p62
      %p64 = scmp.ne.s32.totalorder %s50, %s51
      %p65 = scmp.eq.s32.totalorder %s29, 1
      %p66 = por %p64, %p65
      %p68 = scmp.ne.s32.totalorder %s51, %s67
      %p69 = scmp.eq.s32.totalorder %s29, 0
      %p70 = por %p68, %p69
      %s71 = ssub.s32 %s30, %s42
      %s72 = ssub.s32 %s31, %s38
      %s73 = sor.u32 %s71, %s72
      %p74 = scmp.eq.s32.totalorder %s73, 0
      %s76 = sadd.s32 %s75, 1
      %s77 = scalar_select %p74, %s75, %s76
      %p80 = pneg %p74
      %p81 = scmp.eq.s32.totalorder %s23, 1
      %p82 = por %p80, %p81
      %p83 = scmp.ne.s32.totalorder %s75, %s78
      %p84 = scmp.eq.s32.totalorder %s23, 0
      %p85 = por %p83, %p84
      %p86 = scmp.ne.s32.totalorder %s75, %s78
      %p87 = scmp.eq.s32.totalorder %s28, 1
      %p88 = por %p86, %p87
      %p89 = scmp.ne.s32.totalorder %s78, %s79
      %p90 = scmp.eq.s32.totalorder %s28, 0
      %p91 = por %p89, %p90
      %p92 = scmp.ne.s32.totalorder %s78, %s79
      %p93 = scmp.eq.s32.totalorder %s29, 1
      %p94 = por %p92, %p93
      %p96 = scmp.ne.s32.totalorder %s79, %s95
      %p97 = scmp.eq.s32.totalorder %s29, 0
      %p98 = por %p96, %p97
      %s100 = sadd.s32 %s99, 1
      %p103 = scmp.eq.s32.totalorder %s23, 1
      %p104 = scmp.ne.s32.totalorder %s99, %s101
      %p105 = scmp.eq.s32.totalorder %s23, 0
      %p106 = por %p104, %p105
      %p107 = scmp.ne.s32.totalorder %s99, %s101
      %p108 = scmp.eq.s32.totalorder %s28, 1
      %p109 = por %p107, %p108
      %p110 = scmp.ne.s32.totalorder %s101, %s102
      %p111 = scmp.eq.s32.totalorder %s28, 0
      %p112 = por %p110, %p111
      %p113 = scmp.ne.s32.totalorder %s101, %s102
      %p114 = scmp.eq.s32.totalorder %s29, 1
      %p115 = por %p113, %p114
      %p117 = scmp.ne.s32.totalorder %s102, %s116
      %p118 = scmp.eq.s32.totalorder %s29, 0
      %p119 = por %p117, %p118
      %s121 = sadd.s32 %s120, 1
      %p124 = scmp.eq.s32.totalorder %s23, 1
      %p125 = scmp.ne.s32.totalorder %s120, %s122
      %p126 = scmp.eq.s32.totalorder %s23, 0
      %p127 = por %p125, %p126
      %p128 = scmp.ne.s32.totalorder %s120, %s122
      %p129 = scmp.eq.s32.totalorder %s28, 1
      %p130 = por %p128, %p129
      %p131 = scmp.ne.s32.totalorder %s122, %s123
      %p132 = scmp.eq.s32.totalorder %s28, 0
      %p133 = por %p131, %p132
      %p134 = scmp.ne.s32.totalorder %s122, %s123
      %p135 = scmp.eq.s32.totalorder %s29, 1
      %p136 = por %p134, %p135
      %p138 = scmp.ne.s32.totalorder %s123, %s137
      %p139 = scmp.eq.s32.totalorder %s29, 0
      %p140 = por %p138, %p139
      %s142 = sadd.s32 %s141, 1
      %p145 = scmp.eq.s32.totalorder %s23, 1
      %p146 = scmp.ne.s32.totalorder %s141, %s143
      %p147 = scmp.eq.s32.totalorder %s23, 0
      %p148 = por %p146, %p147
      %p149 = scmp.ne.s32.totalorder %s141, %s143
      %p150 = scmp.eq.s32.totalorder %s28, 1
      %p151 = por %p149, %p150
      %p152 = scmp.ne.s32.totalorder %s143, %s144
      %p153 = scmp.eq.s32.totalorder %s28, 0
      %p154 = por %p152, %p153
      %p155 = scmp.ne.s32.totalorder %s143, %s144
      %p156 = scmp.eq.s32.totalorder %s29, 1
      %p157 = por %p155, %p156
      %p159 = scmp.ne.s32.totalorder %s144, %s158
      %p160 = scmp.eq.s32.totalorder %s29, 0
      %p161 = por %p159, %p160
      %s163 = sadd.s32 %s162, 1
      %p166 = scmp.eq.s32.totalorder %s23, 1
      %p167 = scmp.ne.s32.totalorder %s162, %s164
      %p168 = scmp.eq.s32.totalorder %s23, 0
      %p169 = por %p167, %p168
      %p170 = scmp.ne.s32.totalorder %s162, %s164
      %p171 = scmp.eq.s32.totalorder %s28, 1
      %p172 = por %p170, %p171
      %p173 = scmp.ne.s32.totalorder %s164, %s165
      %p174 = scmp.eq.s32.totalorder %s28, 0
      %p175 = por %p173, %p174
      %p176 = scmp.ne.s32.totalorder %s164, %s165
      %p177 = scmp.eq.s32.totalorder %s29, 1
      %p178 = por %p176, %p177
      %p180 = scmp.ne.s32.totalorder %s165, %s179
      %p181 = scmp.eq.s32.totalorder %s29, 0
      %p182 = por %p180, %p181
      %s184 = sadd.s32 %s183, 1
      %p187 = scmp.eq.s32.totalorder %s23, 1
      %p188 = scmp.ne.s32.totalorder %s183, %s185
      %p189 = scmp.eq.s32.totalorder %s23, 0
      %p190 = por %p188, %p189
      %p191 = scmp.ne.s32.totalorder %s183, %s185
      %p192 = scmp.eq.s32.totalorder %s28, 1
      %p193 = por %p191, %p192
      %p194 = scmp.ne.s32.totalorder %s185, %s186
      %p195 = scmp.eq.s32.totalorder %s28, 0
      %p196 = por %p194, %p195
      %p197 = scmp.ne.s32.totalorder %s185, %s186
      %p198 = scmp.eq.s32.totalorder %s29, 1
      %p199 = por %p197, %p198
      %p201 = scmp.ne.s32.totalorder %s186, %s200
      %p202 = scmp.eq.s32.totalorder %s29, 0
      %p203 = por %p201, %p202
      %s205 = sadd.s32 %s204, 1
      %p208 = scmp.eq.s32.totalorder %s23, 1
      %p209 = scmp.ne.s32.totalorder %s204, %s206
      %p210 = scmp.eq.s32.totalorder %s23, 0
      %p211 = por %p209, %p210
      %p212 = scmp.ne.s32.totalorder %s204, %s206
      %p213 = scmp.eq.s32.totalorder %s28, 1
      %p214 = por %p212, %p213
      %p215 = scmp.ne.s32.totalorder %s206, %s207
      %p216 = scmp.eq.s32.totalorder %s28, 0
      %p217 = por %p215, %p216
      %p218 = scmp.ne.s32.totalorder %s206, %s207
      %p219 = scmp.eq.s32.totalorder %s29, 1
      %p220 = por %p218, %p219
      %p222 = scmp.ne.s32.totalorder %s207, %s221
      %p223 = scmp.eq.s32.totalorder %s29, 0
      %p224 = por %p222, %p223
      %s226 = sadd.s32 %s225, 1
      %p229 = scmp.eq.s32.totalorder %s23, 1
      %p230 = scmp.ne.s32.totalorder %s225, %s227
      %p231 = scmp.eq.s32.totalorder %s23, 0
      %p232 = por %p230, %p231
      %p233 = scmp.ne.s32.totalorder %s225, %s227
      %p234 = scmp.eq.s32.totalorder %s28, 1
      %p235 = por %p233, %p234
      %p236 = scmp.ne.s32.totalorder %s227, %s228
      %p237 = scmp.eq.s32.totalorder %s28, 0
      %p238 = por %p236, %p237
      %p239 = scmp.ne.s32.totalorder %s227, %s228
      %p240 = scmp.eq.s32.totalorder %s29, 1
      %p241 = por %p239, %p240
      %p243 = scmp.ne.s32.totalorder %s228, %s242
      %p244 = scmp.eq.s32.totalorder %s29, 0
      %p245 = por %p243, %p244
      %s247 = sadd.s32 %s246, 1
      %p250 = scmp.eq.s32.totalorder %s23, 1
      %p251 = scmp.ne.s32.totalorder %s246, %s248
      %p252 = scmp.eq.s32.totalorder %s23, 0
      %p253 = por %p251, %p252
      %p254 = scmp.ne.s32.totalorder %s246, %s248
      %p255 = scmp.eq.s32.totalorder %s28, 1
      %p256 = por %p254, %p255
      %p257 = scmp.ne.s32.totalorder %s248, %s249
      %p258 = scmp.eq.s32.totalorder %s28, 0
      %p259 = por %p257, %p258
      %p260 = scmp.ne.s32.totalorder %s248, %s249
      %p261 = scmp.eq.s32.totalorder %s29, 1
      %p262 = por %p260, %p261
      %p264 = scmp.ne.s32.totalorder %s249, %s263
      %p265 = scmp.eq.s32.totalorder %s29, 0
      %p266 = por %p264, %p265
      %s268 = sadd.s32 %s267, 1
      %p271 = scmp.eq.s32.totalorder %s23, 1
      %p272 = scmp.ne.s32.totalorder %s267, %s269
      %p273 = scmp.eq.s32.totalorder %s23, 0
      %p274 = por %p272, %p273
      %p275 = scmp.ne.s32.totalorder %s267, %s269
      %p276 = scmp.eq.s32.totalorder %s28, 1
      %p277 = por %p275, %p276
      %p278 = scmp.ne.s32.totalorder %s269, %s270
      %p279 = scmp.eq.s32.totalorder %s28, 0
      %p280 = por %p278, %p279
      %p281 = scmp.ne.s32.totalorder %s269, %s270
      %p282 = scmp.eq.s32.totalorder %s29, 1
      %p283 = por %p281, %p282
      %p285 = scmp.ne.s32.totalorder %s270, %s284
      %p286 = scmp.eq.s32.totalorder %s29, 0
      %p287 = por %p285, %p286
      %s289 = sadd.s32 %s288, 1
      %p292 = scmp.eq.s32.totalorder %s23, 1
      %p293 = scmp.ne.s32.totalorder %s288, %s290
      %p294 = scmp.eq.s32.totalorder %s23, 0
      %p295 = por %p293, %p294
      %p296 = scmp.ne.s32.totalorder %s288, %s290
      %p297 = scmp.eq.s32.totalorder %s28, 1
      %p298 = por %p296, %p297
      %p299 = scmp.ne.s32.totalorder %s290, %s291
      %p300 = scmp.eq.s32.totalorder %s28, 0
      %p301 = por %p299, %p300
      %p302 = scmp.ne.s32.totalorder %s290, %s291
      %p303 = scmp.eq.s32.totalorder %s29, 1
      %p304 = por %p302, %p303
      %p306 = scmp.ne.s32.totalorder %s291, %s305
      %p307 = scmp.eq.s32.totalorder %s29, 0
      %p308 = por %p306, %p307
      %s310 = sadd.s32 %s309, 1
      %p313 = scmp.eq.s32.totalorder %s23, 1
      %p314 = scmp.ne.s32.totalorder %s309, %s311
      %p315 = scmp.eq.s32.totalorder %s23, 0
      %p316 = por %p314, %p315
      %p317 = scmp.ne.s32.totalorder %s309, %s311
      %p318 = scmp.eq.s32.totalorder %s28, 1
      %p319 = por %p317, %p318
      %p320 = scmp.ne.s32.totalorder %s311, %s312
      %p321 = scmp.eq.s32.totalorder %s28, 0
      %p322 = por %p320, %p321
      %p323 = scmp.ne.s32.totalorder %s311, %s312
      %p324 = scmp.eq.s32.totalorder %s29, 1
      %p325 = por %p323, %p324
      %p327 = scmp.ne.s32.totalorder %s312, %s326
      %p328 = scmp.eq.s32.totalorder %s29, 0
      %p329 = por %p327, %p328
      %s331 = sadd.s32 %s330, 1
      %p334 = scmp.eq.s32.totalorder %s23, 1
      %p335 = scmp.ne.s32.totalorder %s330, %s332
      %p336 = scmp.eq.s32.totalorder %s23, 0
      %p337 = por %p335, %p336
      %p338 = scmp.ne.s32.totalorder %s330, %s332
      %p339 = scmp.eq.s32.totalorder %s28, 1
      %p340 = por %p338, %p339
      %p341 = scmp.ne.s32.totalorder %s332, %s333
      %p342 = scmp.eq.s32.totalorder %s28, 0
      %p343 = por %p341, %p342
      %p344 = scmp.ne.s32.totalorder %s332, %s333
      %p345 = scmp.eq.s32.totalorder %s29, 1
      %p346 = por %p344, %p345
      %p348 = scmp.ne.s32.totalorder %s333, %s347
      %p349 = scmp.eq.s32.totalorder %s29, 0
      %p350 = por %p348, %p349
      %s351 = ssub.s32 %s30, %s42
      %s352 = ssub.s32 %s31, %s38
      %s353 = sor.u32 %s351, %s352
      %p354 = scmp.eq.s32.totalorder %s353, 0
      %s356 = sadd.s32 %s355, 1
      %s357 = scalar_select %p354, %s355, %s356
      %p360 = pneg %p354
      %p361 = scmp.eq.s32.totalorder %s23, 1
      %p362 = por %p360, %p361
      %p363 = scmp.ne.s32.totalorder %s355, %s358
      %p364 = scmp.eq.s32.totalorder %s23, 0
      %p365 = por %p363, %p364
      %p366 = scmp.ne.s32.totalorder %s355, %s358
      %p367 = scmp.eq.s32.totalorder %s28, 1
      %p368 = por %p366, %p367
      %p369 = scmp.ne.s32.totalorder %s358, %s359
      %p370 = scmp.eq.s32.totalorder %s28, 0
      %p371 = por %p369, %p370
      %p372 = scmp.ne.s32.totalorder %s358, %s359
      %p373 = scmp.eq.s32.totalorder %s29, 1
      %p374 = por %p372, %p373
      %p376 = scmp.ne.s32.totalorder %s359, %s375
      %p377 = scmp.eq.s32.totalorder %s29, 0
      %p378 = por %p376, %p377
      %p379 = scmp.le.s32.totalorder 1, %s23
      %p380 = scmp.lt.s32.totalorder %s23, 3
      %p381 = pnand %p379, %p380
      %p382 = pneg %p381
      // Predicated region
      $region9: #{encoder_forward.7} parent=5 // pred_check
        _
      $region10: #{encoder_forward.7} parent=5 // pred_check_branch
        %384 = sbr.rel (%p381) target = $region12
      $region11: #{encoder_forward.7} parent=5 // pred_region
        %s385 = ssub.s32 %s23, 1
        // Predicated region
        $region13: #{encoder_forward.7} parent=11 // pred_check
          %p386 = pneg %p112
        $region14: #{encoder_forward.7} parent=11 // pred_check_branch
          %388 = sbr.rel (%p386) target = $region16
        $region15: #{encoder_forward.7} parent=11 // pred_region
          _
        $region16: #{encoder_forward.7} parent=11 // pred_fallthru
          _
        // Predicated region
        $region17: #{encoder_forward.7} parent=11 // pred_check
          %p389 = pneg %p133
        $region18: #{encoder_forward.7} parent=11 // pred_check_branch
          %391 = sbr.rel (%p389) target = $region20
        $region19: #{encoder_forward.7} parent=11 // pred_region
          _
        $region20: #{encoder_forward.7} parent=11 // pred_fallthru
          _
        // Predicated region
        $region21: #{encoder_forward.7} parent=11 // pred_check
          %p392 = pneg %p154
        $region22: #{encoder_forward.7} parent=11 // pred_check_branch
          %394 = sbr.rel (%p392) target = $region24
        $region23: #{encoder_forward.7} parent=11 // pred_region
          _
        $region24: #{encoder_forward.7} parent=11 // pred_fallthru
          _
        // Predicated region
        $region25: #{encoder_forward.7} parent=11 // pred_check
          %p395 = pneg %p175
        $region26: #{encoder_forward.7} parent=11 // pred_check_branch
          %397 = sbr.rel (%p395) target = $region28
        $region27: #{encoder_forward.7} parent=11 // pred_region
          _
        $region28: #{encoder_forward.7} parent=11 // pred_fallthru
          _
        // Predicated region
        $region29: #{encoder_forward.7} parent=11 // pred_check
          %p398 = pneg %p196
        $region30: #{encoder_forward.7} parent=11 // pred_check_branch
          %400 = sbr.rel (%p398) target = $region32
        $region31: #{encoder_forward.7} parent=11 // pred_region
          _
        $region32: #{encoder_forward.7} parent=11 // pred_fallthru
          _
        // Predicated region
        $region33: #{encoder_forward.7} parent=11 // pred_check
          %p401 = pneg %p217
        $region34: #{encoder_forward.7} parent=11 // pred_check_branch
          %403 = sbr.rel (%p401) target = $region36
        $region35: #{encoder_forward.7} parent=11 // pred_region
          _
        $region36: #{encoder_forward.7} parent=11 // pred_fallthru
          _
        // Predicated region
        $region37: #{encoder_forward.7} parent=11 // pred_check
          %p404 = pneg %p238
        $region38: #{encoder_forward.7} parent=11 // pred_check_branch
          %406 = sbr.rel (%p404) target = $region40
        $region39: #{encoder_forward.7} parent=11 // pred_region
          _
        $region40: #{encoder_forward.7} parent=11 // pred_fallthru
          _
        // Predicated region
        $region41: #{encoder_forward.7} parent=11 // pred_check
          %p407 = pneg %p259
        $region42: #{encoder_forward.7} parent=11 // pred_check_branch
          %409 = sbr.rel (%p407) target = $region44
        $region43: #{encoder_forward.7} parent=11 // pred_region
          _
        $region44: #{encoder_forward.7} parent=11 // pred_fallthru
          _
        // Predicated region
        $region45: #{encoder_forward.7} parent=11 // pred_check
          %p410 = pneg %p280
        $region46: #{encoder_forward.7} parent=11 // pred_check_branch
          %412 = sbr.rel (%p410) target = $region48
        $region47: #{encoder_forward.7} parent=11 // pred_region
          _
        $region48: #{encoder_forward.7} parent=11 // pred_fallthru
          _
        // Predicated region
        $region49: #{encoder_forward.7} parent=11 // pred_check
          %p413 = pneg %p301
        $region50: #{encoder_forward.7} parent=11 // pred_check_branch
          %415 = sbr.rel (%p413) target = $region52
        $region51: #{encoder_forward.7} parent=11 // pred_region
          _
        $region52: #{encoder_forward.7} parent=11 // pred_fallthru
          _
        // Predicated region
        $region53: #{encoder_forward.7} parent=11 // pred_check
          %p416 = pneg %p322
        $region54: #{encoder_forward.7} parent=11 // pred_check_branch
          %418 = sbr.rel (%p416) target = $region56
        $region55: #{encoder_forward.7} parent=11 // pred_region
          _
        $region56: #{encoder_forward.7} parent=11 // pred_fallthru
          _
        // Predicated region
        $region57: #{encoder_forward.7} parent=11 // pred_check
          %p419 = pneg %p343
        $region58: #{encoder_forward.7} parent=11 // pred_check_branch
          %421 = sbr.rel (%p419) target = $region60
        $region59: #{encoder_forward.7} parent=11 // pred_region
          _
        $region60: #{encoder_forward.7} parent=11 // pred_fallthru
          _
      $region12: #{encoder_forward.7} parent=5 // pred_fallthru
        _
      %p422 = scmp.lt.s32.totalorder %s23, 2
      // Predicated region
      $region61: #{encoder_forward.7} parent=5 // pred_check
        %p423 = pneg %p422
      $region62: #{encoder_forward.7} parent=5 // pred_check_branch
        %425 = sbr.rel (%p423) target = $region64
      $region63: #{encoder_forward.7} parent=5 // pred_region
        // Predicated region
        $region65: #{encoder_forward.7} parent=63 // pred_check
          %p426 = pneg %p57
        $region66: #{encoder_forward.7} parent=63 // pred_check_branch
          %428 = sbr.rel (%p426) target = $region68
        $region67: #{encoder_forward.7} parent=63 // pred_region
          %p429 = scmp.lt.s32.totalorder %s30, 1
          %s430 = scalar_select %p429, %s30, 1
          %p431 = scmp.lt.s32.totalorder %s31, 0
          %s432 = scalar_select %p431, %s31, 0
          %s433 = smul.addr %s430, 4
          %s434 = sadd.s32 %s432, %s433
          %s435 = smul.addr %s434, 4
          %s436 = scalar_lea.vmem %s0, %s435
        $region68: #{encoder_forward.7} parent=63 // pred_fallthru
          _
        // Predicated region
        $region69: #{encoder_forward.7} parent=63 // pred_check
          %p437 = pneg %p85
        $region70: #{encoder_forward.7} parent=63 // pred_check_branch
          %439 = sbr.rel (%p437) target = $region72
        $region71: #{encoder_forward.7} parent=63 // pred_region
          %p440 = scmp.lt.s32.totalorder %s30, 1
          %s441 = scalar_select %p440, %s30, 1
          %p442 = scmp.lt.s32.totalorder %s31, 0
          %s443 = scalar_select %p442, %s31, 0
          %s444 = sadd.s32 %s443, %s441
          %s445 = smul.addr %s444, 8
          %s446 = scalar_lea.vmem %s1, %s445
        $region72: #{encoder_forward.7} parent=63 // pred_fallthru
          _
      $region64: #{encoder_forward.7} parent=5 // pred_fallthru
        _
      %p447 = scmp.le.s32.totalorder 1, %s23
      %p448 = scmp.lt.s32.totalorder %s23, 3
      %p449 = pnand %p447, %p448
      %p450 = pneg %p449
      // Predicated region
      $region73: #{encoder_forward.7} parent=5 // pred_check
        _
      $region74: #{encoder_forward.7} parent=5 // pred_check_branch
        %452 = sbr.rel (%p449) target = $region76
      $region75: #{encoder_forward.7} parent=5 // pred_region
        %s453 = ssub.s32 %s23, 1
        %p454 = scmp.lt.s32.totalorder %s32, 1
        %s455 = scalar_select %p454, %s32, 1
        %p456 = scmp.lt.s32.totalorder %s33, 0
        %s457 = scalar_select %p456, %s33, 0
        %s458 = smul.addr %s455, 4
        %s459 = sadd.s32 %s457, %s458
        %s460 = smul.addr %s459, 4
        %s461 = scalar_lea.vmem %s0, %s460
        %p462 = pneg %p63
        %p463 = pneg %p60
        %p464 = scmp.lt.s32.totalorder %s32, 1
        %s465 = scalar_select %p464, %s32, 1
        %p466 = scmp.lt.s32.totalorder %s33, 0
        %s467 = scalar_select %p466, %s33, 0
        %s468 = sadd.s32 %s467, %s465
        %s469 = smul.addr %s468, 8
        %s470 = scalar_lea.vmem %s1, %s469
        %p471 = pneg %p91
        %p472 = pneg %p88
        %p473 = pneg %p112
        %p474 = pneg %p109
        %p475 = pneg %p133
        %p476 = pneg %p130
        %p477 = pneg %p154
        %p478 = pneg %p151
        %p479 = pneg %p175
        %p480 = pneg %p172
        %p481 = pneg %p196
        %p482 = pneg %p193
        %p483 = pneg %p217
        %p484 = pneg %p214
        %p485 = pneg %p238
        %p486 = pneg %p235
        %p487 = pneg %p259
        %p488 = pneg %p256
        %p489 = pneg %p280
        %p490 = pneg %p277
        %p491 = pneg %p301
        %p492 = pneg %p298
        %p493 = pneg %p322
        %p494 = pneg %p319
        %p495 = pneg %p343
        %p496 = pneg %p340
        %p497 = pneg %p371
        %p498 = pneg %p368
        %s499 = sand.u32 %s358, 1
        %s500 = scalar_lea.sflag [#allocation3], %s499
        %s501 = sand.u32 %s358, 1
        %s502 = smul.addr %s501, 8
        %s503 = scalar_lea.vmem [#allocation2], %s502
        %p504 = scmp.lt.s32.totalorder %s32, 1
        %s505 = scalar_select %p504, %s32, 1
        %p506 = scmp.lt.s32.totalorder %s33, 0
        %s507 = scalar_select %p506, %s33, 0
        %s508 = smul.addr %s505, 4
        %s509 = sadd.s32 %s507, %s508
        %s510 = smul.addr %s509, 4
        %s511 = scalar_lea.vmem %s0, %s510
        %p512 = scmp.lt.s32.totalorder %s32, 1
        %s513 = scalar_select %p512, %s32, 1
        %p514 = scmp.lt.s32.totalorder %s33, 0
        %s515 = scalar_select %p514, %s33, 0
        %s516 = sadd.s32 %s515, %s513
        %s517 = smul.addr %s516, 8
        %s518 = scalar_lea.vmem %s1, %s517
        %v520 = vld [vmem:[%s518] sm:$0xff]
        %v521 = vld [vmem:[%s511] sm:$0xf]
        %v522 = vld [vmem:[%s2] sm:$0xf]
        %s523 = scalar_lea.vmem %s511, 4
        %v524 = vld [vmem:[%s523] sm:$0xf]
        %s525 = scalar_lea.vmem %s2, 4
        %v526 = vld [vmem:[%s525] sm:$0xf]
        %vm527 = vcmask 64512
        %v529 = vsel %vm527, %v524, 0
        %vm531 = vcmask 1043456
        %v533 = vsel %vm531, %v526, 0
        %535 = vmatprep.subr.bf16.mxu0 0
        %536 = vmatpush1.bf16.msra.mxu0 0
        %537 = vmatprep.subr.bf16.mxu0 0
        %538 = vmatpush1.bf16.msra.mxu0 0
        %539 = vmatprep.subr.bf16.mxu0 0
        %540 = vmatpush1.bf16.msra.mxu0 0
        %541 = vmatprep.subr.bf16.mxu0 0
        %542 = vmatpush1.bf16.msra.mxu0 0
        %543 = vmatprep.subr.bf16.mxu0 0
        %544 = vmatpush1.bf16.msra.mxu0 0
        %545 = vmatprep.subr.bf16.mxu0 0
        %546 = vmatpush1.bf16.msra.mxu0 0
        %547 = vmatprep.subr.bf16.mxu0 0
        %548 = vmatpush1.bf16.msra.mxu0 0
        %549 = vmatprep.subr.bf16.mxu0 0
        %550 = vmatpush1.bf16.msra.mxu0 %v533
        %551 = vmatprep.subr.bf16.mxu0 0
        %552 = vmatpush2.bf16.msra.mxu0 0
        %553 = vmatprep.subr.bf16.mxu0 0
        %554 = vmatpush2.bf16.msra.mxu0 0
        %555 = vmatprep.subr.bf16.mxu0 0
        %556 = vmatpush2.bf16.msra.mxu0 0
        %557 = vmatprep.subr.bf16.mxu0 0
        %558 = vmatpush2.bf16.msra.mxu0 0
        %559 = vmatprep.subr.bf16.mxu0 0
        %560 = vmatpush2.bf16.msra.mxu0 0
        %561 = vmatprep.subr.bf16.mxu0 0
        %562 = vmatpush2.bf16.msra.mxu0 0
        %563 = vmatprep.subr.bf16.mxu0 0
        %564 = vmatpush2.bf16.msra.mxu0 0
        %565 = vmatprep.subr.bf16.mxu0 0
        %566 = vmatpush2.bf16.msra.mxu0 0
        %567 = vmatprep.mubr.bf16.mxu0 0
        %568 = vmatmul.mubr.bf16.gmra.mxu0 %v529
        %v569 = vpop.f32.mrf.mxu0
        %v570 = vadd.f32 0.0, %v569
        %v571 = vpop.f32.mrf.mxu0
        %v572 = vpop.f32.mrf.mxu0
        %v573 = vpop.f32.mrf.mxu0
        %574 = vdwg.mxu0
        %v576 = vsel %vm527, %v521, 0
        %v579 = vsel %vm531, %v522, 0
        %581 = vmatprep.subr.bf16.mxu0 0
        %582 = vmatpush1.bf16.msra.mxu0 0
        %583 = vmatprep.subr.bf16.mxu0 0
        %584 = vmatpush1.bf16.msra.mxu0 0
        %585 = vmatprep.subr.bf16.mxu0 0
        %586 = vmatpush1.bf16.msra.mxu0 0
        %587 = vmatprep.subr.bf16.mxu0 0
        %588 = vmatpush1.bf16.msra.mxu0 0
        %589 = vmatprep.subr.bf16.mxu0 0
        %590 = vmatpush1.bf16.msra.mxu0 0
        %591 = vmatprep.subr.bf16.mxu0 0
        %592 = vmatpush1.bf16.msra.mxu0 0
        %593 = vmatprep.subr.bf16.mxu0 0
        %594 = vmatpush1.bf16.msra.mxu0 0
        %595 = vmatprep.subr.bf16.mxu0 0
        %596 = vmatpush1.bf16.msra.mxu0 %v579
        %597 = vmatprep.subr.bf16.mxu0 0
        %598 = vmatpush2.bf16.msra.mxu0 0
        %599 = vmatprep.subr.bf16.mxu0 0
        %600 = vmatpush2.bf16.msra.mxu0 0
        %601 = vmatprep.subr.bf16.mxu0 0
        %602 = vmatpush2.bf16.msra.mxu0 0
        %603 = vmatprep.subr.bf16.mxu0 0
        %604 = vmatpush2.bf16.msra.mxu0 0
        %605 = vmatprep.subr.bf16.mxu0 0
        %606 = vmatpush2.bf16.msra.mxu0 0
        %607 = vmatprep.subr.bf16.mxu0 0
        %608 = vmatpush2.bf16.msra.mxu0 0
        %609 = vmatprep.subr.bf16.mxu0 0
        %610 = vmatpush2.bf16.msra.mxu0 0
        %611 = vmatprep.subr.bf16.mxu0 0
        %612 = vmatpush2.bf16.msra.mxu0 0
        %613 = vmatprep.mubr.bf16.mxu0 0
        %614 = vmatmul.mubr.bf16.gmra.mxu0 %v576
        %v615 = vpop.f32.mrf.mxu0
        %v616 = vadd.f32 %v570, %v615
        %v617 = vpop.f32.mrf.mxu0
        %v618 = vpop.f32.mrf.mxu0
        %v619 = vpop.f32.mrf.mxu0
        %620 = vdwg.mxu0
        %s621 = scalar_lea.vmem %s511, 8
        %v622 = vld [vmem:[%s621] sm:$0xf]
        %s623 = scalar_lea.vmem %s2, 8
        %v624 = vld [vmem:[%s623] sm:$0xf]
        %v626 = vsel %vm527, %v622, 0
        %v629 = vsel %vm531, %v624, 0
        %631 = vmatprep.subr.bf16.mxu0 0
        %632 = vmatpush1.bf16.msra.mxu0 0
        %633 = vmatprep.subr.bf16.mxu0 0
        %634 = vmatpush1.bf16.msra.mxu0 0
        %635 = vmatprep.subr.bf16.mxu0 0
        %636 = vmatpush1.bf16.msra.mxu0 0
        %637 = vmatprep.subr.bf16.mxu0 0
        %638 = vmatpush1.bf16.msra.mxu0 0
        %639 = vmatprep.subr.bf16.mxu0 0
        %640 = vmatpush1.bf16.msra.mxu0 0
        %641 = vmatprep.subr.bf16.mxu0 0
        %642 = vmatpush1.bf16.msra.mxu0 0
        %643 = vmatprep.subr.bf16.mxu0 0
        %644 = vmatpush1.bf16.msra.mxu0 0
        %645 = vmatprep.subr.bf16.mxu0 0
        %646 = vmatpush1.bf16.msra.mxu0 %v629
        %647 = vmatprep.subr.bf16.mxu0 0
        %648 = vmatpush2.bf16.msra.mxu0 0
        %649 = vmatprep.subr.bf16.mxu0 0
        %650 = vmatpush2.bf16.msra.mxu0 0
        %651 = vmatprep.subr.bf16.mxu0 0
        %652 = vmatpush2.bf16.msra.mxu0 0
        %653 = vmatprep.subr.bf16.mxu0 0
        %654 = vmatpush2.bf16.msra.mxu0 0
        %655 = vmatprep.subr.bf16.mxu0 0
        %656 = vmatpush2.bf16.msra.mxu0 0
        %657 = vmatprep.subr.bf16.mxu0 0
        %658 = vmatpush2.bf16.msra.mxu0 0
        %659 = vmatprep.subr.bf16.mxu0 0
        %660 = vmatpush2.bf16.msra.mxu0 0
        %661 = vmatprep.subr.bf16.mxu0 0
        %662 = vmatpush2.bf16.msra.mxu0 0
        %663 = vmatprep.mubr.bf16.mxu0 0
        %664 = vmatmul.mubr.bf16.gmra.mxu0 %v626
        %v665 = vpop.f32.mrf.mxu0
        %v666 = vadd.f32 0.0, %v665
        %v667 = vpop.f32.mrf.mxu0
        %v668 = vpop.f32.mrf.mxu0
        %v669 = vpop.f32.mrf.mxu0
        %670 = vdwg.mxu0
        %v671 = vadd.f32 %v616, %v666
        %s672 = scalar_lea.vmem %s511, 12
        %v673 = vld [vmem:[%s672] sm:$0xf]
        %s674 = scalar_lea.vmem %s2, 12
        %v675 = vld [vmem:[%s674] sm:$0xf]
        %v677 = vsel %vm527, %v673, 0
        %v680 = vsel %vm531, %v675, 0
        %682 = vmatprep.subr.bf16.mxu0 0
        %683 = vmatpush1.bf16.msra.mxu0 0
        %684 = vmatprep.subr.bf16.mxu0 0
        %685 = vmatpush1.bf16.msra.mxu0 0
        %686 = vmatprep.subr.bf16.mxu0 0
        %687 = vmatpush1.bf16.msra.mxu0 0
        %688 = vmatprep.subr.bf16.mxu0 0
        %689 = vmatpush1.bf16.msra.mxu0 0
        %690 = vmatprep.subr.bf16.mxu0 0
        %691 = vmatpush1.bf16.msra.mxu0 0
        %692 = vmatprep.subr.bf16.mxu0 0
        %693 = vmatpush1.bf16.msra.mxu0 0
        %694 = vmatprep.subr.bf16.mxu0 0
        %695 = vmatpush1.bf16.msra.mxu0 0
        %696 = vmatprep.subr.bf16.mxu0 0
        %697 = vmatpush1.bf16.msra.mxu0 %v680
        %698 = vmatprep.subr.bf16.mxu0 0
        %699 = vmatpush2.bf16.msra.mxu0 0
        %700 = vmatprep.subr.bf16.mxu0 0
        %701 = vmatpush2.bf16.msra.mxu0 0
        %702 = vmatprep.subr.bf16.mxu0 0
        %703 = vmatpush2.bf16.msra.mxu0 0
        %704 = vmatprep.subr.bf16.mxu0 0
        %705 = vmatpush2.bf16.msra.mxu0 0
        %706 = vmatprep.subr.bf16.mxu0 0
        %707 = vmatpush2.bf16.msra.mxu0 0
        %708 = vmatprep.subr.bf16.mxu0 0
        %709 = vmatpush2.bf16.msra.mxu0 0
        %710 = vmatprep.subr.bf16.mxu0 0
        %711 = vmatpush2.bf16.msra.mxu0 0
        %712 = vmatprep.subr.bf16.mxu0 0
        %713 = vmatpush2.bf16.msra.mxu0 0
        %714 = vmatprep.mubr.bf16.mxu0 0
        %715 = vmatmul.mubr.bf16.gmra.mxu0 %v677
        %v716 = vpop.f32.mrf.mxu0
        %v717 = vadd.f32 0.0, %v716
        %v718 = vpop.f32.mrf.mxu0
        %v719 = vpop.f32.mrf.mxu0
        %v720 = vpop.f32.mrf.mxu0
        %721 = vdwg.mxu0
        %v722 = vadd.f32 %v671, %v717
        %v723 = vld [vmem:[%s3] sm:$0x1]
        %v725 = vlaneseq
        %v726 = vshrl.u32 %v725, 7
        %v727 = vsub.s32 0, %v726
        %v728 = vrot.slane %v723, %v727
        %v730 = vadd.f32 %v722, %v728
        %v731 = vadd.f32 %v520, %v730
        %v732 = vld [vmem:[%s4] sm:$0x1]
        %v733 = vld [vmem:[%s5] sm:$0x1]
        %vm734 = vcmask 261120
        %v735 = vsel %vm734, %v731, 0.0
        %736 = vadd.xlane.f32.xlu0 %v735
        %v737 = vpop.xlane.xlu0 %736
        %v738 = vrcp.pop 32.0
        %v739 = vmul.f32 %v737, %v738
        %v740 = vsub.f32 %v731, %v739
        %v741 = vmul.f32 %v740, %v740
        %v742 = vsel %vm734, %v741, 0.0
        %743 = vadd.xlane.f32.xlu0 %v742
        %v744 = vpop.xlane.xlu0 %743
        %v745 = vmul.f32 %v744, %v738
        %v746 = vadd.f32 %v745, 1e-05
        %v747 = vrsqrt.pop %v746
        %v748 = vmul.f32 %v740, %v747
        %v750 = vlaneseq
        %v751 = vshrl.u32 %v750, 7
        %v752 = vsub.s32 0, %v751
        %v753 = vrot.slane %v732, %v752
        %v755 = vmul.f32 %v748, %v753
        %v757 = vlaneseq
        %v758 = vshrl.u32 %v757, 7
        %v759 = vsub.s32 0, %v758
        %v760 = vrot.slane %v733, %v759
        %v762 = vadd.f32 %v755, %v760
        %v763 = vld [vmem:[%s6] sm:$0xf]
        %v764 = vld [vmem:[%s6 + $0x4] sm:$0xf]
        %v765 = vld [vmem:[%s6 + $0x8] sm:$0xf]
        %v766 = vld [vmem:[%s6 + $0xc] sm:$0xf]
        %v767 = vpack.c.bf16 %v762, %v762
        %v768 = vld [vmem:[%s7] sm:$0x1]
        %v770 = vlaneseq
        %v771 = vshrl.u32 %v770, 7
        %v772 = vsub.s32 0, %v771
        %v773 = vrot.slane %v768, %v772
        %v779 = vunpack.c.l.b16 %v763
        %v780 = vunpack.c.l.b16 %v764
        %v781 = vunpack.c.l.b16 %v765
        %v782 = vunpack.c.l.b16 %v766
        %v783 = vpack.c.b16 %v780, %v779
        %v784 = vpack.c.b16 %v782, %v781
        %v788 = vsel %vm734, %v767, 0
        %790 = vmatprep.subr.bf16.mxu0 0
        %791 = vmatpush1.bf16.msra.mxu0 0
        %792 = vmatprep.subr.bf16.mxu0 0
        %793 = vmatpush1.bf16.msra.mxu0 0
        %794 = vmatprep.subr.bf16.mxu0 0
        %795 = vmatpush1.bf16.msra.mxu0 0
        %796 = vmatprep.subr.bf16.mxu0 0
        %797 = vmatpush1.bf16.msra.mxu0 0
        %798 = vmatprep.subr.bf16.mxu0 0
        %799 = vmatpush1.bf16.msra.mxu0 0
        %800 = vmatprep.subr.bf16.mxu0 0
        %801 = vmatpush1.bf16.msra.mxu0 0
        %802 = vmatprep.subr.bf16.mxu0 0
        %803 = vmatpush1.bf16.msra.mxu0 %v784
        %804 = vmatprep.subr.bf16.mxu0 0
        %805 = vmatpush1.bf16.msra.mxu0 %v783
        %806 = vmatprep.subr.bf16.mxu0 0
        %807 = vmatpush2.bf16.msra.mxu0 0
        %808 = vmatprep.subr.bf16.mxu0 0
        %809 = vmatpush2.bf16.msra.mxu0 0
        %810 = vmatprep.subr.bf16.mxu0 0
        %811 = vmatpush2.bf16.msra.mxu0 0
        %812 = vmatprep.subr.bf16.mxu0 0
        %813 = vmatpush2.bf16.msra.mxu0 0
        %814 = vmatprep.subr.bf16.mxu0 0
        %815 = vmatpush2.bf16.msra.mxu0 0
        %816 = vmatprep.subr.bf16.mxu0 0
        %817 = vmatpush2.bf16.msra.mxu0 0
        %818 = vmatprep.subr.bf16.mxu0 0
        %819 = vmatpush2.bf16.msra.mxu0 0
        %820 = vmatprep.subr.bf16.mxu0 0
        %821 = vmatpush2.bf16.msra.mxu0 0
        %822 = vmatprep.mubr.bf16.mxu0 0
        %823 = vmatmul.mubr.bf16.gmra.mxu0 %v788
        %v824 = vpop.f32.mrf.mxu0
        %v825 = vadd.f32 %v773, %v824
        %v826 = vpop.f32.mrf.mxu0
        %v827 = vpop.f32.mrf.mxu0
        %v828 = vpop.f32.mrf.mxu0
        %829 = vdwg.mxu0
        %v830 = vmax.f32 %v825, 0.0
        %v831 = vld [vmem:[%s8] sm:$0xf]
        %v832 = vld [vmem:[%s8 + $0x4] sm:$0xf]
        %v833 = vld [vmem:[%s8 + $0x8] sm:$0xf]
        %v834 = vld [vmem:[%s8 + $0xc] sm:$0xf]
        %v835 = vld [vmem:[%s8 + $0x10] sm:$0xf]
        %v836 = vld [vmem:[%s8 + $0x14] sm:$0xf]
        %v837 = vld [vmem:[%s8 + $0x18] sm:$0xf]
        %v838 = vld [vmem:[%s8 + $0x1c] sm:$0xf]
        %v839 = vld [vmem:[%s8 + $0x20] sm:$0xf]
        %v840 = vld [vmem:[%s8 + $0x24] sm:$0xf]
        %v841 = vld [vmem:[%s8 + $0x28] sm:$0xf]
        %v842 = vld [vmem:[%s8 + $0x2c] sm:$0xf]
        %v843 = vld [vmem:[%s8 + $0x30] sm:$0xf]
        %v844 = vld [vmem:[%s8 + $0x34] sm:$0xf]
        %v845 = vld [vmem:[%s8 + $0x38] sm:$0xf]
        %v846 = vld [vmem:[%s8 + $0x3c] sm:$0xf]
        %v847 = vpack.c.bf16 %v830, %v830
        %v848 = vld [vmem:[%s9] sm:$0x1]
        %v850 = vlaneseq
        %v851 = vshrl.u32 %v850, 7
        %v852 = vsub.s32 0, %v851
        %v853 = vrot.slane %v848, %v852
        %v871 = vunpack.c.l.b16 %v831
        %v872 = vunpack.c.l.b16 %v832
        %v873 = vunpack.c.l.b16 %v833
        %v874 = vunpack.c.l.b16 %v834
        %v875 = vunpack.c.l.b16 %v835
        %v876 = vunpack.c.l.b16 %v836
        %v877 = vunpack.c.l.b16 %v837
        %v878 = vunpack.c.l.b16 %v838
        %v879 = vunpack.c.l.b16 %v839
        %v880 = vunpack.c.l.b16 %v840
        %v881 = vunpack.c.l.b16 %v841
        %v882 = vunpack.c.l.b16 %v842
        %v883 = vunpack.c.l.b16 %v843
        %v884 = vunpack.c.l.b16 %v844
        %v885 = vunpack.c.l.b16 %v845
        %v886 = vunpack.c.l.b16 %v846
        %v887 = vpack.c.b16 %v872, %v871
        %v888 = vpack.c.b16 %v874, %v873
        %v889 = vpack.c.b16 %v876, %v875
        %v890 = vpack.c.b16 %v878, %v877
        %v891 = vpack.c.b16 %v880, %v879
        %v892 = vpack.c.b16 %v882, %v881
        %v893 = vpack.c.b16 %v884, %v883
        %v894 = vpack.c.b16 %v886, %v885
        %903 = vmatprep.subr.bf16.mxu0 0
        %904 = vmatpush1.bf16.msra.mxu0 %v894
        %905 = vmatprep.subr.bf16.mxu0 0
        %906 = vmatpush1.bf16.msra.mxu0 %v893
        %907 = vmatprep.subr.bf16.mxu0 0
        %908 = vmatpush1.bf16.msra.mxu0 %v892
        %909 = vmatprep.subr.bf16.mxu0 0
        %910 = vmatpush1.bf16.msra.mxu0 %v891
        %911 = vmatprep.subr.bf16.mxu0 0
        %912 = vmatpush1.bf16.msra.mxu0 %v890
        %913 = vmatprep.subr.bf16.mxu0 0
        %914 = vmatpush1.bf16.msra.mxu0 %v889
        %915 = vmatprep.subr.bf16.mxu0 0
        %916 = vmatpush1.bf16.msra.mxu0 %v888
        %917 = vmatprep.subr.bf16.mxu0 0
        %918 = vmatpush1.bf16.msra.mxu0 %v887
        %919 = vmatprep.subr.bf16.mxu0 0
        %920 = vmatpush2.bf16.msra.mxu0 0
        %921 = vmatprep.subr.bf16.mxu0 0
        %922 = vmatpush2.bf16.msra.mxu0 0
        %923 = vmatprep.subr.bf16.mxu0 0
        %924 = vmatpush2.bf16.msra.mxu0 0
        %925 = vmatprep.subr.bf16.mxu0 0
        %926 = vmatpush2.bf16.msra.mxu0 0
        %927 = vmatprep.subr.bf16.mxu0 0
        %928 = vmatpush2.bf16.msra.mxu0 0
        %929 = vmatprep.subr.bf16.mxu0 0
        %930 = vmatpush2.bf16.msra.mxu0 0
        %931 = vmatprep.subr.bf16.mxu0 0
        %932 = vmatpush2.bf16.msra.mxu0 0
        %933 = vmatprep.subr.bf16.mxu0 0
        %934 = vmatpush2.bf16.msra.mxu0 0
        %935 = vmatprep.mubr.bf16.mxu0 0
        %936 = vmatmul.mubr.bf16.gmra.mxu0 %v847
        %v937 = vpop.f32.mrf.mxu0
        %v938 = vadd.f32 %v853, %v937
        %v939 = vpop.f32.mrf.mxu0
        %v940 = vpop.f32.mrf.mxu0
        %v941 = vpop.f32.mrf.mxu0
        %942 = vdwg.mxu0
        %v943 = vadd.f32 %v762, %v938
        %v944 = vld [vmem:[%s10] sm:$0x1]
        %v945 = vld [vmem:[%s11] sm:$0x1]
        %v946 = vsel %vm734, %v943, 0.0
        %947 = vadd.xlane.f32.xlu0 %v946
        %v948 = vpop.xlane.xlu0 %947
        %v949 = vmul.f32 %v948, %v738
        %v950 = vsub.f32 %v943, %v949
        %v951 = vmul.f32 %v950, %v950
        %v952 = vsel %vm734, %v951, 0.0
        %953 = vadd.xlane.f32.xlu0 %v952
        %v954 = vpop.xlane.xlu0 %953
        %v955 = vmul.f32 %v954, %v738
        %v956 = vadd.f32 %v955, 1e-05
        %v957 = vrsqrt.pop %v956
        %v958 = vmul.f32 %v950, %v957
        %v960 = vlaneseq
        %v961 = vshrl.u32 %v960, 7
        %v962 = vsub.s32 0, %v961
        %v963 = vrot.slane %v944, %v962
        %v965 = vmul.f32 %v958, %v963
        %v967 = vlaneseq
        %v968 = vshrl.u32 %v967, 7
        %v969 = vsub.s32 0, %v968
        %v970 = vrot.slane %v945, %v969
        %v972 = vadd.f32 %v965, %v970
        %v973 = vld [vmem:[%s12] sm:$0x1]
        %v974 = vld [vmem:[%s13] sm:$0x1]
        %v975 = vsel %vm734, %v972, 0.0
        %976 = vadd.xlane.f32.xlu0 %v975
        %v977 = vpop.xlane.xlu0 %976
        %v978 = vmul.f32 %v977, %v738
        %v979 = vsub.f32 %v972, %v978
        %v980 = vmul.f32 %v979, %v979
        %v981 = vsel %vm734, %v980, 0.0
        %982 = vadd.xlane.f32.xlu0 %v981
        %v983 = vpop.xlane.xlu0 %982
        %v984 = vmul.f32 %v983, %v738
        %v985 = vadd.f32 %v984, 1e-05
        %v986 = vrsqrt.pop %v985
        %v987 = vmul.f32 %v979, %v986
        %v989 = vlaneseq
        %v990 = vshrl.u32 %v989, 7
        %v991 = vsub.s32 0, %v990
        %v992 = vrot.slane %v973, %v991
        %v994 = vmul.f32 %v987, %v992
        %v996 = vlaneseq
        %v997 = vshrl.u32 %v996, 7
        %v998 = vsub.s32 0, %v997
        %v999 = vrot.slane %v974, %v998
        %v1001 = vadd.f32 %v994, %v999
        %1002 = vst.msk [vmem:[%s503] sm:$0xff] %vm734, %v1001
        %s1003 = sand.u32 %s358, 1
        %s1004 = scalar_lea.sflag [#allocation3], %s1003
        %s1005 = sand.u32 %s358, 1
        %s1006 = smul.addr %s1005, 8
        %s1007 = scalar_lea.vmem [#allocation2], %s1006
        // Predicated region
        $region77: #{encoder_forward.7} parent=75 // pred_check
          %p1008 = pneg %p368
        $region78: #{encoder_forward.7} parent=75 // pred_check_branch
          %1010 = sbr.rel (%p1008) target = $region80
        $region79: #{encoder_forward.7} parent=75 // pred_region
          %s1012 = ssub.s32 128, 128
          %1013 = vsyncadd %s1004, %s1012
          %s1014 = sadd.s32 %s33, %s32
          %s1015 = smul.addr %s1014, 128
          %s1016 = scalar_lea.hbm %s14, %s1015
          %s1018 = sshll.u32 %s1007, 4
          %s1019 = int_to_ptr.vmem [resolvable:$true] %s1018
          %1021 = dma.vmem_to_hbm [thread:$0]  %s1019, 128, %s1016, %s1004
        $region80: #{encoder_forward.7} parent=75 // pred_fallthru
          _
      $region76: #{encoder_forward.7} parent=5 // pred_fallthru
        _
      %p1022 = scmp.le.s32.totalorder 2, %s23
      // Predicated region
      $region81: #{encoder_forward.7} parent=5 // pred_check
        %p1023 = pneg %p1022
      $region82: #{encoder_forward.7} parent=5 // pred_check_branch
        %1025 = sbr.rel (%p1023) target = $region84
      $region83: #{encoder_forward.7} parent=5 // pred_region
        %s1026 = ssub.s32 %s23, 2
        // Predicated region
        $region85: #{encoder_forward.7} parent=83 // pred_check
          %p1027 = pneg %p374
        $region86: #{encoder_forward.7} parent=83 // pred_check_branch
          %1029 = sbr.rel (%p1027) target = $region88
        $region87: #{encoder_forward.7} parent=83 // pred_region
          %s1030 = sand.u32 %s359, 1
          %s1031 = scalar_lea.sflag [#allocation3], %s1030
          %s1032 = sand.u32 %s359, 1
          %s1033 = smul.addr %s1032, 8
          %s1034 = scalar_lea.vmem [#allocation2], %s1033
          %1035 = dma.done %s1031, 128
        $region88: #{encoder_forward.7} parent=83 // pred_fallthru
          _
      $region84: #{encoder_forward.7} parent=5 // pred_fallthru
        _
    $region6: #{encoder_forward.7} parent=1 // loop_footer
      %s27 = sadd.s32 1, %s23
    $region7: #{encoder_forward.7} parent=1 // loop_footer_branch
      %22 = sbr.rel target = $region3
    $region8: #{encoder_forward.7} parent=1 // loop_exit
      _
    %1036 = vsyncpa [#allocation3], 1
    %s1037 = scalar_lea.sflag [#allocation3], 1
    %1038 = vsyncpa %s1037, 1

</llo_original>
